<compile_context>
chip_gen: v6e
topology: v6e:2x2x1
jax: 0.10.0
libtpu: 0.0.40
codegen_flags: <defaults>
</compile_context>

<pallas_src>
import math
import jax
import jax.numpy as jnp
from jax.experimental import pallas as pl
from jax.experimental.pallas import tpu as pltpu

C = 128                 # hidden width fixed by the module
NUM_BLOCKS = 10
PRELU_ALPHA = 0.25
BN_EPS = 1e-5


# ---------------- fused Pallas kernel ----------------

def _fused_net_kernel(karr_ref,                                     # scalar prefetch (SMEM)
                      x0_ref, adj0_ref,                             # graph inputs
                      w_ref, v_ref, b_ref, sc_ref, sh_ref, p_ref,   # per-block params
                      al_ref,                                       # shared PReLU alpha
                      w1_ref, b1_ref, w2_ref, b2_ref,               # head params (W1/W2 bf16)
                      o_ref,                                        # output (B, y_size)
                      x_st, adj_st, mask_st, hacc_st):              # VMEM state
    blk = pl.program_id(0)
    B_, N_, C_ = x_st.shape
    NEG = jnp.float32(-1e30)

    @pl.when(blk == 0)
    def _():
        x_st[...] = x0_ref[...]
        adj_st[...] = adj0_ref[...]
        mask_st[...] = jnp.ones_like(mask_st)
        hacc_st[...] = jnp.zeros_like(hacc_st)

    x = x_st[...]                                    # (B,N,C) current node features
    adj = adj_st[...]                                # (B,N,N) current binary adjacency
    mask = mask_st[...]                              # (B,N,1) 1 = node still alive
    alpha = al_ref[0, 0]

    # gcn_norm without self loops: A_hat = D^{-1/2} A D^{-1/2}, zero degree -> 0
    deg = jnp.sum(adj, axis=2, keepdims=True)
    dinv = jnp.where(deg > 0, jax.lax.rsqrt(deg), 0.0)
    a_hat = adj * dinv * jnp.swapaxes(dinv, 1, 2)

    # ARMAConv (1 stack / 1 layer): relu(A_hat @ (X W) + X V + b)
    x2 = x.reshape(B_ * N_, C_)
    xw = jnp.dot(x2, w_ref[0], preferred_element_type=jnp.float32).reshape(B_, N_, C_)
    xv = jnp.dot(x2, v_ref[0], preferred_element_type=jnp.float32).reshape(B_, N_, C_)
    t = jnp.einsum('bnm,bmc->bnc', a_hat, xw,
                   preferred_element_type=jnp.float32) + xv + b_ref[0]
    t = jnp.maximum(t, 0.0)

    # BatchNorm1d (eval, folded into scale/shift) + shared PReLU
    y = t * sc_ref[0] + sh_ref[0]
    y = jnp.where(y > 0, y, alpha * y)

    # TopKPooling score: tanh((x . p) / ||p||)  (p already L2-normalized, column form)
    s = jnp.tanh(jnp.dot(y.reshape(B_ * N_, C_), p_ref[0],
                         preferred_element_type=jnp.float32)).reshape(B_, N_, 1)

    # in-kernel top-k via rank mask (static shapes; dead nodes never re-enter)
    k_f = karr_ref[blk].astype(jnp.float32)
    s_sel = jnp.where(mask > 0, s, NEG)                             # (B,N,1)
    s_m = jnp.swapaxes(s_sel, 1, 2)                                 # (B,1,N)
    idx_j = jax.lax.broadcasted_iota(jnp.int32, (B_, N_, N_), 1)
    idx_m = jax.lax.broadcasted_iota(jnp.int32, (B_, N_, N_), 2)
    beats = (s_m > s_sel) | ((s_m == s_sel) & (idx_m < idx_j))      # lower index wins ties
    rank = jnp.sum(beats.astype(jnp.float32), axis=2, keepdims=True)
    keep = jnp.where((rank < k_f) & (mask > 0), 1.0, 0.0)           # (B,N,1)

    x_new = y * s * keep                                            # x[perm]*score[perm]

    # readout: [global_max_pool ; global_mean_pool] over the k kept nodes
    gmax = jnp.max(jnp.where(keep > 0, x_new, NEG), axis=1)         # (B,C)
    gmean = jnp.sum(x_new, axis=1) / k_f                            # (B,C)
    chunk = jnp.concatenate([gmax, gmean], axis=-1)                 # (B,2C)

    # head lin1, K-tiled over the 2560 axis: accumulate this block's 256-chunk
    hacc = hacc_st[...] + jnp.dot(chunk.astype(jnp.bfloat16), w1_ref[0],
                                  preferred_element_type=jnp.float32)
    hacc_st[...] = hacc

    # carry state to next block
    x_st[...] = x_new
    adj_st[...] = adj * keep * jnp.swapaxes(keep, 1, 2)
    mask_st[...] = keep

    @pl.when(blk == pl.num_programs(0) - 1)
    def _():
        h = hacc + b1_ref[...]                                      # lin1 bias
        h = jnp.where(h > 0, h, alpha * h)                          # PReLU; dropout = id (eval)
        yy = jnp.dot(h.astype(jnp.bfloat16), w2_ref[...],
                     preferred_element_type=jnp.float32) + b2_ref[...]
        yy = jnp.where(yy > 0, yy, alpha * yy)                      # PReLU(lin2)
        yy = yy - jnp.min(yy, axis=1, keepdims=True)                # min_max_norm
        yy = yy / jnp.max(yy, axis=1, keepdims=True)
        yy = yy / jnp.sum(yy, axis=1, keepdims=True)
        o_ref[...] = yy


# ---------------- wrapper ----------------

def net_forward(x, adj, params):
    # TODO(synk): ragged per-graph node counts (torch_geometric batch vector) are not
    # modeled; every graph is assumed to have the same static N in the dense batch.
    B, N, F = x.shape
    if F < C:
        x = jnp.pad(x, ((0, 0), (0, 0), (0, C - F)))                # zero-pad features

    # static top-k schedule: k_i = ceil(0.8 * n_i), identical for all graphs
    ks, n = [], N
    for _ in range(NUM_BLOCKS):
        k = -((-4 * n) // 5)
        ks.append(k)
        n = k
    karr = jnp.asarray(ks, dtype=jnp.int32)

    H = params["b1"].shape[1]
    y_size = params["b2"].shape[1]

    return pl.pallas_call(
        _fused_net_kernel,
        out_shape=jax.ShapeDtypeStruct((B, y_size), jnp.float32),
        grid_spec=pltpu.PrefetchScalarGridSpec(
            num_scalar_prefetch=1,
            grid=(NUM_BLOCKS,),
            in_specs=[
                pl.BlockSpec((B, N, C), lambda i, k: (0, 0, 0)),        # x0
                pl.BlockSpec((B, N, N), lambda i, k: (0, 0, 0)),        # adj0
                pl.BlockSpec((1, C, C), lambda i, k: (i, 0, 0)),        # W_i
                pl.BlockSpec((1, C, C), lambda i, k: (i, 0, 0)),        # V_i
                pl.BlockSpec((1, 1, C), lambda i, k: (i, 0, 0)),        # b_i
                pl.BlockSpec((1, 1, C), lambda i, k: (i, 0, 0)),        # bn_scale_i
                pl.BlockSpec((1, 1, C), lambda i, k: (i, 0, 0)),        # bn_shift_i
                pl.BlockSpec((1, C, 1), lambda i, k: (i, 0, 0)),        # p_hat_i (column)
                pl.BlockSpec((1, 1), lambda i, k: (0, 0)),              # PReLU alpha
                pl.BlockSpec((1, 2 * C, H), lambda i, k: (i, 0, 0)),    # W1 K-slice (bf16)
                pl.BlockSpec((1, H), lambda i, k: (0, 0)),              # b1
                pl.BlockSpec((H, y_size), lambda i, k: (0, 0)),         # W2 (bf16)
                pl.BlockSpec((1, y_size), lambda i, k: (0, 0)),         # b2
            ],
            out_specs=pl.BlockSpec((B, y_size), lambda i, k: (0, 0)),
            scratch_shapes=[
                pltpu.VMEM((B, N, C), jnp.float32),                     # node features
                pltpu.VMEM((B, N, N), jnp.float32),                     # adjacency
                pltpu.VMEM((B, N, 1), jnp.float32),                     # alive mask
                pltpu.VMEM((B, H), jnp.float32),                        # lin1 accumulator
            ],
        ),
        compiler_params=pltpu.CompilerParams(
            dimension_semantics=("arbitrary",)),
    )(karr, x, adj,
      params["W"], params["V"], params["b"], params["bn_scale"], params["bn_shift"],
      params["p"], params["alpha"], params["W1"], params["b1"], params["W2"], params["b2"])


# ---------------- deterministic parameter init ----------------

def init_params(key, num_features, y_size):
    keys = iter(jax.random.split(key, 128))
    alpha = jnp.full((1, 1), PRELU_ALPHA, jnp.float32)
    Ws, Vs, bs, scs, shs, ps = [], [], [], [], [], []
    cin = num_features
    for _ in range(NUM_BLOCKS):
        W = 0.1 * jax.random.normal(next(keys), (cin, C), jnp.float32)
        V = 0.1 * jax.random.normal(next(keys), (cin, C), jnp.float32)
        if cin < C:                                   # pad Cin up to C (extra rows are zero)
            W = jnp.pad(W, ((0, C - cin), (0, 0)))
            V = jnp.pad(V, ((0, C - cin), (0, 0)))
        b = 0.05 * jax.random.normal(next(keys), (1, C), jnp.float32)
        gamma = jax.random.uniform(next(keys), (1, C), jnp.float32, 0.8, 1.2)
        beta = 0.1 * jax.random.normal(next(keys), (1, C), jnp.float32)
        mean = 0.1 * jax.random.normal(next(keys), (1, C), jnp.float32)
        var = jax.random.uniform(next(keys), (1, C), jnp.float32, 0.5, 1.5)
        bn_scale = gamma / jnp.sqrt(var + BN_EPS)
        bn_shift = beta - mean * bn_scale
        p = jax.random.normal(next(keys), (C,), jnp.float32)
        p_hat = (p / jnp.linalg.norm(p)).reshape(C, 1)
        Ws.append(W); Vs.append(V); bs.append(b)
        scs.append(bn_scale); shs.append(bn_shift); ps.append(p_hat)
        cin = C
    D = 2 * C * NUM_BLOCKS                            # 2560
    H = D // 2                                        # 1280
    W1 = 0.02 * jax.random.normal(next(keys), (D, H), jnp.float32)
    b1 = 0.02 * jax.random.normal(next(keys), (1, H), jnp.float32)
    W2 = 0.05 * jax.random.normal(next(keys), (H, y_size), jnp.float32)
    b2 = 0.05 * jax.random.normal(next(keys), (1, y_size), jnp.float32)
    return dict(
        W=jnp.stack(Ws), V=jnp.stack(Vs), b=jnp.stack(bs),
        bn_scale=jnp.stack(scs), bn_shift=jnp.stack(shs), p=jnp.stack(ps),
        alpha=alpha,
        W1=W1.reshape(NUM_BLOCKS, 2 * C, H).astype(jnp.bfloat16),   # K-tiled, bf16 (BW-bound)
        b1=b1,
        W2=W2.astype(jnp.bfloat16),
        b2=b2,
    )


if __name__ == "__main__":
    B, N0, F, Y = 2, 16, 4, 8                         # 2 graphs, 16 nodes, 4 feats, y_size=8
    key = jax.random.PRNGKey(0)
    kx, ka, kp = jax.random.split(key, 3)
    x = jax.random.normal(kx, (B, N0, F), jnp.float32)
    r = jax.random.uniform(ka, (B, N0, N0))
    r = 0.5 * (r + jnp.swapaxes(r, 1, 2))             # symmetric
    adj = (r < 0.35).astype(jnp.float32) * (1.0 - jnp.eye(N0, dtype=jnp.float32))
    params = init_params(kp, F, Y)

    fwd = jax.jit(net_forward)
    out = fwd(x, adj, params)
    out = jax.block_until_ready(out)
    assert out.shape == (B, Y) and bool(jnp.all(jnp.isfinite(out)))
    print("KERNEL_OK")
</pallas_src>

<mosaic_0001>
module attributes {stable_mosaic.version = 11 : i64} {
  func.func @_fused_net_kernel(%arg0: i32, %arg1: memref<10xi32, #tpu.memory_space<smem>>, %arg2: memref<2x16x128xf32, #tpu.memory_space<vmem>>, %arg3: memref<2x16x16xf32, #tpu.memory_space<vmem>>, %arg4: memref<1x128x128xf32, #tpu.memory_space<vmem>>, %arg5: memref<1x128x128xf32, #tpu.memory_space<vmem>>, %arg6: memref<1x1x128xf32, #tpu.memory_space<vmem>>, %arg7: memref<1x1x128xf32, #tpu.memory_space<vmem>>, %arg8: memref<1x1x128xf32, #tpu.memory_space<vmem>>, %arg9: memref<1x128x1xf32, #tpu.memory_space<vmem>>, %arg10: memref<1x1xf32, #tpu.memory_space<vmem>>, %arg11: memref<1x256x1280xbf16, #tpu.memory_space<vmem>>, %arg12: memref<1x1280xf32, #tpu.memory_space<vmem>>, %arg13: memref<1280x8xbf16, #tpu.memory_space<vmem>>, %arg14: memref<1x8xf32, #tpu.memory_space<vmem>>, %arg15: memref<2x8xf32, #tpu.memory_space<vmem>>, %arg16: memref<2x16x128xf32, #tpu.memory_space<vmem>>, %arg17: memref<2x16x16xf32, #tpu.memory_space<vmem>>, %arg18: memref<2x16x1xf32, #tpu.memory_space<vmem>>, %arg19: memref<2x1280xf32, #tpu.memory_space<vmem>>) attributes {dimension_semantics = [#tpu.dimension_semantics<arbitrary>], iteration_bounds = array<i64: 10>, scalar_prefetch = 1 : i64, scratch_operands = 4 : i64, tpu.core_type = #tpu.core_type<tc>, window_params = [{pipeline_mode = #tpu.pipeline_mode<synchronous>, transform_indices = @transform_0, window_bounds = array<i64: 2, 16, 128>}, {pipeline_mode = #tpu.pipeline_mode<synchronous>, transform_indices = @transform_1, window_bounds = array<i64: 2, 16, 16>}, {transform_indices = @transform_2, window_bounds = array<i64: 1, 128, 128>}, {transform_indices = @transform_3, window_bounds = array<i64: 1, 128, 128>}, {transform_indices = @transform_4, window_bounds = array<i64: 1, 1, 128>}, {transform_indices = @transform_5, window_bounds = array<i64: 1, 1, 128>}, {transform_indices = @transform_6, window_bounds = array<i64: 1, 1, 128>}, {transform_indices = @transform_7, window_bounds = array<i64: 1, 128, 1>}, {pipeline_mode = #tpu.pipeline_mode<synchronous>, transform_indices = @transform_8, window_bounds = array<i64: 1, 1>}, {transform_indices = @transform_9, window_bounds = array<i64: 1, 256, 1280>}, {pipeline_mode = #tpu.pipeline_mode<synchronous>, transform_indices = @transform_10, window_bounds = array<i64: 1, 1280>}, {pipeline_mode = #tpu.pipeline_mode<synchronous>, transform_indices = @transform_11, window_bounds = array<i64: 1280, 8>}, {pipeline_mode = #tpu.pipeline_mode<synchronous>, transform_indices = @transform_12, window_bounds = array<i64: 1, 8>}, {pipeline_mode = #tpu.pipeline_mode<synchronous>, transform_indices = @transform_13, window_bounds = array<i64: 2, 8>}]} {
    %c0_i32 = arith.constant 0 : i32
    %0 = arith.cmpi eq, %arg0, %c0_i32 : i32
    %1 = arith.extui %0 : i1 to i32
    %c0_i32_0 = arith.constant 0 : i32
    %2 = arith.cmpi ne, %1, %c0_i32_0 : i32
    scf.if %2 {
      %c0_65 = arith.constant 0 : index
      %c0_66 = arith.constant 0 : index
      %c0_67 = arith.constant 0 : index
      %123 = vector.load %arg2[%c0_65, %c0_66, %c0_67] : memref<2x16x128xf32, #tpu.memory_space<vmem>>, vector<2x16x128xf32>
      %c0_68 = arith.constant 0 : index
      %c0_69 = arith.constant 0 : index
      %c0_70 = arith.constant 0 : index
      %124 = vector.load %arg16[%c0_68, %c0_69, %c0_70] : memref<2x16x128xf32, #tpu.memory_space<vmem>>, vector<2x16x128xf32>
      tpu.vector_store %arg16[%c0_68, %c0_69, %c0_70], %123 {strides = array<i32>} : memref<2x16x128xf32, #tpu.memory_space<vmem>>, vector<2x16x128xf32>,
      %c0_71 = arith.constant 0 : index
      %c0_72 = arith.constant 0 : index
      %c0_73 = arith.constant 0 : index
      %125 = vector.load %arg3[%c0_71, %c0_72, %c0_73] : memref<2x16x16xf32, #tpu.memory_space<vmem>>, vector<2x16x16xf32>
      %c0_74 = arith.constant 0 : index
      %c0_75 = arith.constant 0 : index
      %c0_76 = arith.constant 0 : index
      %126 = vector.load %arg17[%c0_74, %c0_75, %c0_76] : memref<2x16x16xf32, #tpu.memory_space<vmem>>, vector<2x16x16xf32>
      tpu.vector_store %arg17[%c0_74, %c0_75, %c0_76], %125 {strides = array<i32>} : memref<2x16x16xf32, #tpu.memory_space<vmem>>, vector<2x16x16xf32>,
      %cst_77 = arith.constant 1.000000e+00 : f32
      %127 = vector.broadcast %cst_77 : f32 to vector<2x16x1xf32>
      %c0_78 = arith.constant 0 : index
      %c0_79 = arith.constant 0 : index
      %c0_80 = arith.constant 0 : index
      %128 = vector.load %arg18[%c0_78, %c0_79, %c0_80] : memref<2x16x1xf32, #tpu.memory_space<vmem>>, vector<2x16x1xf32>
      tpu.vector_store %arg18[%c0_78, %c0_79, %c0_80], %127 {strides = array<i32>} : memref<2x16x1xf32, #tpu.memory_space<vmem>>, vector<2x16x1xf32>,
      %cst_81 = arith.constant 0.000000e+00 : f32
      %129 = vector.broadcast %cst_81 : f32 to vector<2x1280xf32>
      %c0_82 = arith.constant 0 : index
      %c0_83 = arith.constant 0 : index
      %130 = vector.load %arg19[%c0_82, %c0_83] : memref<2x1280xf32, #tpu.memory_space<vmem>>, vector<2x1280xf32>
      tpu.vector_store %arg19[%c0_82, %c0_83], %129 {strides = array<i32>} : memref<2x1280xf32, #tpu.memory_space<vmem>>, vector<2x1280xf32>,
    } else {
    }
    %c0 = arith.constant 0 : index
    %c0_1 = arith.constant 0 : index
    %c0_2 = arith.constant 0 : index
    %3 = vector.load %arg16[%c0, %c0_1, %c0_2] : memref<2x16x128xf32, #tpu.memory_space<vmem>>, vector<2x16x128xf32>
    %c0_3 = arith.constant 0 : index
    %c0_4 = arith.constant 0 : index
    %c0_5 = arith.constant 0 : index
    %4 = vector.load %arg17[%c0_3, %c0_4, %c0_5] : memref<2x16x16xf32, #tpu.memory_space<vmem>>, vector<2x16x16xf32>
    %c0_6 = arith.constant 0 : index
    %c0_7 = arith.constant 0 : index
    %c0_8 = arith.constant 0 : index
    %5 = vector.load %arg18[%c0_6, %c0_7, %c0_8] : memref<2x16x1xf32, #tpu.memory_space<vmem>>, vector<2x16x1xf32>
    %c0_9 = arith.constant 0 : index
    %c0_10 = arith.constant 0 : index
    %6 = vector.load %arg10[%c0_9, %c0_10] : memref<1x1xf32, #tpu.memory_space<vmem>>, vector<1x1xf32>
    %7 = vector.extract %6[0, 0] : f32 from vector<1x1xf32>
    %cst = arith.constant dense<0.000000e+00> : vector<2x16xf32>
    %8 = vector.multi_reduction <add>, %4, %cst [2] : vector<2x16x16xf32> to vector<2x16xf32>
    %9 = vector.shape_cast %8 : vector<2x16xf32> to vector<2x16x1xf32>
    %cst_11 = arith.constant 0.000000e+00 : f32
    %10 = vector.broadcast %cst_11 : f32 to vector<2x16x1xf32>
    %11 = arith.cmpf ogt, %9, %10 : vector<2x16x1xf32>
    %12 = math.rsqrt %9 : vector<2x16x1xf32>
    %cst_12 = arith.constant 0.000000e+00 : f32
    %13 = vector.broadcast %cst_12 : f32 to vector<2x16x1xf32>
    %14 = arith.select %11, %12, %13 : vector<2x16x1xi1>, vector<2x16x1xf32>
    %15 = vector.broadcast %14 : vector<2x16x1xf32> to vector<2x16x16xf32>
    %16 = arith.mulf %4, %15 : vector<2x16x16xf32>
    %17 = tpu.transpose %14, [0, 2, 1] : vector<2x16x1xf32> -> vector<2x1x16xf32>
    %18 = vector.broadcast %17 : vector<2x1x16xf32> to vector<2x16x16xf32>
    %19 = arith.mulf %16, %18 : vector<2x16x16xf32>
    %20 = vector.shape_cast %3 : vector<2x16x128xf32> to vector<32x128xf32>
    %c0_13 = arith.constant 0 : index
    %c0_14 = arith.constant 0 : index
    %c0_15 = arith.constant 0 : index
    %21 = vector.load %arg4[%c0_13, %c0_14, %c0_15] : memref<1x128x128xf32, #tpu.memory_space<vmem>>, vector<1x128x128xf32>
    %22 = vector.shape_cast %21 : vector<1x128x128xf32> to vector<128x128xf32>
    %cst_16 = arith.constant dense<0.000000e+00> : vector<32x128xf32>
    %23 = tpu.matmul %20, %22, %cst_16 {dimension_numbers = #tpu.dot_dimension_numbers<[1], [0], [0], [1], [0, 0, 1, 1], [], []>} : vector<32x128xf32>, vector<128x128xf32>, vector<32x128xf32> -> vector<32x128xf32>
    %24 = vector.shape_cast %23 : vector<32x128xf32> to vector<2x16x128xf32>
    %c0_17 = arith.constant 0 : index
    %c0_18 = arith.constant 0 : index
    %c0_19 = arith.constant 0 : index
    %25 = vector.load %arg5[%c0_17, %c0_18, %c0_19] : memref<1x128x128xf32, #tpu.memory_space<vmem>>, vector<1x128x128xf32>
    %26 = vector.shape_cast %25 : vector<1x128x128xf32> to vector<128x128xf32>
    %cst_20 = arith.constant dense<0.000000e+00> : vector<32x128xf32>
    %27 = tpu.matmul %20, %26, %cst_20 {dimension_numbers = #tpu.dot_dimension_numbers<[1], [0], [0], [1], [0, 0, 1, 1], [], []>} : vector<32x128xf32>, vector<128x128xf32>, vector<32x128xf32> -> vector<32x128xf32>
    %28 = vector.shape_cast %27 : vector<32x128xf32> to vector<2x16x128xf32>
    "tpu.trace_start"() <{level = 10 : i32, message = "bnm,bmc->bnc"}> : () -> ()
    %cst_21 = arith.constant dense<0.000000e+00> : vector<2x16x128xf32>
    %29 = tpu.matmul %19, %24, %cst_21 {dimension_numbers = #tpu.dot_dimension_numbers<[2], [1], [1], [2], [0, 0, 0, 1, 1, 2], [0], [0]>} : vector<2x16x16xf32>, vector<2x16x128xf32>, vector<2x16x128xf32> -> vector<2x16x128xf32>
    "tpu.trace_stop"() : () -> ()
    %30 = arith.addf %29, %28 : vector<2x16x128xf32>
    %c0_22 = arith.constant 0 : index
    %c0_23 = arith.constant 0 : index
    %c0_24 = arith.constant 0 : index
    %31 = vector.load %arg6[%c0_22, %c0_23, %c0_24] : memref<1x1x128xf32, #tpu.memory_space<vmem>>, vector<1x1x128xf32>
    %32 = vector.shape_cast %31 : vector<1x1x128xf32> to vector<1x128xf32>
    %33 = vector.shape_cast %32 : vector<1x128xf32> to vector<1x1x128xf32>
    %34 = vector.broadcast %33 : vector<1x1x128xf32> to vector<2x16x128xf32>
    %35 = arith.addf %30, %34 : vector<2x16x128xf32>
    %cst_25 = arith.constant 0.000000e+00 : f32
    %36 = vector.broadcast %cst_25 : f32 to vector<2x16x128xf32>
    %37 = arith.maximumf %35, %36 : vector<2x16x128xf32>
    %c0_26 = arith.constant 0 : index
    %c0_27 = arith.constant 0 : index
    %c0_28 = arith.constant 0 : index
    %38 = vector.load %arg7[%c0_26, %c0_27, %c0_28] : memref<1x1x128xf32, #tpu.memory_space<vmem>>, vector<1x1x128xf32>
    %39 = vector.shape_cast %38 : vector<1x1x128xf32> to vector<1x128xf32>
    %40 = vector.shape_cast %39 : vector<1x128xf32> to vector<1x1x128xf32>
    %41 = vector.broadcast %40 : vector<1x1x128xf32> to vector<2x16x128xf32>
    %42 = arith.mulf %37, %41 : vector<2x16x128xf32>
    %c0_29 = arith.constant 0 : index
    %c0_30 = arith.constant 0 : index
    %c0_31 = arith.constant 0 : index
    %43 = vector.load %arg8[%c0_29, %c0_30, %c0_31] : memref<1x1x128xf32, #tpu.memory_space<vmem>>, vector<1x1x128xf32>
    %44 = vector.shape_cast %43 : vector<1x1x128xf32> to vector<1x128xf32>
    %45 = vector.shape_cast %44 : vector<1x128xf32> to vector<1x1x128xf32>
    %46 = vector.broadcast %45 : vector<1x1x128xf32> to vector<2x16x128xf32>
    %47 = arith.addf %42, %46 : vector<2x16x128xf32>
    %cst_32 = arith.constant 0.000000e+00 : f32
    %48 = vector.broadcast %cst_32 : f32 to vector<2x16x128xf32>
    %49 = arith.cmpf ogt, %47, %48 : vector<2x16x128xf32>
    %50 = vector.broadcast %7 : f32 to vector<2x16x128xf32>
    %51 = arith.mulf %50, %47 : vector<2x16x128xf32>
    %52 = arith.select %49, %47, %51 : vector<2x16x128xi1>, vector<2x16x128xf32>
    %53 = vector.shape_cast %52 : vector<2x16x128xf32> to vector<32x128xf32>
    %c0_33 = arith.constant 0 : index
    %c0_34 = arith.constant 0 : index
    %c0_35 = arith.constant 0 : index
    %54 = vector.load %arg9[%c0_33, %c0_34, %c0_35] : memref<1x128x1xf32, #tpu.memory_space<vmem>>, vector<1x128x1xf32>
    %55 = vector.shape_cast %54 : vector<1x128x1xf32> to vector<128x1xf32>
    %cst_36 = arith.constant dense<0.000000e+00> : vector<32x1xf32>
    %56 = tpu.matmul %53, %55, %cst_36 {dimension_numbers = #tpu.dot_dimension_numbers<[1], [0], [0], [1], [0, 0, 1, 1], [], []>} : vector<32x128xf32>, vector<128x1xf32>, vector<32x1xf32> -> vector<32x1xf32>
    %57 = math.tanh %56 : vector<32x1xf32>
    %58 = vector.shape_cast %57 : vector<32x1xf32> to vector<2x16x1xf32>
    %59 = arith.index_cast %arg0 : i32 to index
    %60 = memref.load %arg1[%59] : memref<10xi32, #tpu.memory_space<smem>>
    %61 = arith.sitofp %60 : i32 to f32
    %cst_37 = arith.constant 0.000000e+00 : f32
    %62 = vector.broadcast %cst_37 : f32 to vector<2x16x1xf32>
    %63 = arith.cmpf ogt, %5, %62 : vector<2x16x1xf32>
    %cst_38 = arith.constant -1.000000e+30 : f32
    %64 = vector.broadcast %cst_38 : f32 to vector<2x16x1xf32>
    %65 = arith.select %63, %58, %64 : vector<2x16x1xi1>, vector<2x16x1xf32>
    %66 = tpu.transpose %65, [0, 2, 1] : vector<2x16x1xf32> -> vector<2x1x16xf32>
    %67 = tpu.iota {dimensions = array<i32: 1>} : vector<2x16x16xi32>
    %68 = tpu.iota {dimensions = array<i32: 2>} : vector<2x16x16xi32>
    %69 = vector.broadcast %66 : vector<2x1x16xf32> to vector<2x16x16xf32>
    %70 = vector.broadcast %65 : vector<2x16x1xf32> to vector<2x16x16xf32>
    %71 = arith.cmpf ogt, %69, %70 : vector<2x16x16xf32>
    %72 = vector.broadcast %66 : vector<2x1x16xf32> to vector<2x16x16xf32>
    %73 = vector.broadcast %65 : vector<2x16x1xf32> to vector<2x16x16xf32>
    %74 = arith.cmpf oeq, %72, %73 : vector<2x16x16xf32>
    %75 = arith.cmpi slt, %68, %67 : vector<2x16x16xi32>
    %76 = arith.andi %74, %75 : vector<2x16x16xi1>
    %77 = arith.ori %71, %76 : vector<2x16x16xi1>
    %78 = arith.extui %77 : vector<2x16x16xi1> to vector<2x16x16xi32>
    %79 = arith.sitofp %78 : vector<2x16x16xi32> to vector<2x16x16xf32>
    %cst_39 = arith.constant dense<0.000000e+00> : vector<2x16xf32>
    %80 = vector.multi_reduction <add>, %79, %cst_39 [2] : vector<2x16x16xf32> to vector<2x16xf32>
    %81 = vector.shape_cast %80 : vector<2x16xf32> to vector<2x16x1xf32>
    %82 = vector.broadcast %61 : f32 to vector<2x16x1xf32>
    %83 = arith.cmpf olt, %81, %82 : vector<2x16x1xf32>
    %cst_40 = arith.constant 0.000000e+00 : f32
    %84 = vector.broadcast %cst_40 : f32 to vector<2x16x1xf32>
    %85 = arith.cmpf ogt, %5, %84 : vector<2x16x1xf32>
    %86 = arith.andi %83, %85 : vector<2x16x1xi1>
    %cst_41 = arith.constant 1.000000e+00 : f32
    %cst_42 = arith.constant 0.000000e+00 : f32
    %87 = vector.broadcast %cst_41 : f32 to vector<2x16x1xf32>
    %88 = vector.broadcast %cst_42 : f32 to vector<2x16x1xf32>
    %89 = arith.select %86, %87, %88 : vector<2x16x1xi1>, vector<2x16x1xf32>
    %90 = vector.broadcast %58 : vector<2x16x1xf32> to vector<2x16x128xf32>
    %91 = arith.mulf %52, %90 : vector<2x16x128xf32>
    %92 = vector.broadcast %89 : vector<2x16x1xf32> to vector<2x16x128xf32>
    %93 = arith.mulf %91, %92 : vector<2x16x128xf32>
    %cst_43 = arith.constant 0.000000e+00 : f32
    %94 = vector.broadcast %cst_43 : f32 to vector<2x16x1xf32>
    %95 = arith.cmpf ogt, %89, %94 : vector<2x16x1xf32>
    %cst_44 = arith.constant -1.000000e+30 : f32
    %96 = vector.shape_cast %95 : vector<2x16x1xi1> to vector<2x16x1xi1>
    %97 = vector.broadcast %96 : vector<2x16x1xi1> to vector<2x16x128xi1>
    %98 = vector.broadcast %cst_44 : f32 to vector<2x16x128xf32>
    %99 = arith.select %97, %93, %98 : vector<2x16x128xi1>, vector<2x16x128xf32>
    %cst_45 = arith.constant dense<0xFF800000> : vector<2x128xf32>
    %100 = vector.multi_reduction <maximumf>, %99, %cst_45 [1] : vector<2x16x128xf32> to vector<2x128xf32>
    %cst_46 = arith.constant dense<0.000000e+00> : vector<2x128xf32>
    %101 = vector.multi_reduction <add>, %93, %cst_46 [1] : vector<2x16x128xf32> to vector<2x128xf32>
    %102 = vector.broadcast %61 : f32 to vector<2x128xf32>
    %103 = arith.divf %101, %102 : vector<2x128xf32>
    %104 = tpu.concatenate %100, %103 in 1 : vector<2x128xf32>, vector<2x128xf32> -> vector<2x256xf32>
    %c0_47 = arith.constant 0 : index
    %c0_48 = arith.constant 0 : index
    %105 = vector.load %arg19[%c0_47, %c0_48] : memref<2x1280xf32, #tpu.memory_space<vmem>>, vector<2x1280xf32>
    %106 = arith.truncf %104 : vector<2x256xf32> to vector<2x256xbf16>
    %c0_49 = arith.constant 0 : index
    %c0_50 = arith.constant 0 : index
    %c0_51 = arith.constant 0 : index
    %107 = vector.load %arg11[%c0_49, %c0_50, %c0_51] : memref<1x256x1280xbf16, #tpu.memory_space<vmem>>, vector<1x256x1280xbf16>
    %108 = vector.shape_cast %107 : vector<1x256x1280xbf16> to vector<256x1280xbf16>
    %cst_52 = arith.constant dense<0.000000e+00> : vector<2x1280xf32>
    %109 = tpu.matmul %106, %108, %cst_52 {dimension_numbers = #tpu.dot_dimension_numbers<[1], [0], [0], [1], [0, 0, 1, 1], [], []>} : vector<2x256xbf16>, vector<256x1280xbf16>, vector<2x1280xf32> -> vector<2x1280xf32>
    %110 = arith.addf %105, %109 : vector<2x1280xf32>
    %c0_53 = arith.constant 0 : index
    %c0_54 = arith.constant 0 : index
    %111 = vector.load %arg19[%c0_53, %c0_54] : memref<2x1280xf32, #tpu.memory_space<vmem>>, vector<2x1280xf32>
    tpu.vector_store %arg19[%c0_53, %c0_54], %110 {strides = array<i32>} : memref<2x1280xf32, #tpu.memory_space<vmem>>, vector<2x1280xf32>,
    %c0_55 = arith.constant 0 : index
    %c0_56 = arith.constant 0 : index
    %c0_57 = arith.constant 0 : index
    %112 = vector.load %arg16[%c0_55, %c0_56, %c0_57] : memref<2x16x128xf32, #tpu.memory_space<vmem>>, vector<2x16x128xf32>
    tpu.vector_store %arg16[%c0_55, %c0_56, %c0_57], %93 {strides = array<i32>} : memref<2x16x128xf32, #tpu.memory_space<vmem>>, vector<2x16x128xf32>,
    %113 = vector.broadcast %89 : vector<2x16x1xf32> to vector<2x16x16xf32>
    %114 = arith.mulf %4, %113 : vector<2x16x16xf32>
    %115 = tpu.transpose %89, [0, 2, 1] : vector<2x16x1xf32> -> vector<2x1x16xf32>
    %116 = vector.broadcast %115 : vector<2x1x16xf32> to vector<2x16x16xf32>
    %117 = arith.mulf %114, %116 : vector<2x16x16xf32>
    %c0_58 = arith.constant 0 : index
    %c0_59 = arith.constant 0 : index
    %c0_60 = arith.constant 0 : index
    %118 = vector.load %arg17[%c0_58, %c0_59, %c0_60] : memref<2x16x16xf32, #tpu.memory_space<vmem>>, vector<2x16x16xf32>
    tpu.vector_store %arg17[%c0_58, %c0_59, %c0_60], %117 {strides = array<i32>} : memref<2x16x16xf32, #tpu.memory_space<vmem>>, vector<2x16x16xf32>,
    %c0_61 = arith.constant 0 : index
    %c0_62 = arith.constant 0 : index
    %c0_63 = arith.constant 0 : index
    %119 = vector.load %arg18[%c0_61, %c0_62, %c0_63] : memref<2x16x1xf32, #tpu.memory_space<vmem>>, vector<2x16x1xf32>
    tpu.vector_store %arg18[%c0_61, %c0_62, %c0_63], %89 {strides = array<i32>} : memref<2x16x1xf32, #tpu.memory_space<vmem>>, vector<2x16x1xf32>,
    %c9_i32 = arith.constant 9 : i32
    %120 = arith.cmpi eq, %arg0, %c9_i32 : i32
    %121 = arith.extui %120 : i1 to i32
    %c0_i32_64 = arith.constant 0 : i32
    %122 = arith.cmpi ne, %121, %c0_i32_64 : i32
    scf.if %122 {
      %c0_65 = arith.constant 0 : index
      %c0_66 = arith.constant 0 : index
      %123 = vector.load %arg12[%c0_65, %c0_66] : memref<1x1280xf32, #tpu.memory_space<vmem>>, vector<1x1280xf32>
      %124 = vector.broadcast %123 : vector<1x1280xf32> to vector<2x1280xf32>
      %125 = arith.addf %110, %124 : vector<2x1280xf32>
      %cst_67 = arith.constant 0.000000e+00 : f32
      %126 = vector.broadcast %cst_67 : f32 to vector<2x1280xf32>
      %127 = arith.cmpf ogt, %125, %126 : vector<2x1280xf32>
      %128 = vector.broadcast %7 : f32 to vector<2x1280xf32>
      %129 = arith.mulf %128, %125 : vector<2x1280xf32>
      %130 = arith.select %127, %125, %129 : vector<2x1280xi1>, vector<2x1280xf32>
      %131 = arith.truncf %130 : vector<2x1280xf32> to vector<2x1280xbf16>
      %c0_68 = arith.constant 0 : index
      %c0_69 = arith.constant 0 : index
      %132 = vector.load %arg13[%c0_68, %c0_69] : memref<1280x8xbf16, #tpu.memory_space<vmem>>, vector<1280x8xbf16>
      %cst_70 = arith.constant dense<0.000000e+00> : vector<2x8xf32>
      %133 = tpu.matmul %131, %132, %cst_70 {dimension_numbers = #tpu.dot_dimension_numbers<[1], [0], [0], [1], [0, 0, 1, 1], [], []>} : vector<2x1280xbf16>, vector<1280x8xbf16>, vector<2x8xf32> -> vector<2x8xf32>
      %c0_71 = arith.constant 0 : index
      %c0_72 = arith.constant 0 : index
      %134 = vector.load %arg14[%c0_71, %c0_72] : memref<1x8xf32, #tpu.memory_space<vmem>>, vector<1x8xf32>
      %135 = vector.broadcast %134 : vector<1x8xf32> to vector<2x8xf32>
      %136 = arith.addf %133, %135 : vector<2x8xf32>
      %cst_73 = arith.constant 0.000000e+00 : f32
      %137 = vector.broadcast %cst_73 : f32 to vector<2x8xf32>
      %138 = arith.cmpf ogt, %136, %137 : vector<2x8xf32>
      %139 = vector.broadcast %7 : f32 to vector<2x8xf32>
      %140 = arith.mulf %139, %136 : vector<2x8xf32>
      %141 = arith.select %138, %136, %140 : vector<2x8xi1>, vector<2x8xf32>
      %cst_74 = arith.constant dense<0x7F800000> : vector<2xf32>
      %142 = vector.multi_reduction <minimumf>, %141, %cst_74 [1] : vector<2x8xf32> to vector<2xf32>
      %143 = vector.shape_cast %142 : vector<2xf32> to vector<2x1xf32>
      %144 = vector.broadcast %143 : vector<2x1xf32> to vector<2x8xf32>
      %145 = arith.subf %141, %144 : vector<2x8xf32>
      %cst_75 = arith.constant dense<0xFF800000> : vector<2xf32>
      %146 = vector.multi_reduction <maximumf>, %145, %cst_75 [1] : vector<2x8xf32> to vector<2xf32>
      %147 = vector.shape_cast %146 : vector<2xf32> to vector<2x1xf32>
      %148 = vector.broadcast %147 : vector<2x1xf32> to vector<2x8xf32>
      %149 = arith.divf %145, %148 : vector<2x8xf32>
      %cst_76 = arith.constant dense<0.000000e+00> : vector<2xf32>
      %150 = vector.multi_reduction <add>, %149, %cst_76 [1] : vector<2x8xf32> to vector<2xf32>
      %151 = vector.shape_cast %150 : vector<2xf32> to vector<2x1xf32>
      %152 = vector.broadcast %151 : vector<2x1xf32> to vector<2x8xf32>
      %153 = arith.divf %149, %152 : vector<2x8xf32>
      %c0_77 = arith.constant 0 : index
      %c0_78 = arith.constant 0 : index
      %154 = vector.load %arg15[%c0_77, %c0_78] : memref<2x8xf32, #tpu.memory_space<vmem>>, vector<2x8xf32>
      tpu.vector_store %arg15[%c0_77, %c0_78], %153 {strides = array<i32>} : memref<2x8xf32, #tpu.memory_space<vmem>>, vector<2x8xf32>,
    } else {
    }
    return
  }
  func.func @transform_0(%arg0: i32, %arg1: memref<10xi32, #tpu.memory_space<smem>>) -> (i32, i32, i32) {
    %c0_i32 = arith.constant 0 : i32
    %c0_i32_0 = arith.constant 0 : i32
    %c0_i32_1 = arith.constant 0 : i32
    %c0_i32_2 = arith.constant 0 : i32
    return %c0_i32, %c0_i32_0, %c0_i32_1 : i32, i32, i32
  }
  func.func @transform_1(%arg0: i32, %arg1: memref<10xi32, #tpu.memory_space<smem>>) -> (i32, i32, i32) {
    %c0_i32 = arith.constant 0 : i32
    %c0_i32_0 = arith.constant 0 : i32
    %c0_i32_1 = arith.constant 0 : i32
    %c0_i32_2 = arith.constant 0 : i32
    return %c0_i32, %c0_i32_0, %c0_i32_1 : i32, i32, i32
  }
  func.func @transform_2(%arg0: i32, %arg1: memref<10xi32, #tpu.memory_space<smem>>) -> (i32, i32, i32) {
    %c0_i32 = arith.constant 0 : i32
    %c0_i32_0 = arith.constant 0 : i32
    %c0_i32_1 = arith.constant 0 : i32
    return %arg0, %c0_i32, %c0_i32_0 : i32, i32, i32
  }
  func.func @transform_3(%arg0: i32, %arg1: memref<10xi32, #tpu.memory_space<smem>>) -> (i32, i32, i32) {
    %c0_i32 = arith.constant 0 : i32
    %c0_i32_0 = arith.constant 0 : i32
    %c0_i32_1 = arith.constant 0 : i32
    return %arg0, %c0_i32, %c0_i32_0 : i32, i32, i32
  }
  func.func @transform_4(%arg0: i32, %arg1: memref<10xi32, #tpu.memory_space<smem>>) -> (i32, i32, i32) {
    %c0_i32 = arith.constant 0 : i32
    %c0_i32_0 = arith.constant 0 : i32
    %c0_i32_1 = arith.constant 0 : i32
    return %arg0, %c0_i32, %c0_i32_0 : i32, i32, i32
  }
  func.func @transform_5(%arg0: i32, %arg1: memref<10xi32, #tpu.memory_space<smem>>) -> (i32, i32, i32) {
    %c0_i32 = arith.constant 0 : i32
    %c0_i32_0 = arith.constant 0 : i32
    %c0_i32_1 = arith.constant 0 : i32
    return %arg0, %c0_i32, %c0_i32_0 : i32, i32, i32
  }
  func.func @transform_6(%arg0: i32, %arg1: memref<10xi32, #tpu.memory_space<smem>>) -> (i32, i32, i32) {
    %c0_i32 = arith.constant 0 : i32
    %c0_i32_0 = arith.constant 0 : i32
    %c0_i32_1 = arith.constant 0 : i32
    return %arg0, %c0_i32, %c0_i32_0 : i32, i32, i32
  }
  func.func @transform_7(%arg0: i32, %arg1: memref<10xi32, #tpu.memory_space<smem>>) -> (i32, i32, i32) {
    %c0_i32 = arith.constant 0 : i32
    %c0_i32_0 = arith.constant 0 : i32
    %c0_i32_1 = arith.constant 0 : i32
    return %arg0, %c0_i32, %c0_i32_0 : i32, i32, i32
  }
  func.func @transform_8(%arg0: i32, %arg1: memref<10xi32, #tpu.memory_space<smem>>) -> (i32, i32) {
    %c0_i32 = arith.constant 0 : i32
    %c0_i32_0 = arith.constant 0 : i32
    %c0_i32_1 = arith.constant 0 : i32
    return %c0_i32, %c0_i32_0 : i32, i32
  }
  func.func @transform_9(%arg0: i32, %arg1: memref<10xi32, #tpu.memory_space<smem>>) -> (i32, i32, i32) {
    %c0_i32 = arith.constant 0 : i32
    %c0_i32_0 = arith.constant 0 : i32
    %c0_i32_1 = arith.constant 0 : i32
    return %arg0, %c0_i32, %c0_i32_0 : i32, i32, i32
  }
  func.func @transform_10(%arg0: i32, %arg1: memref<10xi32, #tpu.memory_space<smem>>) -> (i32, i32) {
    %c0_i32 = arith.constant 0 : i32
    %c0_i32_0 = arith.constant 0 : i32
    %c0_i32_1 = arith.constant 0 : i32
    return %c0_i32, %c0_i32_0 : i32, i32
  }
  func.func @transform_11(%arg0: i32, %arg1: memref<10xi32, #tpu.memory_space<smem>>) -> (i32, i32) {
    %c0_i32 = arith.constant 0 : i32
    %c0_i32_0 = arith.constant 0 : i32
    %c0_i32_1 = arith.constant 0 : i32
    return %c0_i32, %c0_i32_0 : i32, i32
  }
  func.func @transform_12(%arg0: i32, %arg1: memref<10xi32, #tpu.memory_space<smem>>) -> (i32, i32) {
    %c0_i32 = arith.constant 0 : i32
    %c0_i32_0 = arith.constant 0 : i32
    %c0_i32_1 = arith.constant 0 : i32
    return %c0_i32, %c0_i32_0 : i32, i32
  }
  func.func @transform_13(%arg0: i32, %arg1: memref<10xi32, #tpu.memory_space<smem>>) -> (i32, i32) {
    %c0_i32 = arith.constant 0 : i32
    %c0_i32_0 = arith.constant 0 : i32
    %c0_i32_1 = arith.constant 0 : i32
    return %c0_i32, %c0_i32_0 : i32, i32
  }
}

</mosaic_0001>

<llo_original>
// kernel: net_forward.1
$region0: #{net_forward.1}
  #allocation0 [shape = 'u32[]', space=smem, size = 0x4, offset = 0x4, fixed_abs, tag = 'smem constant byte address 0x4 - core index']
  #allocation1 [shape = 'u32[144,128]{1,0:T(1,128)}', space=vmem, size = 0x12000, scoped, tag = 'internal scratch']
  #allocation2 [shape = 'f32[2,16,128]{2,1,0:T(8,128)}', space=vmem, size = 0x4000, scoped, tag = 'scratch operand']
  #allocation3 [shape = 'f32[2,16,16]{2,1,0:T(8,128)}', space=vmem, size = 0x4000, scoped, tag = 'scratch operand']
  #allocation4 [shape = 'f32[2,16,1]{2,1,0:T(8,128)}', space=vmem, size = 0x4000, scoped, tag = 'scratch operand']
  #allocation5 [shape = 'f32[2,1280]{1,0:T(2,128)}', space=vmem, size = 0x2800, scoped, tag = 'scratch operand']
  #allocation6 [shape = 's32[1]{0}', space=sflag, size = 0x4, scoped, tag = 'scoped memory for net_forward.1']
  #allocation7 [shape = 'u8[512]{0}', space=smem, size = 0x200, scoped, tag = 'prefetched SMEM operand 0']
  #allocation8 [shape = 'f32[1,1]{1,0:T(1,128)S(1)}', space=vmem, size = 0x200, scoped, tag = 'scoped memory for net_forward.1']
  %s0 = inlined_call_operand.hbm [shape: s32[10], index: 0, kind: input, shape index: {}]
  %s1 = inlined_call_operand.vmem [shape: f32[2,16,128], index: 1, kind: input, shape index: {}]
  %s2 = inlined_call_operand.hbm [shape: f32[2,16,16], index: 2, kind: input, shape index: {}]
  %s3 = inlined_call_operand.hbm [shape: f32[10,128,128], index: 3, kind: input, shape index: {}]
  %s4 = inlined_call_operand.hbm [shape: f32[10,128,128], index: 4, kind: input, shape index: {}]
  %s5 = inlined_call_operand.hbm [shape: f32[10,1,128], index: 5, kind: input, shape index: {}]
  %s6 = inlined_call_operand.hbm [shape: f32[10,1,128], index: 6, kind: input, shape index: {}]
  %s7 = inlined_call_operand.hbm [shape: f32[10,1,128], index: 7, kind: input, shape index: {}]
  %s8 = inlined_call_operand.vmem [shape: f32[10,128,1], index: 8, kind: input, shape index: {}]
  %s9 = inlined_call_operand.<no memory space> [shape: f32[1,1], index: 9, kind: input, shape index: {}]
  %s10 = inlined_call_operand.hbm [shape: bf16[10,256,1280], index: 10, kind: input, shape index: {}]
  %s11 = inlined_call_operand.hbm [shape: f32[1,1280], index: 11, kind: input, shape index: {}]
  %s12 = inlined_call_operand.vmem [shape: bf16[1280,8], index: 12, kind: input, shape index: {}]
  %s13 = inlined_call_operand.hbm [shape: f32[1,8], index: 13, kind: input, shape index: {}]
  %s14 = inlined_call_operand.hbm [shape: f32[2,8], index: 14, kind: output, shape index: {}]
  %s15 = sld [smem:[#allocation0]]
  $region129: #{net_forward.1} parent=0
    _
  %s17 = ssub.s32 1, %s15
  %s18 = scalar_select 0, %s17, %s15
  %20 = dma.hbm_to_smem %s0, 16, [#allocation7], [#allocation6]
  %v21 = vstv %s9
  %22 = vst [vmem:[#allocation8] sm:$0x1] %v21
  %23 = dma.done [#allocation6], 16
  %24 = sfence
  $region1: #{net_forward.1} parent=0
    #allocation9 [shape = 'u8[16384]{0}', space=vmem, size = 0x4000, scoped, tag = 'input window, operand 2, single buffered']
    #allocation10 [shape = 's32[2]{0}', space=sflag, size = 0x8, scoped, tag = 'scoped memory for net_forward.1']
    #allocation11 [shape = 's32[2]{0}', space=sflag, size = 0x8, scoped, tag = 'scoped memory for net_forward.1']
    #allocation12 [shape = 'u8[131072]{0}', space=vmem, size = 0x20000, scoped, tag = 'input window, operand 3']
    #allocation13 [shape = 's32[2]{0}', space=sflag, size = 0x8, scoped, tag = 'scoped memory for net_forward.1']
    #allocation14 [shape = 'u8[131072]{0}', space=vmem, size = 0x20000, scoped, tag = 'input window, operand 4']
    #allocation15 [shape = 'u8[1024]{0}', space=vmem, size = 0x400, scoped, tag = 'input window, operand 5']
    #allocation16 [shape = 's32[2]{0}', space=sflag, size = 0x8, scoped, tag = 'scoped memory for net_forward.1']
    #allocation17 [shape = 'u8[1024]{0}', space=vmem, size = 0x400, scoped, tag = 'input window, operand 6']
    #allocation18 [shape = 'u8[1024]{0}', space=vmem, size = 0x400, scoped, tag = 'input window, operand 7']
    #allocation19 [shape = 's32[2]{0}', space=sflag, size = 0x8, scoped, tag = 'scoped memory for net_forward.1']
    #allocation20 [shape = 'u8[1310720]{0}', space=vmem, size = 0x140000, scoped, tag = 'input window, operand 10']
    #allocation21 [shape = 'u8[5120]{0}', space=vmem, size = 0x1400, scoped, tag = 'input window, operand 11, single buffered']
    #allocation22 [shape = 's32[1]{0}', space=sflag, size = 0x4, scoped, tag = 'scoped memory for net_forward.1']
    #allocation23 [shape = 'u8[512]{0}', space=vmem, size = 0x400, scoped, tag = 'input window, operand 13, single buffered']
    #allocation24 [shape = 'u8[1024]{0}', space=vmem, size = 0x400, scoped, tag = 'output window, operand 0, single buffered']
    %25 = vsyncpa [#allocation10], 0
    %26 = vsyncpa [#allocation13], 0
    %s27 = scalar_lea.sflag [#allocation13], 1
    %28 = vsyncpa %s27, 0
    %29 = vsyncpa [#allocation16], 0
    %s30 = scalar_lea.sflag [#allocation16], 1
    %31 = vsyncpa %s30, 0
    %32 = vsyncpa [#allocation19], 0
    %s33 = scalar_lea.sflag [#allocation19], 1
    %34 = vsyncpa %s33, 0
    %35 = vsyncpa [#allocation22], 0
    %36 = vsyncpa [#allocation11], 0
    loop: start=0, step=1, limit=12
    $region2: #{net_forward.1} parent=1 // loop_pre_header
      _
    $region3: #{net_forward.1} parent=1 // loop_header
      %s38 = sphi 0, %s42
      %p39 = scmp.ge.s32.totalorder %s38, 12
      %s46 = sphi 0, %s46
      %s48 = sphi 0, %s46
      %s49 = sphi 0, %s48
      %s63 = sphi 0, %s49
      %s67 = sphi 0, %s67
      %s69 = sphi 0, %s67
      %s70 = sphi 0, %s69
      %s84 = sphi 0, %s70
      %s90 = sphi 0, %s92
      %s93 = sphi 0, %s90
      %s94 = sphi 0, %s93
      %s110 = sphi 0, %s94
      %s116 = sphi 0, %s118
      %s119 = sphi 0, %s116
      %s120 = sphi 0, %s119
      %s136 = sphi 0, %s120
      %s142 = sphi 0, %s144
      %s145 = sphi 0, %s142
      %s146 = sphi 0, %s145
      %s162 = sphi 0, %s146
      %s168 = sphi 0, %s170
      %s171 = sphi 0, %s168
      %s172 = sphi 0, %s171
      %s188 = sphi 0, %s172
      %s194 = sphi 0, %s196
      %s197 = sphi 0, %s194
      %s198 = sphi 0, %s197
      %s214 = sphi 0, %s198
      %s220 = sphi 0, %s222
      %s223 = sphi 0, %s220
      %s224 = sphi 0, %s223
      %s240 = sphi 0, %s224
      %s244 = sphi 0, %s244
      %s246 = sphi 0, %s244
      %s247 = sphi 0, %s246
      %s261 = sphi 0, %s247
      %s267 = sphi 0, %s269
      %s270 = sphi 0, %s267
      %s271 = sphi 0, %s270
      %s287 = sphi 0, %s271
      %s291 = sphi 0, %s291
      %s293 = sphi 0, %s291
      %s294 = sphi 0, %s293
      %s308 = sphi 0, %s294
      %s312 = sphi 0, %s312
      %s314 = sphi 0, %s312
      %s315 = sphi 0, %s314
      %s329 = sphi 0, %s315
      %s333 = sphi 0, %s333
      %s335 = sphi 0, %s333
      %s336 = sphi 0, %s335
      %s350 = sphi 0, %s336
      %s354 = sphi 0, %s354
      %s356 = sphi 0, %s354
      %s357 = sphi 0, %s356
      %s371 = sphi 0, %s357
    $region4: #{net_forward.1} parent=1 // loop_header_branch
      %41 = sbr.rel (%p39) target = $region8
    $region5: #{net_forward.1} parent=1 // loop_body
      %s43 = ssub.s32 %s38, 1
      %s44 = ssub.s32 %s38, 2
      %s45 = sadd.s32 %s38, 1
      %s47 = sadd.s32 %s46, 1
      %p50 = scmp.eq.s32.totalorder %s38, 9
      %p51 = scmp.ne.s32.totalorder %s46, %s48
      %p52 = scmp.eq.s32.totalorder %s38, 0
      %p53 = por %p51, %p52
      %p54 = scmp.ne.s32.totalorder %s46, %s48
      %p55 = scmp.eq.s32.totalorder %s43, 9
      %p56 = por %p54, %p55
      %p57 = scmp.ne.s32.totalorder %s48, %s49
      %p58 = scmp.eq.s32.totalorder %s43, 0
      %p59 = por %p57, %p58
      %p60 = scmp.ne.s32.totalorder %s48, %s49
      %p61 = scmp.eq.s32.totalorder %s44, 9
      %p62 = por %p60, %p61
      %p64 = scmp.ne.s32.totalorder %s49, %s63
      %p65 = scmp.eq.s32.totalorder %s44, 0
      %p66 = por %p64, %p65
      %s68 = sadd.s32 %s67, 1
      %p71 = scmp.eq.s32.totalorder %s38, 9
      %p72 = scmp.ne.s32.totalorder %s67, %s69
      %p73 = scmp.eq.s32.totalorder %s38, 0
      %p74 = por %p72, %p73
      %p75 = scmp.ne.s32.totalorder %s67, %s69
      %p76 = scmp.eq.s32.totalorder %s43, 9
      %p77 = por %p75, %p76
      %p78 = scmp.ne.s32.totalorder %s69, %s70
      %p79 = scmp.eq.s32.totalorder %s43, 0
      %p80 = por %p78, %p79
      %p81 = scmp.ne.s32.totalorder %s69, %s70
      %p82 = scmp.eq.s32.totalorder %s44, 9
      %p83 = por %p81, %p82
      %p85 = scmp.ne.s32.totalorder %s70, %s84
      %p86 = scmp.eq.s32.totalorder %s44, 0
      %p87 = por %p85, %p86
      %s88 = ssub.s32 %s38, %s45
      %p89 = scmp.eq.s32.totalorder %s88, 0
      %s91 = sadd.s32 %s90, 1
      %s92 = scalar_select %p89, %s90, %s91
      %p95 = pneg %p89
      %p96 = scmp.eq.s32.totalorder %s38, 9
      %p97 = por %p95, %p96
      %p98 = scmp.ne.s32.totalorder %s90, %s93
      %p99 = scmp.eq.s32.totalorder %s38, 0
      %p100 = por %p98, %p99
      %p101 = scmp.ne.s32.totalorder %s90, %s93
      %p102 = scmp.eq.s32.totalorder %s43, 9
      %p103 = por %p101, %p102
      %p104 = scmp.ne.s32.totalorder %s93, %s94
      %p105 = scmp.eq.s32.totalorder %s43, 0
      %p106 = por %p104, %p105
      %p107 = scmp.ne.s32.totalorder %s93, %s94
      %p108 = scmp.eq.s32.totalorder %s44, 9
      %p109 = por %p107, %p108
      %p111 = scmp.ne.s32.totalorder %s94, %s110
      %p112 = scmp.eq.s32.totalorder %s44, 0
      %p113 = por %p111, %p112
      %s114 = ssub.s32 %s38, %s45
      %p115 = scmp.eq.s32.totalorder %s114, 0
      %s117 = sadd.s32 %s116, 1
      %s118 = scalar_select %p115, %s116, %s117
      %p121 = pneg %p115
      %p122 = scmp.eq.s32.totalorder %s38, 9
      %p123 = por %p121, %p122
      %p124 = scmp.ne.s32.totalorder %s116, %s119
      %p125 = scmp.eq.s32.totalorder %s38, 0
      %p126 = por %p124, %p125
      %p127 = scmp.ne.s32.totalorder %s116, %s119
      %p128 = scmp.eq.s32.totalorder %s43, 9
      %p129 = por %p127, %p128
      %p130 = scmp.ne.s32.totalorder %s119, %s120
      %p131 = scmp.eq.s32.totalorder %s43, 0
      %p132 = por %p130, %p131
      %p133 = scmp.ne.s32.totalorder %s119, %s120
      %p134 = scmp.eq.s32.totalorder %s44, 9
      %p135 = por %p133, %p134
      %p137 = scmp.ne.s32.totalorder %s120, %s136
      %p138 = scmp.eq.s32.totalorder %s44, 0
      %p139 = por %p137, %p138
      %s140 = ssub.s32 %s38, %s45
      %p141 = scmp.eq.s32.totalorder %s140, 0
      %s143 = sadd.s32 %s142, 1
      %s144 = scalar_select %p141, %s142, %s143
      %p147 = pneg %p141
      %p148 = scmp.eq.s32.totalorder %s38, 9
      %p149 = por %p147, %p148
      %p150 = scmp.ne.s32.totalorder %s142, %s145
      %p151 = scmp.eq.s32.totalorder %s38, 0
      %p152 = por %p150, %p151
      %p153 = scmp.ne.s32.totalorder %s142, %s145
      %p154 = scmp.eq.s32.totalorder %s43, 9
      %p155 = por %p153, %p154
      %p156 = scmp.ne.s32.totalorder %s145, %s146
      %p157 = scmp.eq.s32.totalorder %s43, 0
      %p158 = por %p156, %p157
      %p159 = scmp.ne.s32.totalorder %s145, %s146
      %p160 = scmp.eq.s32.totalorder %s44, 9
      %p161 = por %p159, %p160
      %p163 = scmp.ne.s32.totalorder %s146, %s162
      %p164 = scmp.eq.s32.totalorder %s44, 0
      %p165 = por %p163, %p164
      %s166 = ssub.s32 %s38, %s45
      %p167 = scmp.eq.s32.totalorder %s166, 0
      %s169 = sadd.s32 %s168, 1
      %s170 = scalar_select %p167, %s168, %s169
      %p173 = pneg %p167
      %p174 = scmp.eq.s32.totalorder %s38, 9
      %p175 = por %p173, %p174
      %p176 = scmp.ne.s32.totalorder %s168, %s171
      %p177 = scmp.eq.s32.totalorder %s38, 0
      %p178 = por %p176, %p177
      %p179 = scmp.ne.s32.totalorder %s168, %s171
      %p180 = scmp.eq.s32.totalorder %s43, 9
      %p181 = por %p179, %p180
      %p182 = scmp.ne.s32.totalorder %s171, %s172
      %p183 = scmp.eq.s32.totalorder %s43, 0
      %p184 = por %p182, %p183
      %p185 = scmp.ne.s32.totalorder %s171, %s172
      %p186 = scmp.eq.s32.totalorder %s44, 9
      %p187 = por %p185, %p186
      %p189 = scmp.ne.s32.totalorder %s172, %s188
      %p190 = scmp.eq.s32.totalorder %s44, 0
      %p191 = por %p189, %p190
      %s192 = ssub.s32 %s38, %s45
      %p193 = scmp.eq.s32.totalorder %s192, 0
      %s195 = sadd.s32 %s194, 1
      %s196 = scalar_select %p193, %s194, %s195
      %p199 = pneg %p193
      %p200 = scmp.eq.s32.totalorder %s38, 9
      %p201 = por %p199, %p200
      %p202 = scmp.ne.s32.totalorder %s194, %s197
      %p203 = scmp.eq.s32.totalorder %s38, 0
      %p204 = por %p202, %p203
      %p205 = scmp.ne.s32.totalorder %s194, %s197
      %p206 = scmp.eq.s32.totalorder %s43, 9
      %p207 = por %p205, %p206
      %p208 = scmp.ne.s32.totalorder %s197, %s198
      %p209 = scmp.eq.s32.totalorder %s43, 0
      %p210 = por %p208, %p209
      %p211 = scmp.ne.s32.totalorder %s197, %s198
      %p212 = scmp.eq.s32.totalorder %s44, 9
      %p213 = por %p211, %p212
      %p215 = scmp.ne.s32.totalorder %s198, %s214
      %p216 = scmp.eq.s32.totalorder %s44, 0
      %p217 = por %p215, %p216
      %s218 = ssub.s32 %s38, %s45
      %p219 = scmp.eq.s32.totalorder %s218, 0
      %s221 = sadd.s32 %s220, 1
      %s222 = scalar_select %p219, %s220, %s221
      %p225 = pneg %p219
      %p226 = scmp.eq.s32.totalorder %s38, 9
      %p227 = por %p225, %p226
      %p228 = scmp.ne.s32.totalorder %s220, %s223
      %p229 = scmp.eq.s32.totalorder %s38, 0
      %p230 = por %p228, %p229
      %p231 = scmp.ne.s32.totalorder %s220, %s223
      %p232 = scmp.eq.s32.totalorder %s43, 9
      %p233 = por %p231, %p232
      %p234 = scmp.ne.s32.totalorder %s223, %s224
      %p235 = scmp.eq.s32.totalorder %s43, 0
      %p236 = por %p234, %p235
      %p237 = scmp.ne.s32.totalorder %s223, %s224
      %p238 = scmp.eq.s32.totalorder %s44, 9
      %p239 = por %p237, %p238
      %p241 = scmp.ne.s32.totalorder %s224, %s240
      %p242 = scmp.eq.s32.totalorder %s44, 0
      %p243 = por %p241, %p242
      %s245 = sadd.s32 %s244, 1
      %p248 = scmp.eq.s32.totalorder %s38, 9
      %p249 = scmp.ne.s32.totalorder %s244, %s246
      %p250 = scmp.eq.s32.totalorder %s38, 0
      %p251 = por %p249, %p250
      %p252 = scmp.ne.s32.totalorder %s244, %s246
      %p253 = scmp.eq.s32.totalorder %s43, 9
      %p254 = por %p252, %p253
      %p255 = scmp.ne.s32.totalorder %s246, %s247
      %p256 = scmp.eq.s32.totalorder %s43, 0
      %p257 = por %p255, %p256
      %p258 = scmp.ne.s32.totalorder %s246, %s247
      %p259 = scmp.eq.s32.totalorder %s44, 9
      %p260 = por %p258, %p259
      %p262 = scmp.ne.s32.totalorder %s247, %s261
      %p263 = scmp.eq.s32.totalorder %s44, 0
      %p264 = por %p262, %p263
      %s265 = ssub.s32 %s38, %s45
      %p266 = scmp.eq.s32.totalorder %s265, 0
      %s268 = sadd.s32 %s267, 1
      %s269 = scalar_select %p266, %s267, %s268
      %p272 = pneg %p266
      %p273 = scmp.eq.s32.totalorder %s38, 9
      %p274 = por %p272, %p273
      %p275 = scmp.ne.s32.totalorder %s267, %s270
      %p276 = scmp.eq.s32.totalorder %s38, 0
      %p277 = por %p275, %p276
      %p278 = scmp.ne.s32.totalorder %s267, %s270
      %p279 = scmp.eq.s32.totalorder %s43, 9
      %p280 = por %p278, %p279
      %p281 = scmp.ne.s32.totalorder %s270, %s271
      %p282 = scmp.eq.s32.totalorder %s43, 0
      %p283 = por %p281, %p282
      %p284 = scmp.ne.s32.totalorder %s270, %s271
      %p285 = scmp.eq.s32.totalorder %s44, 9
      %p286 = por %p284, %p285
      %p288 = scmp.ne.s32.totalorder %s271, %s287
      %p289 = scmp.eq.s32.totalorder %s44, 0
      %p290 = por %p288, %p289
      %s292 = sadd.s32 %s291, 1
      %p295 = scmp.eq.s32.totalorder %s38, 9
      %p296 = scmp.ne.s32.totalorder %s291, %s293
      %p297 = scmp.eq.s32.totalorder %s38, 0
      %p298 = por %p296, %p297
      %p299 = scmp.ne.s32.totalorder %s291, %s293
      %p300 = scmp.eq.s32.totalorder %s43, 9
      %p301 = por %p299, %p300
      %p302 = scmp.ne.s32.totalorder %s293, %s294
      %p303 = scmp.eq.s32.totalorder %s43, 0
      %p304 = por %p302, %p303
      %p305 = scmp.ne.s32.totalorder %s293, %s294
      %p306 = scmp.eq.s32.totalorder %s44, 9
      %p307 = por %p305, %p306
      %p309 = scmp.ne.s32.totalorder %s294, %s308
      %p310 = scmp.eq.s32.totalorder %s44, 0
      %p311 = por %p309, %p310
      %s313 = sadd.s32 %s312, 1
      %p316 = scmp.eq.s32.totalorder %s38, 9
      %p317 = scmp.ne.s32.totalorder %s312, %s314
      %p318 = scmp.eq.s32.totalorder %s38, 0
      %p319 = por %p317, %p318
      %p320 = scmp.ne.s32.totalorder %s312, %s314
      %p321 = scmp.eq.s32.totalorder %s43, 9
      %p322 = por %p320, %p321
      %p323 = scmp.ne.s32.totalorder %s314, %s315
      %p324 = scmp.eq.s32.totalorder %s43, 0
      %p325 = por %p323, %p324
      %p326 = scmp.ne.s32.totalorder %s314, %s315
      %p327 = scmp.eq.s32.totalorder %s44, 9
      %p328 = por %p326, %p327
      %p330 = scmp.ne.s32.totalorder %s315, %s329
      %p331 = scmp.eq.s32.totalorder %s44, 0
      %p332 = por %p330, %p331
      %s334 = sadd.s32 %s333, 1
      %p337 = scmp.eq.s32.totalorder %s38, 9
      %p338 = scmp.ne.s32.totalorder %s333, %s335
      %p339 = scmp.eq.s32.totalorder %s38, 0
      %p340 = por %p338, %p339
      %p341 = scmp.ne.s32.totalorder %s333, %s335
      %p342 = scmp.eq.s32.totalorder %s43, 9
      %p343 = por %p341, %p342
      %p344 = scmp.ne.s32.totalorder %s335, %s336
      %p345 = scmp.eq.s32.totalorder %s43, 0
      %p346 = por %p344, %p345
      %p347 = scmp.ne.s32.totalorder %s335, %s336
      %p348 = scmp.eq.s32.totalorder %s44, 9
      %p349 = por %p347, %p348
      %p351 = scmp.ne.s32.totalorder %s336, %s350
      %p352 = scmp.eq.s32.totalorder %s44, 0
      %p353 = por %p351, %p352
      %s355 = sadd.s32 %s354, 1
      %p358 = scmp.eq.s32.totalorder %s38, 9
      %p359 = scmp.ne.s32.totalorder %s354, %s356
      %p360 = scmp.eq.s32.totalorder %s38, 0
      %p361 = por %p359, %p360
      %p362 = scmp.ne.s32.totalorder %s354, %s356
      %p363 = scmp.eq.s32.totalorder %s43, 9
      %p364 = por %p362, %p363
      %p365 = scmp.ne.s32.totalorder %s356, %s357
      %p366 = scmp.eq.s32.totalorder %s43, 0
      %p367 = por %p365, %p366
      %p368 = scmp.ne.s32.totalorder %s356, %s357
      %p369 = scmp.eq.s32.totalorder %s44, 9
      %p370 = por %p368, %p369
      %p372 = scmp.ne.s32.totalorder %s357, %s371
      %p373 = scmp.eq.s32.totalorder %s44, 0
      %p374 = por %p372, %p373
      %p375 = scmp.le.s32.totalorder 1, %s38
      %p376 = scmp.lt.s32.totalorder %s38, 11
      %p377 = pnand %p375, %p376
      %p378 = pneg %p377
      // Predicated region
      $region9: #{net_forward.1} parent=5 // pred_check
        _
      $region10: #{net_forward.1} parent=5 // pred_check_branch
        %380 = sbr.rel (%p377) target = $region12
      $region11: #{net_forward.1} parent=5 // pred_region
        %s381 = ssub.s32 %s38, 1
        // Predicated region
        $region13: #{net_forward.1} parent=11 // pred_check
          %p382 = pneg %p59
        $region14: #{net_forward.1} parent=11 // pred_check_branch
          %384 = sbr.rel (%p382) target = $region16
        $region15: #{net_forward.1} parent=11 // pred_region
          _
        $region16: #{net_forward.1} parent=11 // pred_fallthru
          _
        // Predicated region
        $region17: #{net_forward.1} parent=11 // pred_check
          %p385 = pneg %p80
        $region18: #{net_forward.1} parent=11 // pred_check_branch
          %387 = sbr.rel (%p385) target = $region20
        $region19: #{net_forward.1} parent=11 // pred_region
          %s389 = ssub.s32 512, 512
          %390 = vsyncadd [#allocation10], %s389
          %s391 = sshll.u32 [#allocation9], 4
          %s392 = int_to_ptr.vmem [resolvable:$true] %s391
          %397 = dma.hbm_to_vmem [thread:$0]  %s2, 512, %s392, [#allocation10], 128, 128, 8
        $region20: #{net_forward.1} parent=11 // pred_fallthru
          _
        // Predicated region
        $region21: #{net_forward.1} parent=11 // pred_check
          %p398 = pneg %p257
        $region22: #{net_forward.1} parent=11 // pred_check_branch
          %400 = sbr.rel (%p398) target = $region24
        $region23: #{net_forward.1} parent=11 // pred_region
          _
        $region24: #{net_forward.1} parent=11 // pred_fallthru
          _
        // Predicated region
        $region25: #{net_forward.1} parent=11 // pred_check
          %p401 = pneg %p304
        $region26: #{net_forward.1} parent=11 // pred_check_branch
          %403 = sbr.rel (%p401) target = $region28
        $region27: #{net_forward.1} parent=11 // pred_region
          %s405 = ssub.s32 160, 160
          %406 = vsyncadd [#allocation22], %s405
          %s408 = sshll.u32 [#allocation21], 4
          %s409 = int_to_ptr.vmem [resolvable:$true] %s408
          %411 = dma.hbm_to_vmem [thread:$0]  %s11, 160, %s409, [#allocation22]
        $region28: #{net_forward.1} parent=11 // pred_fallthru
          _
        // Predicated region
        $region29: #{net_forward.1} parent=11 // pred_check
          %p412 = pneg %p325
        $region30: #{net_forward.1} parent=11 // pred_check_branch
          %414 = sbr.rel (%p412) target = $region32
        $region31: #{net_forward.1} parent=11 // pred_region
          _
        $region32: #{net_forward.1} parent=11 // pred_fallthru
          _
        // Predicated region
        $region33: #{net_forward.1} parent=11 // pred_check
          %p415 = pneg %p346
        $region34: #{net_forward.1} parent=11 // pred_check_branch
          %417 = sbr.rel (%p415) target = $region36
        $region35: #{net_forward.1} parent=11 // pred_region
          %s419 = ssub.s32 16, 16
          %420 = vsyncadd [#allocation22], %s419
          %s422 = sshll.u32 [#allocation23], 4
          %s423 = int_to_ptr.vmem [resolvable:$true] %s422
          %425 = dma.hbm_to_vmem [thread:$0]  %s13, 16, %s423, [#allocation22]
        $region36: #{net_forward.1} parent=11 // pred_fallthru
          _
      $region12: #{net_forward.1} parent=5 // pred_fallthru
        _
      %p426 = scmp.lt.s32.totalorder %s38, 10
      // Predicated region
      $region37: #{net_forward.1} parent=5 // pred_check
        %p427 = pneg %p426
      $region38: #{net_forward.1} parent=5 // pred_check_branch
        %429 = sbr.rel (%p427) target = $region40
      $region39: #{net_forward.1} parent=5 // pred_region
        // Predicated region
        $region41: #{net_forward.1} parent=39 // pred_check
          %p430 = pneg %p100
        $region42: #{net_forward.1} parent=39 // pred_check_branch
          %432 = sbr.rel (%p430) target = $region44
        $region43: #{net_forward.1} parent=39 // pred_region
          %s433 = sand.u32 %s38, 1
          %s434 = scalar_lea.sflag [#allocation13], %s433
          %s435 = sand.u32 %s90, 1
          %s436 = smul.addr %s435, 128
          %s437 = scalar_lea.vmem [#allocation12], %s436
          %s439 = ssub.s32 2048, 2048
          %440 = vsyncadd %s434, %s439
          %s441 = smul.addr %s38, 16
          %s442 = smul.addr %s441, 128
          %s443 = scalar_lea.hbm %s3, %s442
          %s444 = sshll.u32 %s437, 4
          %s445 = int_to_ptr.vmem [resolvable:$true] %s444
          %450 = dma.hbm_to_vmem [thread:$0]  %s443, 2048, %s445, %s434, 128, 128, 8
        $region44: #{net_forward.1} parent=39 // pred_fallthru
          _
        // Predicated region
        $region45: #{net_forward.1} parent=39 // pred_check
          %p451 = pneg %p126
        $region46: #{net_forward.1} parent=39 // pred_check_branch
          %453 = sbr.rel (%p451) target = $region48
        $region47: #{net_forward.1} parent=39 // pred_region
          %s454 = sand.u32 %s38, 1
          %s455 = scalar_lea.sflag [#allocation13], %s454
          %s456 = sand.u32 %s116, 1
          %s457 = smul.addr %s456, 128
          %s458 = scalar_lea.vmem [#allocation14], %s457
          %s460 = ssub.s32 2048, 2048
          %461 = vsyncadd %s455, %s460
          %s462 = smul.addr %s38, 16
          %s463 = smul.addr %s462, 128
          %s464 = scalar_lea.hbm %s4, %s463
          %s465 = sshll.u32 %s458, 4
          %s466 = int_to_ptr.vmem [resolvable:$true] %s465
          %471 = dma.hbm_to_vmem [thread:$0]  %s464, 2048, %s466, %s455, 128, 128, 8
        $region48: #{net_forward.1} parent=39 // pred_fallthru
          _
        // Predicated region
        $region49: #{net_forward.1} parent=39 // pred_check
          %p472 = pneg %p152
        $region50: #{net_forward.1} parent=39 // pred_check_branch
          %474 = sbr.rel (%p472) target = $region52
        $region51: #{net_forward.1} parent=39 // pred_region
          %s475 = sand.u32 %s38, 1
          %s476 = scalar_lea.sflag [#allocation16], %s475
          %s477 = sand.u32 %s142, 1
          %s478 = scalar_lea.vmem [#allocation15], %s477
          %s480 = ssub.s32 16, 16
          %481 = vsyncadd %s476, %s480
          %s482 = smul.addr %s38, 16
          %s483 = scalar_lea.hbm %s5, %s482
          %s485 = sshll.u32 %s478, 4
          %s486 = int_to_ptr.vmem [resolvable:$true] %s485
          %488 = dma.hbm_to_vmem [thread:$0]  %s483, 16, %s486, %s476
        $region52: #{net_forward.1} parent=39 // pred_fallthru
          _
        // Predicated region
        $region53: #{net_forward.1} parent=39 // pred_check
          %p489 = pneg %p178
        $region54: #{net_forward.1} parent=39 // pred_check_branch
          %491 = sbr.rel (%p489) target = $region56
        $region55: #{net_forward.1} parent=39 // pred_region
          %s492 = sand.u32 %s38, 1
          %s493 = scalar_lea.sflag [#allocation16], %s492
          %s494 = sand.u32 %s168, 1
          %s495 = scalar_lea.vmem [#allocation17], %s494
          %s497 = ssub.s32 16, 16
          %498 = vsyncadd %s493, %s497
          %s499 = smul.addr %s38, 16
          %s500 = scalar_lea.hbm %s6, %s499
          %s502 = sshll.u32 %s495, 4
          %s503 = int_to_ptr.vmem [resolvable:$true] %s502
          %505 = dma.hbm_to_vmem [thread:$0]  %s500, 16, %s503, %s493
        $region56: #{net_forward.1} parent=39 // pred_fallthru
          _
        // Predicated region
        $region57: #{net_forward.1} parent=39 // pred_check
          %p506 = pneg %p204
        $region58: #{net_forward.1} parent=39 // pred_check_branch
          %508 = sbr.rel (%p506) target = $region60
        $region59: #{net_forward.1} parent=39 // pred_region
          %s509 = sand.u32 %s38, 1
          %s510 = scalar_lea.sflag [#allocation19], %s509
          %s511 = sand.u32 %s194, 1
          %s512 = scalar_lea.vmem [#allocation18], %s511
          %s514 = ssub.s32 16, 16
          %515 = vsyncadd %s510, %s514
          %s516 = smul.addr %s38, 16
          %s517 = scalar_lea.hbm %s7, %s516
          %s519 = sshll.u32 %s512, 4
          %s520 = int_to_ptr.vmem [resolvable:$true] %s519
          %522 = dma.hbm_to_vmem [thread:$0]  %s517, 16, %s520, %s510
        $region60: #{net_forward.1} parent=39 // pred_fallthru
          _
        // Predicated region
        $region61: #{net_forward.1} parent=39 // pred_check
          %p523 = pneg %p230
        $region62: #{net_forward.1} parent=39 // pred_check_branch
          %525 = sbr.rel (%p523) target = $region64
        $region63: #{net_forward.1} parent=39 // pred_region
          %p526 = scmp.lt.s32.totalorder %s38, 9
          %s527 = scalar_select %p526, %s38, 9
          %s528 = smul.addr %s527, 16
          %s529 = smul.addr %s528, 8
          %s530 = scalar_lea.vmem %s8, %s529
        $region64: #{net_forward.1} parent=39 // pred_fallthru
          _
        // Predicated region
        $region65: #{net_forward.1} parent=39 // pred_check
          %p531 = pneg %p277
        $region66: #{net_forward.1} parent=39 // pred_check_branch
          %533 = sbr.rel (%p531) target = $region68
        $region67: #{net_forward.1} parent=39 // pred_region
          %s534 = sand.u32 %s38, 1
          %s535 = scalar_lea.sflag [#allocation19], %s534
          %s536 = sand.u32 %s267, 1
          %s537 = smul.addr %s536, 1280
          %s538 = scalar_lea.vmem [#allocation20], %s537
          %s540 = ssub.s32 20480, 20480
          %541 = vsyncadd %s535, %s540
          %s542 = smul.addr %s38, 320
          %s543 = smul.addr %s542, 64
          %s544 = scalar_lea.hbm %s10, %s543
          %s545 = sshll.u32 %s538, 4
          %s546 = int_to_ptr.vmem [resolvable:$true] %s545
          %551 = dma.hbm_to_vmem [thread:$0]  %s544, 20480, %s546, %s535, 640, 640, 40
        $region68: #{net_forward.1} parent=39 // pred_fallthru
          _
      $region40: #{net_forward.1} parent=5 // pred_fallthru
        _
      %p552 = scmp.le.s32.totalorder 1, %s38
      %p553 = scmp.lt.s32.totalorder %s38, 11
      %p554 = pnand %p552, %p553
      %p555 = pneg %p554
      // Predicated region
      $region69: #{net_forward.1} parent=5 // pred_check
        _
      $region70: #{net_forward.1} parent=5 // pred_check_branch
        %557 = sbr.rel (%p554) target = $region72
      $region71: #{net_forward.1} parent=5 // pred_region
        %s558 = ssub.s32 %s38, 1
        // Predicated region
        $region73: #{net_forward.1} parent=71 // pred_check
          %p559 = pneg %p80
        $region74: #{net_forward.1} parent=71 // pred_check_branch
          %561 = sbr.rel (%p559) target = $region76
        $region75: #{net_forward.1} parent=71 // pred_region
          %562 = dma.done [#allocation10], 512
        $region76: #{net_forward.1} parent=71 // pred_fallthru
          _
        %s563 = sand.u32 %s43, 1
        %s564 = scalar_lea.sflag [#allocation13], %s563
        %s565 = sand.u32 %s93, 1
        %s566 = smul.addr %s565, 128
        %s567 = scalar_lea.vmem [#allocation12], %s566
        // Predicated region
        $region77: #{net_forward.1} parent=71 // pred_check
          %p568 = pneg %p106
        $region78: #{net_forward.1} parent=71 // pred_check_branch
          %570 = sbr.rel (%p568) target = $region80
        $region79: #{net_forward.1} parent=71 // pred_region
          %571 = dma.done %s564, 2048
        $region80: #{net_forward.1} parent=71 // pred_fallthru
          _
        %s572 = sand.u32 %s43, 1
        %s573 = scalar_lea.sflag [#allocation13], %s572
        %s574 = sand.u32 %s119, 1
        %s575 = smul.addr %s574, 128
        %s576 = scalar_lea.vmem [#allocation14], %s575
        // Predicated region
        $region81: #{net_forward.1} parent=71 // pred_check
          %p577 = pneg %p132
        $region82: #{net_forward.1} parent=71 // pred_check_branch
          %579 = sbr.rel (%p577) target = $region84
        $region83: #{net_forward.1} parent=71 // pred_region
          %580 = dma.done %s573, 2048
        $region84: #{net_forward.1} parent=71 // pred_fallthru
          _
        %s581 = sand.u32 %s43, 1
        %s582 = scalar_lea.sflag [#allocation16], %s581
        %s583 = sand.u32 %s145, 1
        %s584 = scalar_lea.vmem [#allocation15], %s583
        // Predicated region
        $region85: #{net_forward.1} parent=71 // pred_check
          %p585 = pneg %p158
        $region86: #{net_forward.1} parent=71 // pred_check_branch
          %587 = sbr.rel (%p585) target = $region88
        $region87: #{net_forward.1} parent=71 // pred_region
          %588 = dma.done %s582, 16
        $region88: #{net_forward.1} parent=71 // pred_fallthru
          _
        %s589 = sand.u32 %s43, 1
        %s590 = scalar_lea.sflag [#allocation16], %s589
        %s591 = sand.u32 %s171, 1
        %s592 = scalar_lea.vmem [#allocation17], %s591
        // Predicated region
        $region89: #{net_forward.1} parent=71 // pred_check
          %p593 = pneg %p184
        $region90: #{net_forward.1} parent=71 // pred_check_branch
          %595 = sbr.rel (%p593) target = $region92
        $region91: #{net_forward.1} parent=71 // pred_region
          %596 = dma.done %s590, 16
        $region92: #{net_forward.1} parent=71 // pred_fallthru
          _
        %s597 = sand.u32 %s43, 1
        %s598 = scalar_lea.sflag [#allocation19], %s597
        %s599 = sand.u32 %s197, 1
        %s600 = scalar_lea.vmem [#allocation18], %s599
        // Predicated region
        $region93: #{net_forward.1} parent=71 // pred_check
          %p601 = pneg %p210
        $region94: #{net_forward.1} parent=71 // pred_check_branch
          %603 = sbr.rel (%p601) target = $region96
        $region95: #{net_forward.1} parent=71 // pred_region
          %604 = dma.done %s598, 16
        $region96: #{net_forward.1} parent=71 // pred_fallthru
          _
        %s605 = sand.u32 %s43, 1
        %s606 = scalar_lea.sflag [#allocation19], %s605
        %s607 = sand.u32 %s270, 1
        %s608 = smul.addr %s607, 1280
        %s609 = scalar_lea.vmem [#allocation20], %s608
        // Predicated region
        $region97: #{net_forward.1} parent=71 // pred_check
          %p610 = pneg %p283
        $region98: #{net_forward.1} parent=71 // pred_check_branch
          %612 = sbr.rel (%p610) target = $region100
        $region99: #{net_forward.1} parent=71 // pred_region
          %613 = dma.done %s606, 20480
        $region100: #{net_forward.1} parent=71 // pred_fallthru
          _
        // Predicated region
        $region101: #{net_forward.1} parent=71 // pred_check
          %p614 = pneg %p304
        $region102: #{net_forward.1} parent=71 // pred_check_branch
          %616 = sbr.rel (%p614) target = $region104
        $region103: #{net_forward.1} parent=71 // pred_region
          %617 = dma.done [#allocation22], 160
        $region104: #{net_forward.1} parent=71 // pred_fallthru
          _
        // Predicated region
        $region105: #{net_forward.1} parent=71 // pred_check
          %p618 = pneg %p346
        $region106: #{net_forward.1} parent=71 // pred_check_branch
          %620 = sbr.rel (%p618) target = $region108
        $region107: #{net_forward.1} parent=71 // pred_region
          %621 = dma.done [#allocation22], 16
        $region108: #{net_forward.1} parent=71 // pred_fallthru
          _
        %p622 = pneg %p59
        %p623 = pneg %p56
        %p624 = pneg %p80
        %p625 = pneg %p77
        %s626 = sand.u32 %s43, 1
        %s627 = scalar_lea.sflag [#allocation13], %s626
        %s628 = sand.u32 %s93, 1
        %s629 = smul.addr %s628, 128
        %s630 = scalar_lea.vmem [#allocation12], %s629
        %p631 = pneg %p106
        %p632 = pneg %p103
        %s633 = sand.u32 %s43, 1
        %s634 = scalar_lea.sflag [#allocation13], %s633
        %s635 = sand.u32 %s119, 1
        %s636 = smul.addr %s635, 128
        %s637 = scalar_lea.vmem [#allocation14], %s636
        %p638 = pneg %p132
        %p639 = pneg %p129
        %s640 = sand.u32 %s43, 1
        %s641 = scalar_lea.sflag [#allocation16], %s640
        %s642 = sand.u32 %s145, 1
        %s643 = scalar_lea.vmem [#allocation15], %s642
        %p644 = pneg %p158
        %p645 = pneg %p155
        %s646 = sand.u32 %s43, 1
        %s647 = scalar_lea.sflag [#allocation16], %s646
        %s648 = sand.u32 %s171, 1
        %s649 = scalar_lea.vmem [#allocation17], %s648
        %p650 = pneg %p184
        %p651 = pneg %p181
        %s652 = sand.u32 %s43, 1
        %s653 = scalar_lea.sflag [#allocation19], %s652
        %s654 = sand.u32 %s197, 1
        %s655 = scalar_lea.vmem [#allocation18], %s654
        %p656 = pneg %p210
        %p657 = pneg %p207
        %p658 = scmp.lt.s32.totalorder %s43, 9
        %s659 = scalar_select %p658, %s43, 9
        %s660 = smul.addr %s659, 16
        %s661 = smul.addr %s660, 8
        %s662 = scalar_lea.vmem %s8, %s661
        %p663 = pneg %p236
        %p664 = pneg %p233
        %p665 = pneg %p257
        %p666 = pneg %p254
        %s667 = sand.u32 %s43, 1
        %s668 = scalar_lea.sflag [#allocation19], %s667
        %s669 = sand.u32 %s270, 1
        %s670 = smul.addr %s669, 1280
        %s671 = scalar_lea.vmem [#allocation20], %s670
        %p672 = pneg %p283
        %p673 = pneg %p280
        %p674 = pneg %p304
        %p675 = pneg %p301
        %p676 = pneg %p325
        %p677 = pneg %p322
        %p678 = pneg %p346
        %p679 = pneg %p343
        %p680 = pneg %p367
        %p681 = pneg %p364
        %p682 = scmp.lt.s32.totalorder %s43, 9
        %s683 = scalar_select %p682, %s43, 9
        %s684 = smul.addr %s683, 16
        %s685 = smul.addr %s684, 8
        %s686 = scalar_lea.vmem %s8, %s685
        %p688 = scmp.eq.s32.totalorder %s43, 0
        // Predicated region
        $region109: #{net_forward.1} parent=71 // pred_check
          %p689 = pneg %p688
        $region110: #{net_forward.1} parent=71 // pred_check_branch
          %691 = sbr.rel (%p689) target = $region112
        $region111: #{net_forward.1} parent=71 // pred_region
          %v692 = vld [vmem:[%s1] sm:$0xff]
          %v693 = vld [vmem:[%s1 + $0x8] sm:$0xff]
          %v694 = vld [vmem:[%s1 + $0x10] sm:$0xff]
          %v695 = vld [vmem:[%s1 + $0x18] sm:$0xff]
          %696 = vst [vmem:[#allocation2] sm:$0xff] %v692
          %697 = vst [vmem:[#allocation2 + $0x8] sm:$0xff] %v693
          %698 = vst [vmem:[#allocation2 + $0x10] sm:$0xff] %v694
          %699 = vst [vmem:[#allocation2 + $0x18] sm:$0xff] %v695
          %v700 = vld [vmem:[#allocation9] sm:$0xff]
          %v701 = vld [vmem:[#allocation9 + $0x8] sm:$0xff]
          %v702 = vld [vmem:[#allocation9 + $0x10] sm:$0xff]
          %v703 = vld [vmem:[#allocation9 + $0x18] sm:$0xff]
          %vm704 = vcmask 130048
          %705 = vst.msk [vmem:[#allocation3] sm:$0xff] %vm704, %v700
          %706 = vst.msk [vmem:[#allocation3 + $0x8] sm:$0xff] %vm704, %v701
          %707 = vst.msk [vmem:[#allocation3 + $0x10] sm:$0xff] %vm704, %v702
          %708 = vst.msk [vmem:[#allocation3 + $0x18] sm:$0xff] %vm704, %v703
          %vm709 = vcmask 7168
          %710 = vst.msk [vmem:[#allocation4] sm:$0xff] %vm709, 1.0
          %711 = vst.msk [vmem:[#allocation4 + $0x8] sm:$0xff] %vm709, 1.0
          %712 = vst.msk [vmem:[#allocation4 + $0x10] sm:$0xff] %vm709, 1.0
          %713 = vst.msk [vmem:[#allocation4 + $0x18] sm:$0xff] %vm709, 1.0
          %714 = vst [vmem:[#allocation5] sm:$0xff] 0.0
          %715 = vst [vmem:[#allocation5 + $0x8] sm:$0xff] 0.0
          %716 = vst [vmem:[#allocation5 + $0x10] sm:$0xf] 0.0
        $region112: #{net_forward.1} parent=71 // pred_fallthru
          _
        %v717 = vld [vmem:[#allocation2] sm:$0xff]
        %v718 = vld [vmem:[#allocation2 + $0x8] sm:$0xff]
        %v719 = vld [vmem:[#allocation2 + $0x10] sm:$0xff]
        %v720 = vld [vmem:[#allocation2 + $0x18] sm:$0xff]
        %v721 = vld [vmem:[#allocation3] sm:$0xff]
        %v722 = vld [vmem:[#allocation3 + $0x8] sm:$0xff]
        %v723 = vld [vmem:[#allocation3 + $0x10] sm:$0xff]
        %v724 = vld [vmem:[#allocation3 + $0x18] sm:$0xff]
        %v725 = vld [vmem:[#allocation4] sm:$0xff]
        %v726 = vld [vmem:[#allocation4 + $0x8] sm:$0xff]
        %v727 = vld [vmem:[#allocation4 + $0x10] sm:$0xff]
        %v728 = vld [vmem:[#allocation4 + $0x18] sm:$0xff]
        %v729 = vld [vmem:[#allocation8] sm:$0x1]
        %s730 = vtos %v729
        %vm731 = vcmask 130048
        %v732 = vsel %vm731, %v721, 0.0
        %733 = vadd.xlane.f32.xlu0 %v732
        %v734 = vpop.xlane.xlu0 %733
        %v735 = vsel %vm731, %v722, 0.0
        %736 = vadd.xlane.f32.xlu0 %v735
        %v737 = vpop.xlane.xlu0 %736
        %v738 = vsel %vm731, %v723, 0.0
        %739 = vadd.xlane.f32.xlu0 %v738
        %v740 = vpop.xlane.xlu0 %739
        %v741 = vsel %vm731, %v724, 0.0
        %742 = vadd.xlane.f32.xlu0 %v741
        %v743 = vpop.xlane.xlu0 %742
        %vm744 = vcmp.gt.f32.partialorder %v734, 0.0
        %vm745 = vcmp.gt.f32.partialorder %v737, 0.0
        %vm746 = vcmp.gt.f32.partialorder %v740, 0.0
        %vm747 = vcmp.gt.f32.partialorder %v743, 0.0
        %v748 = vrsqrt.pop %v734
        %v749 = vrsqrt.pop %v737
        %v750 = vrsqrt.pop %v740
        %v751 = vrsqrt.pop %v743
        %v752 = vsel %vm744, %v748, 0.0
        %v753 = vsel %vm745, %v749, 0.0
        %v754 = vsel %vm746, %v750, 0.0
        %v755 = vsel %vm747, %v751, 0.0
        %v756 = vmul.f32 %v721, %v752
        %v757 = vmul.f32 %v722, %v753
        %v758 = vmul.f32 %v723, %v754
        %v759 = vmul.f32 %v724, %v755
        %760 = vxpose.xlu0.b32.start [1/16] %v752, 128
        %761 = vxpose.xlu0.b32.cont [2/16] %v753, 128
        %762 = vxpose.xlu0.b32.cont [3/16] 0.0, 128
        %763 = vxpose.xlu0.b32.cont [4/16] 0.0, 128
        %764 = vxpose.xlu0.b32.cont [5/16] 0.0, 128
        %765 = vxpose.xlu0.b32.cont [6/16] 0.0, 128
        %766 = vxpose.xlu0.b32.cont [7/16] 0.0, 128
        %767 = vxpose.xlu0.b32.cont [8/16] 0.0, 128
        %768 = vxpose.xlu0.b32.cont [9/16] 0.0, 128
        %769 = vxpose.xlu0.b32.cont [10/16] 0.0, 128
        %770 = vxpose.xlu0.b32.cont [11/16] 0.0, 128
        %771 = vxpose.xlu0.b32.cont [12/16] 0.0, 128
        %772 = vxpose.xlu0.b32.cont [13/16] 0.0, 128
        %773 = vxpose.xlu0.b32.cont [14/16] 0.0, 128
        %774 = vxpose.xlu0.b32.cont [15/16] 0.0, 128
        %775 = vxpose.xlu0.b32.end [16/16] 0.0, 128
        %v776 = vpop.trf.xlu0
        %v777 = vpop.trf.xlu0
        %v778 = vpop.trf.xlu0
        %v779 = vpop.trf.xlu0
        %v780 = vpop.trf.xlu0
        %v781 = vpop.trf.xlu0
        %v782 = vpop.trf.xlu0
        %v783 = vpop.trf.xlu0
        %v784 = vpop.trf.xlu0
        %v785 = vpop.trf.xlu0
        %v786 = vpop.trf.xlu0
        %v787 = vpop.trf.xlu0
        %v788 = vpop.trf.xlu0
        %v789 = vpop.trf.xlu0
        %v790 = vpop.trf.xlu0
        %v791 = vpop.trf.xlu0
        %792 = vxpose.xlu0.b32.start [1/16] %v754, 128
        %793 = vxpose.xlu0.b32.cont [2/16] %v755, 128
        %794 = vxpose.xlu0.b32.cont [3/16] 0.0, 128
        %795 = vxpose.xlu0.b32.cont [4/16] 0.0, 128
        %796 = vxpose.xlu0.b32.cont [5/16] 0.0, 128
        %797 = vxpose.xlu0.b32.cont [6/16] 0.0, 128
        %798 = vxpose.xlu0.b32.cont [7/16] 0.0, 128
        %799 = vxpose.xlu0.b32.cont [8/16] 0.0, 128
        %800 = vxpose.xlu0.b32.cont [9/16] 0.0, 128
        %801 = vxpose.xlu0.b32.cont [10/16] 0.0, 128
        %802 = vxpose.xlu0.b32.cont [11/16] 0.0, 128
        %803 = vxpose.xlu0.b32.cont [12/16] 0.0, 128
        %804 = vxpose.xlu0.b32.cont [13/16] 0.0, 128
        %805 = vxpose.xlu0.b32.cont [14/16] 0.0, 128
        %806 = vxpose.xlu0.b32.cont [15/16] 0.0, 128
        %807 = vxpose.xlu0.b32.end [16/16] 0.0, 128
        %v808 = vpop.trf.xlu0
        %v809 = vpop.trf.xlu0
        %v810 = vpop.trf.xlu0
        %v811 = vpop.trf.xlu0
        %v812 = vpop.trf.xlu0
        %v813 = vpop.trf.xlu0
        %v814 = vpop.trf.xlu0
        %v815 = vpop.trf.xlu0
        %v816 = vpop.trf.xlu0
        %v817 = vpop.trf.xlu0
        %v818 = vpop.trf.xlu0
        %v819 = vpop.trf.xlu0
        %v820 = vpop.trf.xlu0
        %v821 = vpop.trf.xlu0
        %v822 = vpop.trf.xlu0
        %v823 = vpop.trf.xlu0
        %v824 = vlaneseq
        %v825 = vshrl.u32 %v824, 7
        %v826 = vsub.s32 0, %v825
        %v827 = vrot.slane %v776, %v826
        %v828 = vlaneseq
        %v829 = vshrl.u32 %v828, 7
        %v830 = vsub.s32 0, %v829
        %v831 = vrot.slane %v808, %v830
        %v832 = vmul.f32 %v756, %v827
        %v833 = vmul.f32 %v757, %v827
        %v834 = vmul.f32 %v758, %v831
        %v835 = vmul.f32 %v759, %v831
        %v836 = vld [vmem:[%s567] sm:$0xff]
        %v837 = vld [vmem:[%s567 + $0x8] sm:$0xff]
        %v838 = vld [vmem:[%s567 + $0x10] sm:$0xff]
        %v839 = vld [vmem:[%s567 + $0x18] sm:$0xff]
        %v840 = vld [vmem:[%s567 + $0x20] sm:$0xff]
        %v841 = vld [vmem:[%s567 + $0x28] sm:$0xff]
        %v842 = vld [vmem:[%s567 + $0x30] sm:$0xff]
        %v843 = vld [vmem:[%s567 + $0x38] sm:$0xff]
        %v844 = vld [vmem:[%s567 + $0x40] sm:$0xff]
        %v845 = vld [vmem:[%s567 + $0x48] sm:$0xff]
        %v846 = vld [vmem:[%s567 + $0x50] sm:$0xff]
        %v847 = vld [vmem:[%s567 + $0x58] sm:$0xff]
        %v848 = vld [vmem:[%s567 + $0x60] sm:$0xff]
        %v849 = vld [vmem:[%s567 + $0x68] sm:$0xff]
        %v850 = vld [vmem:[%s567 + $0x70] sm:$0xff]
        %v851 = vld [vmem:[%s567 + $0x78] sm:$0xff]
        %852 = vmatprep.subr.mxu0 0.0
        %853 = vmatpush1.msra.mxu0 %v851
        %854 = vmatprep.subr.mxu0 0.0
        %855 = vmatpush1.msra.mxu0 %v850
        %856 = vmatprep.subr.mxu0 0.0
        %857 = vmatpush1.msra.mxu0 %v849
        %858 = vmatprep.subr.mxu0 0.0
        %859 = vmatpush1.msra.mxu0 %v848
        %860 = vmatprep.subr.mxu0 0.0
        %861 = vmatpush1.msra.mxu0 %v847
        %862 = vmatprep.subr.mxu0 0.0
        %863 = vmatpush1.msra.mxu0 %v846
        %864 = vmatprep.subr.mxu0 0.0
        %865 = vmatpush1.msra.mxu0 %v845
        %866 = vmatprep.subr.mxu0 0.0
        %867 = vmatpush1.msra.mxu0 %v844
        %868 = vmatprep.subr.mxu0 0.0
        %869 = vmatpush1.msra.mxu0 %v843
        %870 = vmatprep.subr.mxu0 0.0
        %871 = vmatpush1.msra.mxu0 %v842
        %872 = vmatprep.subr.mxu0 0.0
        %873 = vmatpush1.msra.mxu0 %v841
        %874 = vmatprep.subr.mxu0 0.0
        %875 = vmatpush1.msra.mxu0 %v840
        %876 = vmatprep.subr.mxu0 0.0
        %877 = vmatpush1.msra.mxu0 %v839
        %878 = vmatprep.subr.mxu0 0.0
        %879 = vmatpush1.msra.mxu0 %v838
        %880 = vmatprep.subr.mxu0 0.0
        %881 = vmatpush1.msra.mxu0 %v837
        %882 = vmatprep.subr.mxu0 0.0
        %883 = vmatpush1.msra.mxu0 %v836
        %884 = vmatprep.subr.mxu0 0.0
        %885 = vmatpush2.msra.mxu0 0.0
        %886 = vmatprep.subr.mxu0 0.0
        %887 = vmatpush2.msra.mxu0 0.0
        %888 = vmatprep.subr.mxu0 0.0
        %889 = vmatpush2.msra.mxu0 0.0
        %890 = vmatprep.subr.mxu0 0.0
        %891 = vmatpush2.msra.mxu0 0.0
        %892 = vmatprep.subr.mxu0 0.0
        %893 = vmatpush2.msra.mxu0 0.0
        %894 = vmatprep.subr.mxu0 0.0
        %895 = vmatpush2.msra.mxu0 0.0
        %896 = vmatprep.subr.mxu0 0.0
        %897 = vmatpush2.msra.mxu0 0.0
        %898 = vmatprep.subr.mxu0 0.0
        %899 = vmatpush2.msra.mxu0 0.0
        %900 = vmatprep.subr.mxu0 0.0
        %901 = vmatpush2.msra.mxu0 0.0
        %902 = vmatprep.subr.mxu0 0.0
        %903 = vmatpush2.msra.mxu0 0.0
        %904 = vmatprep.subr.mxu0 0.0
        %905 = vmatpush2.msra.mxu0 0.0
        %906 = vmatprep.subr.mxu0 0.0
        %907 = vmatpush2.msra.mxu0 0.0
        %908 = vmatprep.subr.mxu0 0.0
        %909 = vmatpush2.msra.mxu0 0.0
        %910 = vmatprep.subr.mxu0 0.0
        %911 = vmatpush2.msra.mxu0 0.0
        %912 = vmatprep.subr.mxu0 0.0
        %913 = vmatpush2.msra.mxu0 0.0
        %914 = vmatprep.subr.mxu0 0.0
        %915 = vmatpush2.msra.mxu0 0.0
        %916 = vmatprep.mubr.f32.mxu0 0.0
        %917 = vmatmul.mubr.f32.gmra.mxu0 %v717
        %v918 = vpop.f32.mrf.mxu0
        %v919 = vadd.f32 0.0, %v918
        %v920 = vpop.f32.mrf.mxu0
        %921 = vmatprep.mubr.f32.mxu0 0.0
        %922 = vmatmul.mubr.f32.gmra.mxu0 %v718
        %v923 = vpop.f32.mrf.mxu0
        %v924 = vadd.f32 0.0, %v923
        %v925 = vpop.f32.mrf.mxu0
        %926 = vmatprep.mubr.f32.mxu0 0.0
        %927 = vmatmul.mubr.f32.gmra.mxu0 %v719
        %v928 = vpop.f32.mrf.mxu0
        %v929 = vadd.f32 0.0, %v928
        %v930 = vpop.f32.mrf.mxu0
        %931 = vmatprep.mubr.f32.mxu0 0.0
        %932 = vmatmul.mubr.f32.gmra.mxu0 %v720
        %v933 = vpop.f32.mrf.mxu0
        %v934 = vadd.f32 0.0, %v933
        %v935 = vpop.f32.mrf.mxu0
        %936 = vdwg.mxu0
        %v937 = vld [vmem:[%s576] sm:$0xff]
        %v938 = vld [vmem:[%s576 + $0x8] sm:$0xff]
        %v939 = vld [vmem:[%s576 + $0x10] sm:$0xff]
        %v940 = vld [vmem:[%s576 + $0x18] sm:$0xff]
        %v941 = vld [vmem:[%s576 + $0x20] sm:$0xff]
        %v942 = vld [vmem:[%s576 + $0x28] sm:$0xff]
        %v943 = vld [vmem:[%s576 + $0x30] sm:$0xff]
        %v944 = vld [vmem:[%s576 + $0x38] sm:$0xff]
        %v945 = vld [vmem:[%s576 + $0x40] sm:$0xff]
        %v946 = vld [vmem:[%s576 + $0x48] sm:$0xff]
        %v947 = vld [vmem:[%s576 + $0x50] sm:$0xff]
        %v948 = vld [vmem:[%s576 + $0x58] sm:$0xff]
        %v949 = vld [vmem:[%s576 + $0x60] sm:$0xff]
        %v950 = vld [vmem:[%s576 + $0x68] sm:$0xff]
        %v951 = vld [vmem:[%s576 + $0x70] sm:$0xff]
        %v952 = vld [vmem:[%s576 + $0x78] sm:$0xff]
        %953 = vmatprep.subr.mxu0 0.0
        %954 = vmatpush1.msra.mxu0 %v952
        %955 = vmatprep.subr.mxu0 0.0
        %956 = vmatpush1.msra.mxu0 %v951
        %957 = vmatprep.subr.mxu0 0.0
        %958 = vmatpush1.msra.mxu0 %v950
        %959 = vmatprep.subr.mxu0 0.0
        %960 = vmatpush1.msra.mxu0 %v949
        %961 = vmatprep.subr.mxu0 0.0
        %962 = vmatpush1.msra.mxu0 %v948
        %963 = vmatprep.subr.mxu0 0.0
        %964 = vmatpush1.msra.mxu0 %v947
        %965 = vmatprep.subr.mxu0 0.0
        %966 = vmatpush1.msra.mxu0 %v946
        %967 = vmatprep.subr.mxu0 0.0
        %968 = vmatpush1.msra.mxu0 %v945
        %969 = vmatprep.subr.mxu0 0.0
        %970 = vmatpush1.msra.mxu0 %v944
        %971 = vmatprep.subr.mxu0 0.0
        %972 = vmatpush1.msra.mxu0 %v943
        %973 = vmatprep.subr.mxu0 0.0
        %974 = vmatpush1.msra.mxu0 %v942
        %975 = vmatprep.subr.mxu0 0.0
        %976 = vmatpush1.msra.mxu0 %v941
        %977 = vmatprep.subr.mxu0 0.0
        %978 = vmatpush1.msra.mxu0 %v940
        %979 = vmatprep.subr.mxu0 0.0
        %980 = vmatpush1.msra.mxu0 %v939
        %981 = vmatprep.subr.mxu0 0.0
        %982 = vmatpush1.msra.mxu0 %v938
        %983 = vmatprep.subr.mxu0 0.0
        %984 = vmatpush1.msra.mxu0 %v937
        %985 = vmatprep.subr.mxu0 0.0
        %986 = vmatpush2.msra.mxu0 0.0
        %987 = vmatprep.subr.mxu0 0.0
        %988 = vmatpush2.msra.mxu0 0.0
        %989 = vmatprep.subr.mxu0 0.0
        %990 = vmatpush2.msra.mxu0 0.0
        %991 = vmatprep.subr.mxu0 0.0
        %992 = vmatpush2.msra.mxu0 0.0
        %993 = vmatprep.subr.mxu0 0.0
        %994 = vmatpush2.msra.mxu0 0.0
        %995 = vmatprep.subr.mxu0 0.0
        %996 = vmatpush2.msra.mxu0 0.0
        %997 = vmatprep.subr.mxu0 0.0
        %998 = vmatpush2.msra.mxu0 0.0
        %999 = vmatprep.subr.mxu0 0.0
        %1000 = vmatpush2.msra.mxu0 0.0
        %1001 = vmatprep.subr.mxu0 0.0
        %1002 = vmatpush2.msra.mxu0 0.0
        %1003 = vmatprep.subr.mxu0 0.0
        %1004 = vmatpush2.msra.mxu0 0.0
        %1005 = vmatprep.subr.mxu0 0.0
        %1006 = vmatpush2.msra.mxu0 0.0
        %1007 = vmatprep.subr.mxu0 0.0
        %1008 = vmatpush2.msra.mxu0 0.0
        %1009 = vmatprep.subr.mxu0 0.0
        %1010 = vmatpush2.msra.mxu0 0.0
        %1011 = vmatprep.subr.mxu0 0.0
        %1012 = vmatpush2.msra.mxu0 0.0
        %1013 = vmatprep.subr.mxu0 0.0
        %1014 = vmatpush2.msra.mxu0 0.0
        %1015 = vmatprep.subr.mxu0 0.0
        %1016 = vmatpush2.msra.mxu0 0.0
        %1017 = vmatprep.mubr.f32.mxu0 0.0
        %1018 = vmatmul.mubr.f32.gmra.mxu0 %v717
        %v1019 = vpop.f32.mrf.mxu0
        %v1020 = vadd.f32 0.0, %v1019
        %v1021 = vpop.f32.mrf.mxu0
        %1022 = vmatprep.mubr.f32.mxu0 0.0
        %1023 = vmatmul.mubr.f32.gmra.mxu0 %v718
        %v1024 = vpop.f32.mrf.mxu0
        %v1025 = vadd.f32 0.0, %v1024
        %v1026 = vpop.f32.mrf.mxu0
        %1027 = vmatprep.mubr.f32.mxu0 0.0
        %1028 = vmatmul.mubr.f32.gmra.mxu0 %v719
        %v1029 = vpop.f32.mrf.mxu0
        %v1030 = vadd.f32 0.0, %v1029
        %v1031 = vpop.f32.mrf.mxu0
        %1032 = vmatprep.mubr.f32.mxu0 0.0
        %1033 = vmatmul.mubr.f32.gmra.mxu0 %v720
        %v1034 = vpop.f32.mrf.mxu0
        %v1035 = vadd.f32 0.0, %v1034
        %v1036 = vpop.f32.mrf.mxu0
        %1037 = vdwg.mxu0
        %v1039 = vsel %vm731, %v832, 0
        %v1042 = vsel %vm731, %v833, 0
        %1044 = vmatprep.subr.mxu0 0.0
        %1045 = vmatpush1.msra.mxu0 0.0
        %1046 = vmatprep.subr.mxu0 0.0
        %1047 = vmatpush1.msra.mxu0 0.0
        %1048 = vmatprep.subr.mxu0 0.0
        %1049 = vmatpush1.msra.mxu0 0.0
        %1050 = vmatprep.subr.mxu0 0.0
        %1051 = vmatpush1.msra.mxu0 0.0
        %1052 = vmatprep.subr.mxu0 0.0
        %1053 = vmatpush1.msra.mxu0 0.0
        %1054 = vmatprep.subr.mxu0 0.0
        %1055 = vmatpush1.msra.mxu0 0.0
        %1056 = vmatprep.subr.mxu0 0.0
        %1057 = vmatpush1.msra.mxu0 0.0
        %1058 = vmatprep.subr.mxu0 0.0
        %1059 = vmatpush1.msra.mxu0 0.0
        %1060 = vmatprep.subr.mxu0 0.0
        %1061 = vmatpush1.msra.mxu0 0.0
        %1062 = vmatprep.subr.mxu0 0.0
        %1063 = vmatpush1.msra.mxu0 0.0
        %1064 = vmatprep.subr.mxu0 0.0
        %1065 = vmatpush1.msra.mxu0 0.0
        %1066 = vmatprep.subr.mxu0 0.0
        %1067 = vmatpush1.msra.mxu0 0.0
        %1068 = vmatprep.subr.mxu0 0.0
        %1069 = vmatpush1.msra.mxu0 0.0
        %1070 = vmatprep.subr.mxu0 0.0
        %1071 = vmatpush1.msra.mxu0 0.0
        %1072 = vmatprep.subr.mxu0 0.0
        %1073 = vmatpush1.msra.mxu0 %v924
        %1074 = vmatprep.subr.mxu0 0.0
        %1075 = vmatpush1.msra.mxu0 %v919
        %1076 = vmatprep.subr.mxu0 0.0
        %1077 = vmatpush2.msra.mxu0 0.0
        %1078 = vmatprep.subr.mxu0 0.0
        %1079 = vmatpush2.msra.mxu0 0.0
        %1080 = vmatprep.subr.mxu0 0.0
        %1081 = vmatpush2.msra.mxu0 0.0
        %1082 = vmatprep.subr.mxu0 0.0
        %1083 = vmatpush2.msra.mxu0 0.0
        %1084 = vmatprep.subr.mxu0 0.0
        %1085 = vmatpush2.msra.mxu0 0.0
        %1086 = vmatprep.subr.mxu0 0.0
        %1087 = vmatpush2.msra.mxu0 0.0
        %1088 = vmatprep.subr.mxu0 0.0
        %1089 = vmatpush2.msra.mxu0 0.0
        %1090 = vmatprep.subr.mxu0 0.0
        %1091 = vmatpush2.msra.mxu0 0.0
        %1092 = vmatprep.subr.mxu0 0.0
        %1093 = vmatpush2.msra.mxu0 0.0
        %1094 = vmatprep.subr.mxu0 0.0
        %1095 = vmatpush2.msra.mxu0 0.0
        %1096 = vmatprep.subr.mxu0 0.0
        %1097 = vmatpush2.msra.mxu0 0.0
        %1098 = vmatprep.subr.mxu0 0.0
        %1099 = vmatpush2.msra.mxu0 0.0
        %1100 = vmatprep.subr.mxu0 0.0
        %1101 = vmatpush2.msra.mxu0 0.0
        %1102 = vmatprep.subr.mxu0 0.0
        %1103 = vmatpush2.msra.mxu0 0.0
        %1104 = vmatprep.subr.mxu0 0.0
        %1105 = vmatpush2.msra.mxu0 0.0
        %1106 = vmatprep.subr.mxu0 0.0
        %1107 = vmatpush2.msra.mxu0 0.0
        %1108 = vmatprep.mubr.f32.mxu0 0.0
        %1109 = vmatmul.mubr.f32.gmra.mxu0 %v1039
        %v1110 = vpop.f32.mrf.mxu0
        %v1111 = vadd.f32 %v1020, %v1110
        %v1112 = vpop.f32.mrf.mxu0
        %1113 = vmatprep.mubr.f32.mxu0 0.0
        %1114 = vmatmul.mubr.f32.gmra.mxu0 %v1042
        %v1115 = vpop.f32.mrf.mxu0
        %v1116 = vadd.f32 %v1025, %v1115
        %v1117 = vpop.f32.mrf.mxu0
        %1118 = vdwg.mxu0
        %v1120 = vsel %vm731, %v834, 0
        %v1123 = vsel %vm731, %v835, 0
        %1125 = vmatprep.subr.mxu0 0.0
        %1126 = vmatpush1.msra.mxu0 0.0
        %1127 = vmatprep.subr.mxu0 0.0
        %1128 = vmatpush1.msra.mxu0 0.0
        %1129 = vmatprep.subr.mxu0 0.0
        %1130 = vmatpush1.msra.mxu0 0.0
        %1131 = vmatprep.subr.mxu0 0.0
        %1132 = vmatpush1.msra.mxu0 0.0
        %1133 = vmatprep.subr.mxu0 0.0
        %1134 = vmatpush1.msra.mxu0 0.0
        %1135 = vmatprep.subr.mxu0 0.0
        %1136 = vmatpush1.msra.mxu0 0.0
        %1137 = vmatprep.subr.mxu0 0.0
        %1138 = vmatpush1.msra.mxu0 0.0
        %1139 = vmatprep.subr.mxu0 0.0
        %1140 = vmatpush1.msra.mxu0 0.0
        %1141 = vmatprep.subr.mxu0 0.0
        %1142 = vmatpush1.msra.mxu0 0.0
        %1143 = vmatprep.subr.mxu0 0.0
        %1144 = vmatpush1.msra.mxu0 0.0
        %1145 = vmatprep.subr.mxu0 0.0
        %1146 = vmatpush1.msra.mxu0 0.0
        %1147 = vmatprep.subr.mxu0 0.0
        %1148 = vmatpush1.msra.mxu0 0.0
        %1149 = vmatprep.subr.mxu0 0.0
        %1150 = vmatpush1.msra.mxu0 0.0
        %1151 = vmatprep.subr.mxu0 0.0
        %1152 = vmatpush1.msra.mxu0 0.0
        %1153 = vmatprep.subr.mxu0 0.0
        %1154 = vmatpush1.msra.mxu0 %v934
        %1155 = vmatprep.subr.mxu0 0.0
        %1156 = vmatpush1.msra.mxu0 %v929
        %1157 = vmatprep.subr.mxu0 0.0
        %1158 = vmatpush2.msra.mxu0 0.0
        %1159 = vmatprep.subr.mxu0 0.0
        %1160 = vmatpush2.msra.mxu0 0.0
        %1161 = vmatprep.subr.mxu0 0.0
        %1162 = vmatpush2.msra.mxu0 0.0
        %1163 = vmatprep.subr.mxu0 0.0
        %1164 = vmatpush2.msra.mxu0 0.0
        %1165 = vmatprep.subr.mxu0 0.0
        %1166 = vmatpush2.msra.mxu0 0.0
        %1167 = vmatprep.subr.mxu0 0.0
        %1168 = vmatpush2.msra.mxu0 0.0
        %1169 = vmatprep.subr.mxu0 0.0
        %1170 = vmatpush2.msra.mxu0 0.0
        %1171 = vmatprep.subr.mxu0 0.0
        %1172 = vmatpush2.msra.mxu0 0.0
        %1173 = vmatprep.subr.mxu0 0.0
        %1174 = vmatpush2.msra.mxu0 0.0
        %1175 = vmatprep.subr.mxu0 0.0
        %1176 = vmatpush2.msra.mxu0 0.0
        %1177 = vmatprep.subr.mxu0 0.0
        %1178 = vmatpush2.msra.mxu0 0.0
        %1179 = vmatprep.subr.mxu0 0.0
        %1180 = vmatpush2.msra.mxu0 0.0
        %1181 = vmatprep.subr.mxu0 0.0
        %1182 = vmatpush2.msra.mxu0 0.0
        %1183 = vmatprep.subr.mxu0 0.0
        %1184 = vmatpush2.msra.mxu0 0.0
        %1185 = vmatprep.subr.mxu0 0.0
        %1186 = vmatpush2.msra.mxu0 0.0
        %1187 = vmatprep.subr.mxu0 0.0
        %1188 = vmatpush2.msra.mxu0 0.0
        %1189 = vmatprep.mubr.f32.mxu0 0.0
        %1190 = vmatmul.mubr.f32.gmra.mxu0 %v1120
        %v1191 = vpop.f32.mrf.mxu0
        %v1192 = vadd.f32 %v1030, %v1191
        %v1193 = vpop.f32.mrf.mxu0
        %1194 = vmatprep.mubr.f32.mxu0 0.0
        %1195 = vmatmul.mubr.f32.gmra.mxu0 %v1123
        %v1196 = vpop.f32.mrf.mxu0
        %v1197 = vadd.f32 %v1035, %v1196
        %v1198 = vpop.f32.mrf.mxu0
        %1199 = vdwg.mxu0
        %v1200 = vld [vmem:[%s584] sm:$0x1]
        %v1202 = vlaneseq
        %v1203 = vshrl.u32 %v1202, 7
        %v1204 = vsub.s32 0, %v1203
        %v1205 = vrot.slane %v1200, %v1204
        %v1207 = vadd.f32 %v1111, %v1205
        %v1208 = vadd.f32 %v1116, %v1205
        %v1209 = vadd.f32 %v1192, %v1205
        %v1210 = vadd.f32 %v1197, %v1205
        %v1211 = vmax.f32 %v1207, 0.0
        %v1212 = vmax.f32 %v1208, 0.0
        %v1213 = vmax.f32 %v1209, 0.0
        %v1214 = vmax.f32 %v1210, 0.0
        %v1215 = vld [vmem:[%s592] sm:$0x1]
        %v1217 = vlaneseq
        %v1218 = vshrl.u32 %v1217, 7
        %v1219 = vsub.s32 0, %v1218
        %v1220 = vrot.slane %v1215, %v1219
        %v1222 = vmul.f32 %v1211, %v1220
        %v1223 = vmul.f32 %v1212, %v1220
        %v1224 = vmul.f32 %v1213, %v1220
        %v1225 = vmul.f32 %v1214, %v1220
        %v1226 = vld [vmem:[%s600] sm:$0x1]
        %v1228 = vlaneseq
        %v1229 = vshrl.u32 %v1228, 7
        %v1230 = vsub.s32 0, %v1229
        %v1231 = vrot.slane %v1226, %v1230
        %v1233 = vadd.f32 %v1222, %v1231
        %v1234 = vadd.f32 %v1223, %v1231
        %v1235 = vadd.f32 %v1224, %v1231
        %v1236 = vadd.f32 %v1225, %v1231
        %vm1237 = vcmp.gt.f32.partialorder %v1233, 0.0
        %vm1238 = vcmp.gt.f32.partialorder %v1234, 0.0
        %vm1239 = vcmp.gt.f32.partialorder %v1235, 0.0
        %vm1240 = vcmp.gt.f32.partialorder %v1236, 0.0
        %v1241 = vstv %s730
        %v1242 = vmul.f32 %v1241, %v1233
        %v1243 = vmul.f32 %v1241, %v1234
        %v1244 = vmul.f32 %v1241, %v1235
        %v1245 = vmul.f32 %v1241, %v1236
        %v1246 = vsel %vm1237, %v1233, %v1242
        %v1247 = vsel %vm1238, %v1234, %v1243
        %v1248 = vsel %vm1239, %v1235, %v1244
        %v1249 = vsel %vm1240, %v1236, %v1245
        %v1250 = vld [vmem:[%s686] sm:$0xff]
        %v1251 = vld [vmem:[%s686 + $0x8] sm:$0xff]
        %v1252 = vld [vmem:[%s686 + $0x10] sm:$0xff]
        %v1253 = vld [vmem:[%s686 + $0x18] sm:$0xff]
        %v1254 = vld [vmem:[%s686 + $0x20] sm:$0xff]
        %v1255 = vld [vmem:[%s686 + $0x28] sm:$0xff]
        %v1256 = vld [vmem:[%s686 + $0x30] sm:$0xff]
        %v1257 = vld [vmem:[%s686 + $0x38] sm:$0xff]
        %v1258 = vld [vmem:[%s686 + $0x40] sm:$0xff]
        %v1259 = vld [vmem:[%s686 + $0x48] sm:$0xff]
        %v1260 = vld [vmem:[%s686 + $0x50] sm:$0xff]
        %v1261 = vld [vmem:[%s686 + $0x58] sm:$0xff]
        %v1262 = vld [vmem:[%s686 + $0x60] sm:$0xff]
        %v1263 = vld [vmem:[%s686 + $0x68] sm:$0xff]
        %v1264 = vld [vmem:[%s686 + $0x70] sm:$0xff]
        %v1265 = vld [vmem:[%s686 + $0x78] sm:$0xff]
        %1266 = vmatprep.subr.mxu0 0.0
        %1267 = vmatpush1.msra.mxu0 %v1265
        %1268 = vmatprep.subr.mxu0 0.0
        %1269 = vmatpush1.msra.mxu0 %v1264
        %1270 = vmatprep.subr.mxu0 0.0
        %1271 = vmatpush1.msra.mxu0 %v1263
        %1272 = vmatprep.subr.mxu0 0.0
        %1273 = vmatpush1.msra.mxu0 %v1262
        %1274 = vmatprep.subr.mxu0 0.0
        %1275 = vmatpush1.msra.mxu0 %v1261
        %1276 = vmatprep.subr.mxu0 0.0
        %1277 = vmatpush1.msra.mxu0 %v1260
        %1278 = vmatprep.subr.mxu0 0.0
        %1279 = vmatpush1.msra.mxu0 %v1259
        %1280 = vmatprep.subr.mxu0 0.0
        %1281 = vmatpush1.msra.mxu0 %v1258
        %1282 = vmatprep.subr.mxu0 0.0
        %1283 = vmatpush1.msra.mxu0 %v1257
        %1284 = vmatprep.subr.mxu0 0.0
        %1285 = vmatpush1.msra.mxu0 %v1256
        %1286 = vmatprep.subr.mxu0 0.0
        %1287 = vmatpush1.msra.mxu0 %v1255
        %1288 = vmatprep.subr.mxu0 0.0
        %1289 = vmatpush1.msra.mxu0 %v1254
        %1290 = vmatprep.subr.mxu0 0.0
        %1291 = vmatpush1.msra.mxu0 %v1253
        %1292 = vmatprep.subr.mxu0 0.0
        %1293 = vmatpush1.msra.mxu0 %v1252
        %1294 = vmatprep.subr.mxu0 0.0
        %1295 = vmatpush1.msra.mxu0 %v1251
        %1296 = vmatprep.subr.mxu0 0.0
        %1297 = vmatpush1.msra.mxu0 %v1250
        %1298 = vmatprep.subr.mxu0 0.0
        %1299 = vmatpush2.msra.mxu0 0.0
        %1300 = vmatprep.subr.mxu0 0.0
        %1301 = vmatpush2.msra.mxu0 0.0
        %1302 = vmatprep.subr.mxu0 0.0
        %1303 = vmatpush2.msra.mxu0 0.0
        %1304 = vmatprep.subr.mxu0 0.0
        %1305 = vmatpush2.msra.mxu0 0.0
        %1306 = vmatprep.subr.mxu0 0.0
        %1307 = vmatpush2.msra.mxu0 0.0
        %1308 = vmatprep.subr.mxu0 0.0
        %1309 = vmatpush2.msra.mxu0 0.0
        %1310 = vmatprep.subr.mxu0 0.0
        %1311 = vmatpush2.msra.mxu0 0.0
        %1312 = vmatprep.subr.mxu0 0.0
        %1313 = vmatpush2.msra.mxu0 0.0
        %1314 = vmatprep.subr.mxu0 0.0
        %1315 = vmatpush2.msra.mxu0 0.0
        %1316 = vmatprep.subr.mxu0 0.0
        %1317 = vmatpush2.msra.mxu0 0.0
        %1318 = vmatprep.subr.mxu0 0.0
        %1319 = vmatpush2.msra.mxu0 0.0
        %1320 = vmatprep.subr.mxu0 0.0
        %1321 = vmatpush2.msra.mxu0 0.0
        %1322 = vmatprep.subr.mxu0 0.0
        %1323 = vmatpush2.msra.mxu0 0.0
        %1324 = vmatprep.subr.mxu0 0.0
        %1325 = vmatpush2.msra.mxu0 0.0
        %1326 = vmatprep.subr.mxu0 0.0
        %1327 = vmatpush2.msra.mxu0 0.0
        %1328 = vmatprep.subr.mxu0 0.0
        %1329 = vmatpush2.msra.mxu0 0.0
        %1330 = vmatprep.mubr.f32.mxu0 0.0
        %1331 = vmatmul.mubr.f32.gmra.mxu0 %v1246
        %v1332 = vpop.f32.mrf.mxu0
        %v1333 = vadd.f32 0.0, %v1332
        %v1334 = vpop.f32.mrf.mxu0
        %1335 = vmatprep.mubr.f32.mxu0 0.0
        %1336 = vmatmul.mubr.f32.gmra.mxu0 %v1247
        %v1337 = vpop.f32.mrf.mxu0
        %v1338 = vadd.f32 0.0, %v1337
        %v1339 = vpop.f32.mrf.mxu0
        %1340 = vmatprep.mubr.f32.mxu0 0.0
        %1341 = vmatmul.mubr.f32.gmra.mxu0 %v1248
        %v1342 = vpop.f32.mrf.mxu0
        %v1343 = vadd.f32 0.0, %v1342
        %v1344 = vpop.f32.mrf.mxu0
        %1345 = vmatprep.mubr.f32.mxu0 0.0
        %1346 = vmatmul.mubr.f32.gmra.mxu0 %v1249
        %v1347 = vpop.f32.mrf.mxu0
        %v1348 = vadd.f32 0.0, %v1347
        %v1349 = vpop.f32.mrf.mxu0
        %1350 = vdwg.mxu0
        %v1351 = vtanh.pop %v1333
        %v1352 = vtanh.pop %v1338
        %v1353 = vtanh.pop %v1343
        %v1354 = vtanh.pop %v1348
        %s1355 = sld [smem:[#allocation7 + %s43]]
        %s1356 = scvt.s32.f32 %s1355
        %vm1357 = vcmp.gt.f32.partialorder %v725, 0.0
        %vm1358 = vcmp.gt.f32.partialorder %v726, 0.0
        %vm1359 = vcmp.gt.f32.partialorder %v727, 0.0
        %vm1360 = vcmp.gt.f32.partialorder %v728, 0.0
        %v1361 = vsel %vm1357, %v1351, -1e+30
        %v1362 = vsel %vm1358, %v1352, -1e+30
        %v1363 = vsel %vm1359, %v1353, -1e+30
        %v1364 = vsel %vm1360, %v1354, -1e+30
        %1365 = vxpose.xlu0.b32.start [1/16] %v1361, 128
        %1366 = vxpose.xlu0.b32.cont [2/16] %v1362, 128
        %1367 = vxpose.xlu0.b32.cont [3/16] 0.0, 128
        %1368 = vxpose.xlu0.b32.cont [4/16] 0.0, 128
        %1369 = vxpose.xlu0.b32.cont [5/16] 0.0, 128
        %1370 = vxpose.xlu0.b32.cont [6/16] 0.0, 128
        %1371 = vxpose.xlu0.b32.cont [7/16] 0.0, 128
        %1372 = vxpose.xlu0.b32.cont [8/16] 0.0, 128
        %1373 = vxpose.xlu0.b32.cont [9/16] 0.0, 128
        %1374 = vxpose.xlu0.b32.cont [10/16] 0.0, 128
        %1375 = vxpose.xlu0.b32.cont [11/16] 0.0, 128
        %1376 = vxpose.xlu0.b32.cont [12/16] 0.0, 128
        %1377 = vxpose.xlu0.b32.cont [13/16] 0.0, 128
        %1378 = vxpose.xlu0.b32.cont [14/16] 0.0, 128
        %1379 = vxpose.xlu0.b32.cont [15/16] 0.0, 128
        %1380 = vxpose.xlu0.b32.end [16/16] 0.0, 128
        %v1381 = vpop.trf.xlu0
        %v1382 = vpop.trf.xlu0
        %v1383 = vpop.trf.xlu0
        %v1384 = vpop.trf.xlu0
        %v1385 = vpop.trf.xlu0
        %v1386 = vpop.trf.xlu0
        %v1387 = vpop.trf.xlu0
        %v1388 = vpop.trf.xlu0
        %v1389 = vpop.trf.xlu0
        %v1390 = vpop.trf.xlu0
        %v1391 = vpop.trf.xlu0
        %v1392 = vpop.trf.xlu0
        %v1393 = vpop.trf.xlu0
        %v1394 = vpop.trf.xlu0
        %v1395 = vpop.trf.xlu0
        %v1396 = vpop.trf.xlu0
        %1397 = vxpose.xlu0.b32.start [1/16] %v1363, 128
        %1398 = vxpose.xlu0.b32.cont [2/16] %v1364, 128
        %1399 = vxpose.xlu0.b32.cont [3/16] 0.0, 128
        %1400 = vxpose.xlu0.b32.cont [4/16] 0.0, 128
        %1401 = vxpose.xlu0.b32.cont [5/16] 0.0, 128
        %1402 = vxpose.xlu0.b32.cont [6/16] 0.0, 128
        %1403 = vxpose.xlu0.b32.cont [7/16] 0.0, 128
        %1404 = vxpose.xlu0.b32.cont [8/16] 0.0, 128
        %1405 = vxpose.xlu0.b32.cont [9/16] 0.0, 128
        %1406 = vxpose.xlu0.b32.cont [10/16] 0.0, 128
        %1407 = vxpose.xlu0.b32.cont [11/16] 0.0, 128
        %1408 = vxpose.xlu0.b32.cont [12/16] 0.0, 128
        %1409 = vxpose.xlu0.b32.cont [13/16] 0.0, 128
        %1410 = vxpose.xlu0.b32.cont [14/16] 0.0, 128
        %1411 = vxpose.xlu0.b32.cont [15/16] 0.0, 128
        %1412 = vxpose.xlu0.b32.end [16/16] 0.0, 128
        %v1413 = vpop.trf.xlu0
        %v1414 = vpop.trf.xlu0
        %v1415 = vpop.trf.xlu0
        %v1416 = vpop.trf.xlu0
        %v1417 = vpop.trf.xlu0
        %v1418 = vpop.trf.xlu0
        %v1419 = vpop.trf.xlu0
        %v1420 = vpop.trf.xlu0
        %v1421 = vpop.trf.xlu0
        %v1422 = vpop.trf.xlu0
        %v1423 = vpop.trf.xlu0
        %v1424 = vpop.trf.xlu0
        %v1425 = vpop.trf.xlu0
        %v1426 = vpop.trf.xlu0
        %v1427 = vpop.trf.xlu0
        %v1428 = vpop.trf.xlu0
        %v1429 = vlaneseq
        %v1430 = vshrl.u32 %v1429, 7
        %v1431 = vadd.s32 %v1430, 8
        %v1432 = vlaneseq
        %v1433 = vand.u32 %v1432, 127
        %v1434 = vlaneseq
        %v1435 = vshrl.u32 %v1434, 7
        %v1436 = vsub.s32 0, %v1435
        %v1437 = vrot.slane %v1381, %v1436
        %v1438 = vlaneseq
        %v1439 = vshrl.u32 %v1438, 7
        %v1440 = vsub.s32 0, %v1439
        %v1441 = vrot.slane %v1413, %v1440
        %1443 = vset.pattern.permute.xlu0 0
        %1444 = vperm.xlu0 %1443, %v1361
        %v1445 = vpop.permute.xlu0 %1444
        %1448 = vset.pattern.permute.xlu0 0
        %1449 = vperm.xlu0 %1448, %v1362
        %v1450 = vpop.permute.xlu0 %1449
        %1453 = vset.pattern.permute.xlu0 0
        %1454 = vperm.xlu0 %1453, %v1363
        %v1455 = vpop.permute.xlu0 %1454
        %1458 = vset.pattern.permute.xlu0 0
        %1459 = vperm.xlu0 %1458, %v1364
        %v1460 = vpop.permute.xlu0 %1459
        %vm1462 = vcmp.gt.f32.partialorder %v1437, %v1445
        %vm1463 = vcmp.gt.f32.partialorder %v1437, %v1450
        %vm1464 = vcmp.gt.f32.partialorder %v1441, %v1455
        %vm1465 = vcmp.gt.f32.partialorder %v1441, %v1460
        %vm1466 = vcmp.eq.f32.partialorder %v1437, %v1445
        %vm1467 = vcmp.eq.f32.partialorder %v1437, %v1450
        %vm1468 = vcmp.eq.f32.partialorder %v1441, %v1455
        %vm1469 = vcmp.eq.f32.partialorder %v1441, %v1460
        %vm1470 = vcmp.lt.s32.totalorder %v1433, %v1430
        %vm1471 = vcmp.lt.s32.totalorder %v1433, %v1431
        %vm1472 = vmand %vm1466, %vm1470
        %vm1473 = vmand %vm1467, %vm1471
        %vm1474 = vmand %vm1468, %vm1470
        %vm1475 = vmand %vm1469, %vm1471
        %vm1476 = vmor %vm1462, %vm1472
        %vm1477 = vmor %vm1463, %vm1473
        %vm1478 = vmor %vm1464, %vm1474
        %vm1479 = vmor %vm1465, %vm1475
        %v1480 = vsel %vm1476, 1, 0
        %v1481 = vsel %vm1477, 1, 0
        %v1482 = vsel %vm1478, 1, 0
        %v1483 = vsel %vm1479, 1, 0
        %v1484 = vcvt.s32.f32 %v1480
        %v1485 = vcvt.s32.f32 %v1481
        %v1486 = vcvt.s32.f32 %v1482
        %v1487 = vcvt.s32.f32 %v1483
        %v1488 = vsel %vm731, %v1484, 0.0
        %1489 = vadd.xlane.f32.xlu0 %v1488
        %v1490 = vpop.xlane.xlu0 %1489
        %v1491 = vsel %vm731, %v1485, 0.0
        %1492 = vadd.xlane.f32.xlu0 %v1491
        %v1493 = vpop.xlane.xlu0 %1492
        %v1494 = vsel %vm731, %v1486, 0.0
        %1495 = vadd.xlane.f32.xlu0 %v1494
        %v1496 = vpop.xlane.xlu0 %1495
        %v1497 = vsel %vm731, %v1487, 0.0
        %1498 = vadd.xlane.f32.xlu0 %v1497
        %v1499 = vpop.xlane.xlu0 %1498
        %v1500 = vstv %s1356
        %vm1501 = vcmp.lt.f32.partialorder %v1490, %v1500
        %vm1502 = vcmp.lt.f32.partialorder %v1493, %v1500
        %vm1503 = vcmp.lt.f32.partialorder %v1496, %v1500
        %vm1504 = vcmp.lt.f32.partialorder %v1499, %v1500
        %vm1505 = vmand %vm1501, %vm1357
        %vm1506 = vmand %vm1502, %vm1358
        %vm1507 = vmand %vm1503, %vm1359
        %vm1508 = vmand %vm1504, %vm1360
        %v1509 = vsel %vm1505, 1.0, 0.0
        %v1510 = vsel %vm1506, 1.0, 0.0
        %v1511 = vsel %vm1507, 1.0, 0.0
        %v1512 = vsel %vm1508, 1.0, 0.0
        %1514 = vset.pattern.permute.xlu0 0
        %1515 = vperm.xlu0 %1514, %v1351
        %v1516 = vpop.permute.xlu0 %1515
        %1519 = vset.pattern.permute.xlu0 0
        %1520 = vperm.xlu0 %1519, %v1352
        %v1521 = vpop.permute.xlu0 %1520
        %1524 = vset.pattern.permute.xlu0 0
        %1525 = vperm.xlu0 %1524, %v1353
        %v1526 = vpop.permute.xlu0 %1525
        %1529 = vset.pattern.permute.xlu0 0
        %1530 = vperm.xlu0 %1529, %v1354
        %v1531 = vpop.permute.xlu0 %1530
        %v1533 = vmul.f32 %v1246, %v1516
        %v1534 = vmul.f32 %v1247, %v1521
        %v1535 = vmul.f32 %v1248, %v1526
        %v1536 = vmul.f32 %v1249, %v1531
        %1538 = vset.pattern.permute.xlu0 0
        %1539 = vperm.xlu0 %1538, %v1509
        %v1540 = vpop.permute.xlu0 %1539
        %1543 = vset.pattern.permute.xlu0 0
        %1544 = vperm.xlu0 %1543, %v1510
        %v1545 = vpop.permute.xlu0 %1544
        %1548 = vset.pattern.permute.xlu0 0
        %1549 = vperm.xlu0 %1548, %v1511
        %v1550 = vpop.permute.xlu0 %1549
        %1553 = vset.pattern.permute.xlu0 0
        %1554 = vperm.xlu0 %1553, %v1512
        %v1555 = vpop.permute.xlu0 %1554
        %v1557 = vmul.f32 %v1533, %v1540
        %v1558 = vmul.f32 %v1534, %v1545
        %v1559 = vmul.f32 %v1535, %v1550
        %v1560 = vmul.f32 %v1536, %v1555
        %vm1561 = vcmp.gt.f32.partialorder %v1509, 0.0
        %vm1562 = vcmp.gt.f32.partialorder %v1510, 0.0
        %vm1563 = vcmp.gt.f32.partialorder %v1511, 0.0
        %vm1564 = vcmp.gt.f32.partialorder %v1512, 0.0
        %v1565 = vsel %vm1561, 1, 0
        %v1566 = vsel %vm1562, 1, 0
        %v1567 = vsel %vm1563, 1, 0
        %v1568 = vsel %vm1564, 1, 0
        %1569 = vset.pattern.permute.xlu0 0
        %1570 = vperm.xlu0 %1569, %v1565
        %v1571 = vpop.permute.xlu0 %1570
        %1572 = vset.pattern.permute.xlu0 0
        %1573 = vperm.xlu0 %1572, %v1566
        %v1574 = vpop.permute.xlu0 %1573
        %1575 = vset.pattern.permute.xlu0 0
        %1576 = vperm.xlu0 %1575, %v1567
        %v1577 = vpop.permute.xlu0 %1576
        %1578 = vset.pattern.permute.xlu0 0
        %1579 = vperm.xlu0 %1578, %v1568
        %v1580 = vpop.permute.xlu0 %1579
        %vm1581 = vcmp.eq.s32.totalorder %v1571, 1
        %vm1582 = vcmp.eq.s32.totalorder %v1574, 1
        %vm1583 = vcmp.eq.s32.totalorder %v1577, 1
        %vm1584 = vcmp.eq.s32.totalorder %v1580, 1
        %v1585 = vsel %vm1581, %v1557, -1e+30
        %v1586 = vsel %vm1582, %v1558, -1e+30
        %v1587 = vsel %vm1583, %v1559, -1e+30
        %v1588 = vsel %vm1584, %v1560, -1e+30
        %v1589 = vmax.f32 %v1585, %v1586
        %v1590 = vrot.slane %v1589, 4
        %v1591 = vmax.f32 %v1589, %v1590
        %v1592 = vrot.slane %v1591, 2
        %v1593 = vmax.f32 %v1591, %v1592
        %v1594 = vrot.slane %v1593, 1
        %v1595 = vmax.f32 %v1593, %v1594
        %v1596 = vmax.f32 %v1587, %v1588
        %v1597 = vrot.slane %v1596, 4
        %v1598 = vmax.f32 %v1596, %v1597
        %v1599 = vrot.slane %v1598, 2
        %v1600 = vmax.f32 %v1598, %v1599
        %v1601 = vrot.slane %v1600, 1
        %v1602 = vmax.f32 %v1600, %v1601
        %v1603 = vadd.f32 %v1557, %v1558
        %v1604 = vrot.slane %v1603, 4
        %v1605 = vadd.f32 %v1603, %v1604
        %v1606 = vrot.slane %v1605, 2
        %v1607 = vadd.f32 %v1605, %v1606
        %v1608 = vrot.slane %v1607, 1
        %v1609 = vadd.f32 %v1607, %v1608
        %v1610 = vadd.f32 %v1559, %v1560
        %v1611 = vrot.slane %v1610, 4
        %v1612 = vadd.f32 %v1610, %v1611
        %v1613 = vrot.slane %v1612, 2
        %v1614 = vadd.f32 %v1612, %v1613
        %v1615 = vrot.slane %v1614, 1
        %v1616 = vadd.f32 %v1614, %v1615
        %v1617 = vrcp.pop %v1500
        %v1618 = vmul.f32 %v1609, %v1617
        %v1619 = vmul.f32 %v1616, %v1617
        %vm1622 = vcmask 1041409
        %v1623 = vsel %vm1622, %v1602, %v1595
        %v1627 = vsel %vm1622, %v1619, %v1618
        %v1629 = vld [vmem:[#allocation5] sm:$0xff]
        %v1630 = vld [vmem:[#allocation5 + $0x8] sm:$0xff]
        %v1631 = vld [vmem:[#allocation5 + $0x10] sm:$0xf]
        %v1632 = vpack.c.bf16 %v1623, %v1623
        %v1633 = vpack.c.bf16 %v1627, %v1627
        %v1634 = vld [vmem:[%s609] sm:$0xff]
        %v1635 = vld [vmem:[%s609 + $0x8] sm:$0xff]
        %v1636 = vld [vmem:[%s609 + $0x10] sm:$0xff]
        %v1637 = vld [vmem:[%s609 + $0x18] sm:$0xff]
        %v1638 = vld [vmem:[%s609 + $0x20] sm:$0xff]
        %v1639 = vld [vmem:[%s609 + $0x28] sm:$0xff]
        %v1640 = vld [vmem:[%s609 + $0x30] sm:$0xff]
        %v1641 = vld [vmem:[%s609 + $0x38] sm:$0xff]
        %v1642 = vld [vmem:[%s609 + $0x40] sm:$0xff]
        %v1643 = vld [vmem:[%s609 + $0x48] sm:$0xff]
        %v1644 = vld [vmem:[%s609 + $0x50] sm:$0xff]
        %v1645 = vld [vmem:[%s609 + $0x58] sm:$0xff]
        %v1646 = vld [vmem:[%s609 + $0x60] sm:$0xff]
        %v1647 = vld [vmem:[%s609 + $0x68] sm:$0xff]
        %v1648 = vld [vmem:[%s609 + $0x70] sm:$0xff]
        %v1649 = vld [vmem:[%s609 + $0x78] sm:$0xff]
        %v1650 = vld [vmem:[%s609 + $0x80] sm:$0xff]
        %v1651 = vld [vmem:[%s609 + $0x88] sm:$0xff]
        %v1652 = vld [vmem:[%s609 + $0x90] sm:$0xff]
        %v1653 = vld [vmem:[%s609 + $0x98] sm:$0xff]
        %v1654 = vld [vmem:[%s609 + $0xa0] sm:$0xff]
        %v1655 = vld [vmem:[%s609 + $0xa8] sm:$0xff]
        %v1656 = vld [vmem:[%s609 + $0xb0] sm:$0xff]
        %v1657 = vld [vmem:[%s609 + $0xb8] sm:$0xff]
        %v1658 = vld [vmem:[%s609 + $0xc0] sm:$0xff]
        %v1659 = vld [vmem:[%s609 + $0xc8] sm:$0xff]
        %v1660 = vld [vmem:[%s609 + $0xd0] sm:$0xff]
        %v1661 = vld [vmem:[%s609 + $0xd8] sm:$0xff]
        %v1662 = vld [vmem:[%s609 + $0xe0] sm:$0xff]
        %v1663 = vld [vmem:[%s609 + $0xe8] sm:$0xff]
        %v1664 = vld [vmem:[%s609 + $0xf0] sm:$0xff]
        %v1665 = vld [vmem:[%s609 + $0xf8] sm:$0xff]
        %v1666 = vld [vmem:[%s609 + $0x100] sm:$0xff]
        %v1667 = vld [vmem:[%s609 + $0x108] sm:$0xff]
        %v1668 = vld [vmem:[%s609 + $0x110] sm:$0xff]
        %v1669 = vld [vmem:[%s609 + $0x118] sm:$0xff]
        %v1670 = vld [vmem:[%s609 + $0x120] sm:$0xff]
        %v1671 = vld [vmem:[%s609 + $0x128] sm:$0xff]
        %v1672 = vld [vmem:[%s609 + $0x130] sm:$0xff]
        %v1673 = vld [vmem:[%s609 + $0x138] sm:$0xff]
        %v1674 = vld [vmem:[%s609 + $0x140] sm:$0xff]
        %v1675 = vld [vmem:[%s609 + $0x148] sm:$0xff]
        %v1676 = vld [vmem:[%s609 + $0x150] sm:$0xff]
        %v1677 = vld [vmem:[%s609 + $0x158] sm:$0xff]
        %v1678 = vld [vmem:[%s609 + $0x160] sm:$0xff]
        %v1679 = vld [vmem:[%s609 + $0x168] sm:$0xff]
        %v1680 = vld [vmem:[%s609 + $0x170] sm:$0xff]
        %v1681 = vld [vmem:[%s609 + $0x178] sm:$0xff]
        %v1682 = vld [vmem:[%s609 + $0x180] sm:$0xff]
        %v1683 = vld [vmem:[%s609 + $0x188] sm:$0xff]
        %v1684 = vld [vmem:[%s609 + $0x190] sm:$0xff]
        %v1685 = vld [vmem:[%s609 + $0x198] sm:$0xff]
        %v1686 = vld [vmem:[%s609 + $0x1a0] sm:$0xff]
        %v1687 = vld [vmem:[%s609 + $0x1a8] sm:$0xff]
        %v1688 = vld [vmem:[%s609 + $0x1b0] sm:$0xff]
        %v1689 = vld [vmem:[%s609 + $0x1b8] sm:$0xff]
        %v1690 = vld [vmem:[%s609 + $0x1c0] sm:$0xff]
        %v1691 = vld [vmem:[%s609 + $0x1c8] sm:$0xff]
        %v1692 = vld [vmem:[%s609 + $0x1d0] sm:$0xff]
        %v1693 = vld [vmem:[%s609 + $0x1d8] sm:$0xff]
        %v1694 = vld [vmem:[%s609 + $0x1e0] sm:$0xff]
        %v1695 = vld [vmem:[%s609 + $0x1e8] sm:$0xff]
        %v1696 = vld [vmem:[%s609 + $0x1f0] sm:$0xff]
        %v1697 = vld [vmem:[%s609 + $0x1f8] sm:$0xff]
        %v1698 = vld [vmem:[%s609 + $0x200] sm:$0xff]
        %v1699 = vld [vmem:[%s609 + $0x208] sm:$0xff]
        %v1700 = vld [vmem:[%s609 + $0x210] sm:$0xff]
        %v1701 = vld [vmem:[%s609 + $0x218] sm:$0xff]
        %v1702 = vld [vmem:[%s609 + $0x220] sm:$0xff]
        %v1703 = vld [vmem:[%s609 + $0x228] sm:$0xff]
        %v1704 = vld [vmem:[%s609 + $0x230] sm:$0xff]
        %v1705 = vld [vmem:[%s609 + $0x238] sm:$0xff]
        %v1706 = vld [vmem:[%s609 + $0x240] sm:$0xff]
        %v1707 = vld [vmem:[%s609 + $0x248] sm:$0xff]
        %v1708 = vld [vmem:[%s609 + $0x250] sm:$0xff]
        %v1709 = vld [vmem:[%s609 + $0x258] sm:$0xff]
        %v1710 = vld [vmem:[%s609 + $0x260] sm:$0xff]
        %v1711 = vld [vmem:[%s609 + $0x268] sm:$0xff]
        %v1712 = vld [vmem:[%s609 + $0x270] sm:$0xff]
        %v1713 = vld [vmem:[%s609 + $0x278] sm:$0xff]
        %v1714 = vld [vmem:[%s609 + $0x280] sm:$0xff]
        %v1715 = vld [vmem:[%s609 + $0x288] sm:$0xff]
        %v1716 = vld [vmem:[%s609 + $0x290] sm:$0xff]
        %v1717 = vld [vmem:[%s609 + $0x298] sm:$0xff]
        %v1718 = vld [vmem:[%s609 + $0x2a0] sm:$0xff]
        %v1719 = vld [vmem:[%s609 + $0x2a8] sm:$0xff]
        %v1720 = vld [vmem:[%s609 + $0x2b0] sm:$0xff]
        %v1721 = vld [vmem:[%s609 + $0x2b8] sm:$0xff]
        %v1722 = vld [vmem:[%s609 + $0x2c0] sm:$0xff]
        %v1723 = vld [vmem:[%s609 + $0x2c8] sm:$0xff]
        %v1724 = vld [vmem:[%s609 + $0x2d0] sm:$0xff]
        %v1725 = vld [vmem:[%s609 + $0x2d8] sm:$0xff]
        %v1726 = vld [vmem:[%s609 + $0x2e0] sm:$0xff]
        %v1727 = vld [vmem:[%s609 + $0x2e8] sm:$0xff]
        %v1728 = vld [vmem:[%s609 + $0x2f0] sm:$0xff]
        %v1729 = vld [vmem:[%s609 + $0x2f8] sm:$0xff]
        %v1730 = vld [vmem:[%s609 + $0x300] sm:$0xff]
        %v1731 = vld [vmem:[%s609 + $0x308] sm:$0xff]
        %v1732 = vld [vmem:[%s609 + $0x310] sm:$0xff]
        %v1733 = vld [vmem:[%s609 + $0x318] sm:$0xff]
        %v1734 = vld [vmem:[%s609 + $0x320] sm:$0xff]
        %v1735 = vld [vmem:[%s609 + $0x328] sm:$0xff]
        %v1736 = vld [vmem:[%s609 + $0x330] sm:$0xff]
        %v1737 = vld [vmem:[%s609 + $0x338] sm:$0xff]
        %v1738 = vld [vmem:[%s609 + $0x340] sm:$0xff]
        %v1739 = vld [vmem:[%s609 + $0x348] sm:$0xff]
        %v1740 = vld [vmem:[%s609 + $0x350] sm:$0xff]
        %v1741 = vld [vmem:[%s609 + $0x358] sm:$0xff]
        %v1742 = vld [vmem:[%s609 + $0x360] sm:$0xff]
        %v1743 = vld [vmem:[%s609 + $0x368] sm:$0xff]
        %v1744 = vld [vmem:[%s609 + $0x370] sm:$0xff]
        %v1745 = vld [vmem:[%s609 + $0x378] sm:$0xff]
        %v1746 = vld [vmem:[%s609 + $0x380] sm:$0xff]
        %v1747 = vld [vmem:[%s609 + $0x388] sm:$0xff]
        %v1748 = vld [vmem:[%s609 + $0x390] sm:$0xff]
        %v1749 = vld [vmem:[%s609 + $0x398] sm:$0xff]
        %v1750 = vld [vmem:[%s609 + $0x3a0] sm:$0xff]
        %v1751 = vld [vmem:[%s609 + $0x3a8] sm:$0xff]
        %v1752 = vld [vmem:[%s609 + $0x3b0] sm:$0xff]
        %v1753 = vld [vmem:[%s609 + $0x3b8] sm:$0xff]
        %v1754 = vld [vmem:[%s609 + $0x3c0] sm:$0xff]
        %v1755 = vld [vmem:[%s609 + $0x3c8] sm:$0xff]
        %v1756 = vld [vmem:[%s609 + $0x3d0] sm:$0xff]
        %v1757 = vld [vmem:[%s609 + $0x3d8] sm:$0xff]
        %v1758 = vld [vmem:[%s609 + $0x3e0] sm:$0xff]
        %v1759 = vld [vmem:[%s609 + $0x3e8] sm:$0xff]
        %v1760 = vld [vmem:[%s609 + $0x3f0] sm:$0xff]
        %v1761 = vld [vmem:[%s609 + $0x3f8] sm:$0xff]
        %v1762 = vld [vmem:[%s609 + $0x400] sm:$0xff]
        %v1763 = vld [vmem:[%s609 + $0x408] sm:$0xff]
        %v1764 = vld [vmem:[%s609 + $0x410] sm:$0xff]
        %v1765 = vld [vmem:[%s609 + $0x418] sm:$0xff]
        %v1766 = vld [vmem:[%s609 + $0x420] sm:$0xff]
        %v1767 = vld [vmem:[%s609 + $0x428] sm:$0xff]
        %v1768 = vld [vmem:[%s609 + $0x430] sm:$0xff]
        %v1769 = vld [vmem:[%s609 + $0x438] sm:$0xff]
        %v1770 = vld [vmem:[%s609 + $0x440] sm:$0xff]
        %v1771 = vld [vmem:[%s609 + $0x448] sm:$0xff]
        %v1772 = vld [vmem:[%s609 + $0x450] sm:$0xff]
        %v1773 = vld [vmem:[%s609 + $0x458] sm:$0xff]
        %v1774 = vld [vmem:[%s609 + $0x460] sm:$0xff]
        %v1775 = vld [vmem:[%s609 + $0x468] sm:$0xff]
        %v1776 = vld [vmem:[%s609 + $0x470] sm:$0xff]
        %v1777 = vld [vmem:[%s609 + $0x478] sm:$0xff]
        %v1778 = vld [vmem:[%s609 + $0x480] sm:$0xff]
        %v1779 = vld [vmem:[%s609 + $0x488] sm:$0xff]
        %v1780 = vld [vmem:[%s609 + $0x490] sm:$0xff]
        %v1781 = vld [vmem:[%s609 + $0x498] sm:$0xff]
        %v1782 = vld [vmem:[%s609 + $0x4a0] sm:$0xff]
        %v1783 = vld [vmem:[%s609 + $0x4a8] sm:$0xff]
        %v1784 = vld [vmem:[%s609 + $0x4b0] sm:$0xff]
        %v1785 = vld [vmem:[%s609 + $0x4b8] sm:$0xff]
        %v1786 = vld [vmem:[%s609 + $0x4c0] sm:$0xff]
        %v1787 = vld [vmem:[%s609 + $0x4c8] sm:$0xff]
        %v1788 = vld [vmem:[%s609 + $0x4d0] sm:$0xff]
        %v1789 = vld [vmem:[%s609 + $0x4d8] sm:$0xff]
        %v1790 = vld [vmem:[%s609 + $0x4e0] sm:$0xff]
        %v1791 = vld [vmem:[%s609 + $0x4e8] sm:$0xff]
        %v1792 = vld [vmem:[%s609 + $0x4f0] sm:$0xff]
        %v1793 = vld [vmem:[%s609 + $0x4f8] sm:$0xff]
        %v1954 = vunpack.c.l.b16 %v1634
        %v1955 = vunpack.c.h.b16 %v1634
        %v1956 = vunpack.c.l.b16 %v1635
        %v1957 = vunpack.c.h.b16 %v1635
        %v1958 = vunpack.c.l.b16 %v1636
        %v1959 = vunpack.c.h.b16 %v1636
        %v1960 = vunpack.c.l.b16 %v1637
        %v1961 = vunpack.c.h.b16 %v1637
        %v1962 = vunpack.c.l.b16 %v1638
        %v1963 = vunpack.c.h.b16 %v1638
        %v1964 = vunpack.c.l.b16 %v1639
        %v1965 = vunpack.c.h.b16 %v1639
        %v1966 = vunpack.c.l.b16 %v1640
        %v1967 = vunpack.c.h.b16 %v1640
        %v1968 = vunpack.c.l.b16 %v1641
        %v1969 = vunpack.c.h.b16 %v1641
        %v1970 = vunpack.c.l.b16 %v1642
        %v1971 = vunpack.c.h.b16 %v1642
        %v1972 = vunpack.c.l.b16 %v1643
        %v1973 = vunpack.c.h.b16 %v1643
        %v1974 = vunpack.c.l.b16 %v1644
        %v1975 = vunpack.c.h.b16 %v1644
        %v1976 = vunpack.c.l.b16 %v1645
        %v1977 = vunpack.c.h.b16 %v1645
        %v1978 = vunpack.c.l.b16 %v1646
        %v1979 = vunpack.c.h.b16 %v1646
        %v1980 = vunpack.c.l.b16 %v1647
        %v1981 = vunpack.c.h.b16 %v1647
        %v1982 = vunpack.c.l.b16 %v1648
        %v1983 = vunpack.c.h.b16 %v1648
        %v1984 = vunpack.c.l.b16 %v1649
        %v1985 = vunpack.c.h.b16 %v1649
        %v1986 = vunpack.c.l.b16 %v1650
        %v1987 = vunpack.c.h.b16 %v1650
        %v1988 = vunpack.c.l.b16 %v1651
        %v1989 = vunpack.c.h.b16 %v1651
        %v1990 = vunpack.c.l.b16 %v1652
        %v1991 = vunpack.c.h.b16 %v1652
        %v1992 = vunpack.c.l.b16 %v1653
        %v1993 = vunpack.c.h.b16 %v1653
        %v1994 = vunpack.c.l.b16 %v1654
        %v1995 = vunpack.c.h.b16 %v1654
        %v1996 = vunpack.c.l.b16 %v1655
        %v1997 = vunpack.c.h.b16 %v1655
        %v1998 = vunpack.c.l.b16 %v1656
        %v1999 = vunpack.c.h.b16 %v1656
        %v2000 = vunpack.c.l.b16 %v1657
        %v2001 = vunpack.c.h.b16 %v1657
        %v2002 = vunpack.c.l.b16 %v1658
        %v2003 = vunpack.c.h.b16 %v1658
        %v2004 = vunpack.c.l.b16 %v1659
        %v2005 = vunpack.c.h.b16 %v1659
        %v2006 = vunpack.c.l.b16 %v1660
        %v2007 = vunpack.c.h.b16 %v1660
        %v2008 = vunpack.c.l.b16 %v1661
        %v2009 = vunpack.c.h.b16 %v1661
        %v2010 = vunpack.c.l.b16 %v1662
        %v2011 = vunpack.c.h.b16 %v1662
        %v2012 = vunpack.c.l.b16 %v1663
        %v2013 = vunpack.c.h.b16 %v1663
        %v2014 = vunpack.c.l.b16 %v1664
        %v2015 = vunpack.c.h.b16 %v1664
        %v2016 = vunpack.c.l.b16 %v1665
        %v2017 = vunpack.c.h.b16 %v1665
        %v2018 = vunpack.c.l.b16 %v1666
        %v2019 = vunpack.c.h.b16 %v1666
        %v2020 = vunpack.c.l.b16 %v1667
        %v2021 = vunpack.c.h.b16 %v1667
        %v2022 = vunpack.c.l.b16 %v1668
        %v2023 = vunpack.c.h.b16 %v1668
        %v2024 = vunpack.c.l.b16 %v1669
        %v2025 = vunpack.c.h.b16 %v1669
        %v2026 = vunpack.c.l.b16 %v1670
        %v2027 = vunpack.c.h.b16 %v1670
        %v2028 = vunpack.c.l.b16 %v1671
        %v2029 = vunpack.c.h.b16 %v1671
        %v2030 = vunpack.c.l.b16 %v1672
        %v2031 = vunpack.c.h.b16 %v1672
        %v2032 = vunpack.c.l.b16 %v1673
        %v2033 = vunpack.c.h.b16 %v1673
        %v2034 = vunpack.c.l.b16 %v1674
        %v2035 = vunpack.c.h.b16 %v1674
        %v2036 = vunpack.c.l.b16 %v1675
        %v2037 = vunpack.c.h.b16 %v1675
        %v2038 = vunpack.c.l.b16 %v1676
        %v2039 = vunpack.c.h.b16 %v1676
        %v2040 = vunpack.c.l.b16 %v1677
        %v2041 = vunpack.c.h.b16 %v1677
        %v2042 = vunpack.c.l.b16 %v1678
        %v2043 = vunpack.c.h.b16 %v1678
        %v2044 = vunpack.c.l.b16 %v1679
        %v2045 = vunpack.c.h.b16 %v1679
        %v2046 = vunpack.c.l.b16 %v1680
        %v2047 = vunpack.c.h.b16 %v1680
        %v2048 = vunpack.c.l.b16 %v1681
        %v2049 = vunpack.c.h.b16 %v1681
        %v2050 = vunpack.c.l.b16 %v1682
        %v2051 = vunpack.c.h.b16 %v1682
        %v2052 = vunpack.c.l.b16 %v1683
        %v2053 = vunpack.c.h.b16 %v1683
        %v2054 = vunpack.c.l.b16 %v1684
        %v2055 = vunpack.c.h.b16 %v1684
        %v2056 = vunpack.c.l.b16 %v1685
        %v2057 = vunpack.c.h.b16 %v1685
        %v2058 = vunpack.c.l.b16 %v1686
        %v2059 = vunpack.c.h.b16 %v1686
        %v2060 = vunpack.c.l.b16 %v1687
        %v2061 = vunpack.c.h.b16 %v1687
        %v2062 = vunpack.c.l.b16 %v1688
        %v2063 = vunpack.c.h.b16 %v1688
        %v2064 = vunpack.c.l.b16 %v1689
        %v2065 = vunpack.c.h.b16 %v1689
        %v2066 = vunpack.c.l.b16 %v1690
        %v2067 = vunpack.c.h.b16 %v1690
        %v2068 = vunpack.c.l.b16 %v1691
        %v2069 = vunpack.c.h.b16 %v1691
        %v2070 = vunpack.c.l.b16 %v1692
        %v2071 = vunpack.c.h.b16 %v1692
        %v2072 = vunpack.c.l.b16 %v1693
        %v2073 = vunpack.c.h.b16 %v1693
        %v2074 = vunpack.c.l.b16 %v1694
        %v2075 = vunpack.c.h.b16 %v1694
        %v2076 = vunpack.c.l.b16 %v1695
        %v2077 = vunpack.c.h.b16 %v1695
        %v2078 = vunpack.c.l.b16 %v1696
        %v2079 = vunpack.c.h.b16 %v1696
        %v2080 = vunpack.c.l.b16 %v1697
        %v2081 = vunpack.c.h.b16 %v1697
        %v2082 = vunpack.c.l.b16 %v1698
        %v2083 = vunpack.c.h.b16 %v1698
        %v2084 = vunpack.c.l.b16 %v1699
        %v2085 = vunpack.c.h.b16 %v1699
        %v2086 = vunpack.c.l.b16 %v1700
        %v2087 = vunpack.c.h.b16 %v1700
        %v2088 = vunpack.c.l.b16 %v1701
        %v2089 = vunpack.c.h.b16 %v1701
        %v2090 = vunpack.c.l.b16 %v1702
        %v2091 = vunpack.c.h.b16 %v1702
        %v2092 = vunpack.c.l.b16 %v1703
        %v2093 = vunpack.c.h.b16 %v1703
        %v2094 = vunpack.c.l.b16 %v1704
        %v2095 = vunpack.c.h.b16 %v1704
        %v2096 = vunpack.c.l.b16 %v1705
        %v2097 = vunpack.c.h.b16 %v1705
        %v2098 = vunpack.c.l.b16 %v1706
        %v2099 = vunpack.c.h.b16 %v1706
        %v2100 = vunpack.c.l.b16 %v1707
        %v2101 = vunpack.c.h.b16 %v1707
        %v2102 = vunpack.c.l.b16 %v1708
        %v2103 = vunpack.c.h.b16 %v1708
        %v2104 = vunpack.c.l.b16 %v1709
        %v2105 = vunpack.c.h.b16 %v1709
        %v2106 = vunpack.c.l.b16 %v1710
        %v2107 = vunpack.c.h.b16 %v1710
        %v2108 = vunpack.c.l.b16 %v1711
        %v2109 = vunpack.c.h.b16 %v1711
        %v2110 = vunpack.c.l.b16 %v1712
        %v2111 = vunpack.c.h.b16 %v1712
        %v2112 = vunpack.c.l.b16 %v1713
        %v2113 = vunpack.c.h.b16 %v1713
        %v2114 = vunpack.c.l.b16 %v1714
        %v2115 = vunpack.c.h.b16 %v1714
        %v2116 = vunpack.c.l.b16 %v1715
        %v2117 = vunpack.c.h.b16 %v1715
        %v2118 = vunpack.c.l.b16 %v1716
        %v2119 = vunpack.c.h.b16 %v1716
        %v2120 = vunpack.c.l.b16 %v1717
        %v2121 = vunpack.c.h.b16 %v1717
        %v2122 = vunpack.c.l.b16 %v1718
        %v2123 = vunpack.c.h.b16 %v1718
        %v2124 = vunpack.c.l.b16 %v1719
        %v2125 = vunpack.c.h.b16 %v1719
        %v2126 = vunpack.c.l.b16 %v1720
        %v2127 = vunpack.c.h.b16 %v1720
        %v2128 = vunpack.c.l.b16 %v1721
        %v2129 = vunpack.c.h.b16 %v1721
        %v2130 = vunpack.c.l.b16 %v1722
        %v2131 = vunpack.c.h.b16 %v1722
        %v2132 = vunpack.c.l.b16 %v1723
        %v2133 = vunpack.c.h.b16 %v1723
        %v2134 = vunpack.c.l.b16 %v1724
        %v2135 = vunpack.c.h.b16 %v1724
        %v2136 = vunpack.c.l.b16 %v1725
        %v2137 = vunpack.c.h.b16 %v1725
        %v2138 = vunpack.c.l.b16 %v1726
        %v2139 = vunpack.c.h.b16 %v1726
        %v2140 = vunpack.c.l.b16 %v1727
        %v2141 = vunpack.c.h.b16 %v1727
        %v2142 = vunpack.c.l.b16 %v1728
        %v2143 = vunpack.c.h.b16 %v1728
        %v2144 = vunpack.c.l.b16 %v1729
        %v2145 = vunpack.c.h.b16 %v1729
        %v2146 = vunpack.c.l.b16 %v1730
        %v2147 = vunpack.c.h.b16 %v1730
        %v2148 = vunpack.c.l.b16 %v1731
        %v2149 = vunpack.c.h.b16 %v1731
        %v2150 = vunpack.c.l.b16 %v1732
        %v2151 = vunpack.c.h.b16 %v1732
        %v2152 = vunpack.c.l.b16 %v1733
        %v2153 = vunpack.c.h.b16 %v1733
        %v2154 = vunpack.c.l.b16 %v1734
        %v2155 = vunpack.c.h.b16 %v1734
        %v2156 = vunpack.c.l.b16 %v1735
        %v2157 = vunpack.c.h.b16 %v1735
        %v2158 = vunpack.c.l.b16 %v1736
        %v2159 = vunpack.c.h.b16 %v1736
        %v2160 = vunpack.c.l.b16 %v1737
        %v2161 = vunpack.c.h.b16 %v1737
        %v2162 = vunpack.c.l.b16 %v1738
        %v2163 = vunpack.c.h.b16 %v1738
        %v2164 = vunpack.c.l.b16 %v1739
        %v2165 = vunpack.c.h.b16 %v1739
        %v2166 = vunpack.c.l.b16 %v1740
        %v2167 = vunpack.c.h.b16 %v1740
        %v2168 = vunpack.c.l.b16 %v1741
        %v2169 = vunpack.c.h.b16 %v1741
        %v2170 = vunpack.c.l.b16 %v1742
        %v2171 = vunpack.c.h.b16 %v1742
        %v2172 = vunpack.c.l.b16 %v1743
        %v2173 = vunpack.c.h.b16 %v1743
        %v2174 = vunpack.c.l.b16 %v1744
        %v2175 = vunpack.c.h.b16 %v1744
        %v2176 = vunpack.c.l.b16 %v1745
        %v2177 = vunpack.c.h.b16 %v1745
        %v2178 = vunpack.c.l.b16 %v1746
        %v2179 = vunpack.c.h.b16 %v1746
        %v2180 = vunpack.c.l.b16 %v1747
        %v2181 = vunpack.c.h.b16 %v1747
        %v2182 = vunpack.c.l.b16 %v1748
        %v2183 = vunpack.c.h.b16 %v1748
        %v2184 = vunpack.c.l.b16 %v1749
        %v2185 = vunpack.c.h.b16 %v1749
        %v2186 = vunpack.c.l.b16 %v1750
        %v2187 = vunpack.c.h.b16 %v1750
        %v2188 = vunpack.c.l.b16 %v1751
        %v2189 = vunpack.c.h.b16 %v1751
        %v2190 = vunpack.c.l.b16 %v1752
        %v2191 = vunpack.c.h.b16 %v1752
        %v2192 = vunpack.c.l.b16 %v1753
        %v2193 = vunpack.c.h.b16 %v1753
        %v2194 = vunpack.c.l.b16 %v1754
        %v2195 = vunpack.c.h.b16 %v1754
        %v2196 = vunpack.c.l.b16 %v1755
        %v2197 = vunpack.c.h.b16 %v1755
        %v2198 = vunpack.c.l.b16 %v1756
        %v2199 = vunpack.c.h.b16 %v1756
        %v2200 = vunpack.c.l.b16 %v1757
        %v2201 = vunpack.c.h.b16 %v1757
        %v2202 = vunpack.c.l.b16 %v1758
        %v2203 = vunpack.c.h.b16 %v1758
        %v2204 = vunpack.c.l.b16 %v1759
        %v2205 = vunpack.c.h.b16 %v1759
        %v2206 = vunpack.c.l.b16 %v1760
        %v2207 = vunpack.c.h.b16 %v1760
        %v2208 = vunpack.c.l.b16 %v1761
        %v2209 = vunpack.c.h.b16 %v1761
        %v2210 = vunpack.c.l.b16 %v1762
        %v2211 = vunpack.c.h.b16 %v1762
        %v2212 = vunpack.c.l.b16 %v1763
        %v2213 = vunpack.c.h.b16 %v1763
        %v2214 = vunpack.c.l.b16 %v1764
        %v2215 = vunpack.c.h.b16 %v1764
        %v2216 = vunpack.c.l.b16 %v1765
        %v2217 = vunpack.c.h.b16 %v1765
        %v2218 = vunpack.c.l.b16 %v1766
        %v2219 = vunpack.c.h.b16 %v1766
        %v2220 = vunpack.c.l.b16 %v1767
        %v2221 = vunpack.c.h.b16 %v1767
        %v2222 = vunpack.c.l.b16 %v1768
        %v2223 = vunpack.c.h.b16 %v1768
        %v2224 = vunpack.c.l.b16 %v1769
        %v2225 = vunpack.c.h.b16 %v1769
        %v2226 = vunpack.c.l.b16 %v1770
        %v2227 = vunpack.c.h.b16 %v1770
        %v2228 = vunpack.c.l.b16 %v1771
        %v2229 = vunpack.c.h.b16 %v1771
        %v2230 = vunpack.c.l.b16 %v1772
        %v2231 = vunpack.c.h.b16 %v1772
        %v2232 = vunpack.c.l.b16 %v1773
        %v2233 = vunpack.c.h.b16 %v1773
        %v2234 = vunpack.c.l.b16 %v1774
        %v2235 = vunpack.c.h.b16 %v1774
        %v2236 = vunpack.c.l.b16 %v1775
        %v2237 = vunpack.c.h.b16 %v1775
        %v2238 = vunpack.c.l.b16 %v1776
        %v2239 = vunpack.c.h.b16 %v1776
        %v2240 = vunpack.c.l.b16 %v1777
        %v2241 = vunpack.c.h.b16 %v1777
        %v2242 = vunpack.c.l.b16 %v1778
        %v2243 = vunpack.c.h.b16 %v1778
        %v2244 = vunpack.c.l.b16 %v1779
        %v2245 = vunpack.c.h.b16 %v1779
        %v2246 = vunpack.c.l.b16 %v1780
        %v2247 = vunpack.c.h.b16 %v1780
        %v2248 = vunpack.c.l.b16 %v1781
        %v2249 = vunpack.c.h.b16 %v1781
        %v2250 = vunpack.c.l.b16 %v1782
        %v2251 = vunpack.c.h.b16 %v1782
        %v2252 = vunpack.c.l.b16 %v1783
        %v2253 = vunpack.c.h.b16 %v1783
        %v2254 = vunpack.c.l.b16 %v1784
        %v2255 = vunpack.c.h.b16 %v1784
        %v2256 = vunpack.c.l.b16 %v1785
        %v2257 = vunpack.c.h.b16 %v1785
        %v2258 = vunpack.c.l.b16 %v1786
        %v2259 = vunpack.c.h.b16 %v1786
        %v2260 = vunpack.c.l.b16 %v1787
        %v2261 = vunpack.c.h.b16 %v1787
        %v2262 = vunpack.c.l.b16 %v1788
        %v2263 = vunpack.c.h.b16 %v1788
        %v2264 = vunpack.c.l.b16 %v1789
        %v2265 = vunpack.c.h.b16 %v1789
        %v2266 = vunpack.c.l.b16 %v1790
        %v2267 = vunpack.c.h.b16 %v1790
        %v2268 = vunpack.c.l.b16 %v1791
        %v2269 = vunpack.c.h.b16 %v1791
        %v2270 = vunpack.c.l.b16 %v1792
        %v2271 = vunpack.c.h.b16 %v1792
        %v2272 = vunpack.c.l.b16 %v1793
        %v2273 = vunpack.c.h.b16 %v1793
        %v2274 = vpack.c.b16 %v1964, %v1954
        %v2275 = vpack.c.b16 %v1965, %v1955
        %v2276 = vpack.c.b16 %v1966, %v1956
        %v2277 = vpack.c.b16 %v1967, %v1957
        %v2278 = vpack.c.b16 %v1968, %v1958
        %v2279 = vpack.c.b16 %v1969, %v1959
        %v2280 = vpack.c.b16 %v1970, %v1960
        %v2281 = vpack.c.b16 %v1971, %v1961
        %v2282 = vpack.c.b16 %v1972, %v1962
        %v2283 = vpack.c.b16 %v1973, %v1963
        %v2284 = vpack.c.b16 %v1984, %v1974
        %v2285 = vpack.c.b16 %v1985, %v1975
        %v2286 = vpack.c.b16 %v1986, %v1976
        %v2287 = vpack.c.b16 %v1987, %v1977
        %v2288 = vpack.c.b16 %v1988, %v1978
        %v2289 = vpack.c.b16 %v1989, %v1979
        %v2290 = vpack.c.b16 %v1990, %v1980
        %v2291 = vpack.c.b16 %v1991, %v1981
        %v2292 = vpack.c.b16 %v1992, %v1982
        %v2293 = vpack.c.b16 %v1993, %v1983
        %v2294 = vpack.c.b16 %v2004, %v1994
        %v2295 = vpack.c.b16 %v2005, %v1995
        %v2296 = vpack.c.b16 %v2006, %v1996
        %v2297 = vpack.c.b16 %v2007, %v1997
        %v2298 = vpack.c.b16 %v2008, %v1998
        %v2299 = vpack.c.b16 %v2009, %v1999
        %v2300 = vpack.c.b16 %v2010, %v2000
        %v2301 = vpack.c.b16 %v2011, %v2001
        %v2302 = vpack.c.b16 %v2012, %v2002
        %v2303 = vpack.c.b16 %v2013, %v2003
        %v2304 = vpack.c.b16 %v2024, %v2014
        %v2305 = vpack.c.b16 %v2025, %v2015
        %v2306 = vpack.c.b16 %v2026, %v2016
        %v2307 = vpack.c.b16 %v2027, %v2017
        %v2308 = vpack.c.b16 %v2028, %v2018
        %v2309 = vpack.c.b16 %v2029, %v2019
        %v2310 = vpack.c.b16 %v2030, %v2020
        %v2311 = vpack.c.b16 %v2031, %v2021
        %v2312 = vpack.c.b16 %v2032, %v2022
        %v2313 = vpack.c.b16 %v2033, %v2023
        %v2314 = vpack.c.b16 %v2044, %v2034
        %v2315 = vpack.c.b16 %v2045, %v2035
        %v2316 = vpack.c.b16 %v2046, %v2036
        %v2317 = vpack.c.b16 %v2047, %v2037
        %v2318 = vpack.c.b16 %v2048, %v2038
        %v2319 = vpack.c.b16 %v2049, %v2039
        %v2320 = vpack.c.b16 %v2050, %v2040
        %v2321 = vpack.c.b16 %v2051, %v2041
        %v2322 = vpack.c.b16 %v2052, %v2042
        %v2323 = vpack.c.b16 %v2053, %v2043
        %v2324 = vpack.c.b16 %v2064, %v2054
        %v2325 = vpack.c.b16 %v2065, %v2055
        %v2326 = vpack.c.b16 %v2066, %v2056
        %v2327 = vpack.c.b16 %v2067, %v2057
        %v2328 = vpack.c.b16 %v2068, %v2058
        %v2329 = vpack.c.b16 %v2069, %v2059
        %v2330 = vpack.c.b16 %v2070, %v2060
        %v2331 = vpack.c.b16 %v2071, %v2061
        %v2332 = vpack.c.b16 %v2072, %v2062
        %v2333 = vpack.c.b16 %v2073, %v2063
        %v2334 = vpack.c.b16 %v2084, %v2074
        %v2335 = vpack.c.b16 %v2085, %v2075
        %v2336 = vpack.c.b16 %v2086, %v2076
        %v2337 = vpack.c.b16 %v2087, %v2077
        %v2338 = vpack.c.b16 %v2088, %v2078
        %v2339 = vpack.c.b16 %v2089, %v2079
        %v2340 = vpack.c.b16 %v2090, %v2080
        %v2341 = vpack.c.b16 %v2091, %v2081
        %v2342 = vpack.c.b16 %v2092, %v2082
        %v2343 = vpack.c.b16 %v2093, %v2083
        %v2344 = vpack.c.b16 %v2104, %v2094
        %v2345 = vpack.c.b16 %v2105, %v2095
        %v2346 = vpack.c.b16 %v2106, %v2096
        %v2347 = vpack.c.b16 %v2107, %v2097
        %v2348 = vpack.c.b16 %v2108, %v2098
        %v2349 = vpack.c.b16 %v2109, %v2099
        %v2350 = vpack.c.b16 %v2110, %v2100
        %v2351 = vpack.c.b16 %v2111, %v2101
        %v2352 = vpack.c.b16 %v2112, %v2102
        %v2353 = vpack.c.b16 %v2113, %v2103
        %v2354 = vpack.c.b16 %v2124, %v2114
        %v2355 = vpack.c.b16 %v2125, %v2115
        %v2356 = vpack.c.b16 %v2126, %v2116
        %v2357 = vpack.c.b16 %v2127, %v2117
        %v2358 = vpack.c.b16 %v2128, %v2118
        %v2359 = vpack.c.b16 %v2129, %v2119
        %v2360 = vpack.c.b16 %v2130, %v2120
        %v2361 = vpack.c.b16 %v2131, %v2121
        %v2362 = vpack.c.b16 %v2132, %v2122
        %v2363 = vpack.c.b16 %v2133, %v2123
        %v2364 = vpack.c.b16 %v2144, %v2134
        %v2365 = vpack.c.b16 %v2145, %v2135
        %v2366 = vpack.c.b16 %v2146, %v2136
        %v2367 = vpack.c.b16 %v2147, %v2137
        %v2368 = vpack.c.b16 %v2148, %v2138
        %v2369 = vpack.c.b16 %v2149, %v2139
        %v2370 = vpack.c.b16 %v2150, %v2140
        %v2371 = vpack.c.b16 %v2151, %v2141
        %v2372 = vpack.c.b16 %v2152, %v2142
        %v2373 = vpack.c.b16 %v2153, %v2143
        %v2374 = vpack.c.b16 %v2164, %v2154
        %v2375 = vpack.c.b16 %v2165, %v2155
        %v2376 = vpack.c.b16 %v2166, %v2156
        %v2377 = vpack.c.b16 %v2167, %v2157
        %v2378 = vpack.c.b16 %v2168, %v2158
        %v2379 = vpack.c.b16 %v2169, %v2159
        %v2380 = vpack.c.b16 %v2170, %v2160
        %v2381 = vpack.c.b16 %v2171, %v2161
        %v2382 = vpack.c.b16 %v2172, %v2162
        %v2383 = vpack.c.b16 %v2173, %v2163
        %v2384 = vpack.c.b16 %v2184, %v2174
        %v2385 = vpack.c.b16 %v2185, %v2175
        %v2386 = vpack.c.b16 %v2186, %v2176
        %v2387 = vpack.c.b16 %v2187, %v2177
        %v2388 = vpack.c.b16 %v2188, %v2178
        %v2389 = vpack.c.b16 %v2189, %v2179
        %v2390 = vpack.c.b16 %v2190, %v2180
        %v2391 = vpack.c.b16 %v2191, %v2181
        %v2392 = vpack.c.b16 %v2192, %v2182
        %v2393 = vpack.c.b16 %v2193, %v2183
        %v2394 = vpack.c.b16 %v2204, %v2194
        %v2395 = vpack.c.b16 %v2205, %v2195
        %v2396 = vpack.c.b16 %v2206, %v2196
        %v2397 = vpack.c.b16 %v2207, %v2197
        %v2398 = vpack.c.b16 %v2208, %v2198
        %v2399 = vpack.c.b16 %v2209, %v2199
        %v2400 = vpack.c.b16 %v2210, %v2200
        %v2401 = vpack.c.b16 %v2211, %v2201
        %v2402 = vpack.c.b16 %v2212, %v2202
        %v2403 = vpack.c.b16 %v2213, %v2203
        %v2404 = vpack.c.b16 %v2224, %v2214
        %v2405 = vpack.c.b16 %v2225, %v2215
        %v2406 = vpack.c.b16 %v2226, %v2216
        %v2407 = vpack.c.b16 %v2227, %v2217
        %v2408 = vpack.c.b16 %v2228, %v2218
        %v2409 = vpack.c.b16 %v2229, %v2219
        %v2410 = vpack.c.b16 %v2230, %v2220
        %v2411 = vpack.c.b16 %v2231, %v2221
        %v2412 = vpack.c.b16 %v2232, %v2222
        %v2413 = vpack.c.b16 %v2233, %v2223
        %v2414 = vpack.c.b16 %v2244, %v2234
        %v2415 = vpack.c.b16 %v2245, %v2235
        %v2416 = vpack.c.b16 %v2246, %v2236
        %v2417 = vpack.c.b16 %v2247, %v2237
        %v2418 = vpack.c.b16 %v2248, %v2238
        %v2419 = vpack.c.b16 %v2249, %v2239
        %v2420 = vpack.c.b16 %v2250, %v2240
        %v2421 = vpack.c.b16 %v2251, %v2241
        %v2422 = vpack.c.b16 %v2252, %v2242
        %v2423 = vpack.c.b16 %v2253, %v2243
        %v2424 = vpack.c.b16 %v2264, %v2254
        %v2425 = vpack.c.b16 %v2265, %v2255
        %v2426 = vpack.c.b16 %v2266, %v2256
        %v2427 = vpack.c.b16 %v2267, %v2257
        %v2428 = vpack.c.b16 %v2268, %v2258
        %v2429 = vpack.c.b16 %v2269, %v2259
        %v2430 = vpack.c.b16 %v2270, %v2260
        %v2431 = vpack.c.b16 %v2271, %v2261
        %v2432 = vpack.c.b16 %v2272, %v2262
        %v2433 = vpack.c.b16 %v2273, %v2263
        %2594 = vmatprep.subr.bf16.mxu0 %v2345
        %2595 = vmatpush1.bf16.msra.mxu0 %v2344
        %2596 = vmatprep.subr.bf16.mxu0 %v2335
        %2597 = vmatpush1.bf16.msra.mxu0 %v2334
        %2598 = vmatprep.subr.bf16.mxu0 %v2325
        %2599 = vmatpush1.bf16.msra.mxu0 %v2324
        %2600 = vmatprep.subr.bf16.mxu0 %v2315
        %2601 = vmatpush1.bf16.msra.mxu0 %v2314
        %2602 = vmatprep.subr.bf16.mxu0 %v2305
        %2603 = vmatpush1.bf16.msra.mxu0 %v2304
        %2604 = vmatprep.subr.bf16.mxu0 %v2295
        %2605 = vmatpush1.bf16.msra.mxu0 %v2294
        %2606 = vmatprep.subr.bf16.mxu0 %v2285
        %2607 = vmatpush1.bf16.msra.mxu0 %v2284
        %2608 = vmatprep.subr.bf16.mxu0 %v2275
        %2609 = vmatpush1.bf16.msra.mxu0 %v2274
        %2610 = vmatprep.subr.bf16.mxu0 %v2425
        %2611 = vmatpush2.bf16.msra.mxu0 %v2424
        %2612 = vmatprep.subr.bf16.mxu0 %v2415
        %2613 = vmatpush2.bf16.msra.mxu0 %v2414
        %2614 = vmatprep.subr.bf16.mxu0 %v2405
        %2615 = vmatpush2.bf16.msra.mxu0 %v2404
        %2616 = vmatprep.subr.bf16.mxu0 %v2395
        %2617 = vmatpush2.bf16.msra.mxu0 %v2394
        %2618 = vmatprep.subr.bf16.mxu0 %v2385
        %2619 = vmatpush2.bf16.msra.mxu0 %v2384
        %2620 = vmatprep.subr.bf16.mxu0 %v2375
        %2621 = vmatpush2.bf16.msra.mxu0 %v2374
        %2622 = vmatprep.subr.bf16.mxu0 %v2365
        %2623 = vmatpush2.bf16.msra.mxu0 %v2364
        %2624 = vmatprep.subr.bf16.mxu0 %v2355
        %2625 = vmatpush2.bf16.msra.mxu0 %v2354
        %2626 = vmatprep.mubr.bf16.mxu0 %v1633
        %2627 = vmatmul.mubr.bf16.gmra.mxu0 %v1632
        %v2628 = vpop.f32.mrf.mxu0
        %v2629 = vadd.f32 0.0, %v2628
        %v2630 = vpop.f32.mrf.mxu0
        %v2631 = vadd.f32 0.0, %v2630
        %v2632 = vpop.f32.mrf.mxu0
        %v2633 = vpop.f32.mrf.mxu0
        %2634 = vdwg.mxu0
        %2635 = vmatprep.subr.bf16.mxu0 %v2347
        %2636 = vmatpush1.bf16.msra.mxu0 %v2346
        %2637 = vmatprep.subr.bf16.mxu0 %v2337
        %2638 = vmatpush1.bf16.msra.mxu0 %v2336
        %2639 = vmatprep.subr.bf16.mxu0 %v2327
        %2640 = vmatpush1.bf16.msra.mxu0 %v2326
        %2641 = vmatprep.subr.bf16.mxu0 %v2317
        %2642 = vmatpush1.bf16.msra.mxu0 %v2316
        %2643 = vmatprep.subr.bf16.mxu0 %v2307
        %2644 = vmatpush1.bf16.msra.mxu0 %v2306
        %2645 = vmatprep.subr.bf16.mxu0 %v2297
        %2646 = vmatpush1.bf16.msra.mxu0 %v2296
        %2647 = vmatprep.subr.bf16.mxu0 %v2287
        %2648 = vmatpush1.bf16.msra.mxu0 %v2286
        %2649 = vmatprep.subr.bf16.mxu0 %v2277
        %2650 = vmatpush1.bf16.msra.mxu0 %v2276
        %2651 = vmatprep.subr.bf16.mxu0 %v2427
        %2652 = vmatpush2.bf16.msra.mxu0 %v2426
        %2653 = vmatprep.subr.bf16.mxu0 %v2417
        %2654 = vmatpush2.bf16.msra.mxu0 %v2416
        %2655 = vmatprep.subr.bf16.mxu0 %v2407
        %2656 = vmatpush2.bf16.msra.mxu0 %v2406
        %2657 = vmatprep.subr.bf16.mxu0 %v2397
        %2658 = vmatpush2.bf16.msra.mxu0 %v2396
        %2659 = vmatprep.subr.bf16.mxu0 %v2387
        %2660 = vmatpush2.bf16.msra.mxu0 %v2386
        %2661 = vmatprep.subr.bf16.mxu0 %v2377
        %2662 = vmatpush2.bf16.msra.mxu0 %v2376
        %2663 = vmatprep.subr.bf16.mxu0 %v2367
        %2664 = vmatpush2.bf16.msra.mxu0 %v2366
        %2665 = vmatprep.subr.bf16.mxu0 %v2357
        %2666 = vmatpush2.bf16.msra.mxu0 %v2356
        %2667 = vmatprep.mubr.bf16.mxu0 %v1633
        %2668 = vmatmul.mubr.bf16.gmra.mxu0 %v1632
        %v2669 = vpop.f32.mrf.mxu0
        %v2670 = vadd.f32 0.0, %v2669
        %v2671 = vpop.f32.mrf.mxu0
        %v2672 = vadd.f32 0.0, %v2671
        %v2673 = vpop.f32.mrf.mxu0
        %v2674 = vpop.f32.mrf.mxu0
        %2675 = vdwg.mxu0
        %2676 = vmatprep.subr.bf16.mxu0 %v2349
        %2677 = vmatpush1.bf16.msra.mxu0 %v2348
        %2678 = vmatprep.subr.bf16.mxu0 %v2339
        %2679 = vmatpush1.bf16.msra.mxu0 %v2338
        %2680 = vmatprep.subr.bf16.mxu0 %v2329
        %2681 = vmatpush1.bf16.msra.mxu0 %v2328
        %2682 = vmatprep.subr.bf16.mxu0 %v2319
        %2683 = vmatpush1.bf16.msra.mxu0 %v2318
        %2684 = vmatprep.subr.bf16.mxu0 %v2309
        %2685 = vmatpush1.bf16.msra.mxu0 %v2308
        %2686 = vmatprep.subr.bf16.mxu0 %v2299
        %2687 = vmatpush1.bf16.msra.mxu0 %v2298
        %2688 = vmatprep.subr.bf16.mxu0 %v2289
        %2689 = vmatpush1.bf16.msra.mxu0 %v2288
        %2690 = vmatprep.subr.bf16.mxu0 %v2279
        %2691 = vmatpush1.bf16.msra.mxu0 %v2278
        %2692 = vmatprep.subr.bf16.mxu0 %v2429
        %2693 = vmatpush2.bf16.msra.mxu0 %v2428
        %2694 = vmatprep.subr.bf16.mxu0 %v2419
        %2695 = vmatpush2.bf16.msra.mxu0 %v2418
        %2696 = vmatprep.subr.bf16.mxu0 %v2409
        %2697 = vmatpush2.bf16.msra.mxu0 %v2408
        %2698 = vmatprep.subr.bf16.mxu0 %v2399
        %2699 = vmatpush2.bf16.msra.mxu0 %v2398
        %2700 = vmatprep.subr.bf16.mxu0 %v2389
        %2701 = vmatpush2.bf16.msra.mxu0 %v2388
        %2702 = vmatprep.subr.bf16.mxu0 %v2379
        %2703 = vmatpush2.bf16.msra.mxu0 %v2378
        %2704 = vmatprep.subr.bf16.mxu0 %v2369
        %2705 = vmatpush2.bf16.msra.mxu0 %v2368
        %2706 = vmatprep.subr.bf16.mxu0 %v2359
        %2707 = vmatpush2.bf16.msra.mxu0 %v2358
        %2708 = vmatprep.mubr.bf16.mxu0 %v1633
        %2709 = vmatmul.mubr.bf16.gmra.mxu0 %v1632
        %v2710 = vpop.f32.mrf.mxu0
        %v2711 = vadd.f32 0.0, %v2710
        %v2712 = vpop.f32.mrf.mxu0
        %v2713 = vadd.f32 0.0, %v2712
        %v2714 = vpop.f32.mrf.mxu0
        %v2715 = vpop.f32.mrf.mxu0
        %2716 = vdwg.mxu0
        %2717 = vmatprep.subr.bf16.mxu0 %v2351
        %2718 = vmatpush1.bf16.msra.mxu0 %v2350
        %2719 = vmatprep.subr.bf16.mxu0 %v2341
        %2720 = vmatpush1.bf16.msra.mxu0 %v2340
        %2721 = vmatprep.subr.bf16.mxu0 %v2331
        %2722 = vmatpush1.bf16.msra.mxu0 %v2330
        %2723 = vmatprep.subr.bf16.mxu0 %v2321
        %2724 = vmatpush1.bf16.msra.mxu0 %v2320
        %2725 = vmatprep.subr.bf16.mxu0 %v2311
        %2726 = vmatpush1.bf16.msra.mxu0 %v2310
        %2727 = vmatprep.subr.bf16.mxu0 %v2301
        %2728 = vmatpush1.bf16.msra.mxu0 %v2300
        %2729 = vmatprep.subr.bf16.mxu0 %v2291
        %2730 = vmatpush1.bf16.msra.mxu0 %v2290
        %2731 = vmatprep.subr.bf16.mxu0 %v2281
        %2732 = vmatpush1.bf16.msra.mxu0 %v2280
        %2733 = vmatprep.subr.bf16.mxu0 %v2431
        %2734 = vmatpush2.bf16.msra.mxu0 %v2430
        %2735 = vmatprep.subr.bf16.mxu0 %v2421
        %2736 = vmatpush2.bf16.msra.mxu0 %v2420
        %2737 = vmatprep.subr.bf16.mxu0 %v2411
        %2738 = vmatpush2.bf16.msra.mxu0 %v2410
        %2739 = vmatprep.subr.bf16.mxu0 %v2401
        %2740 = vmatpush2.bf16.msra.mxu0 %v2400
        %2741 = vmatprep.subr.bf16.mxu0 %v2391
        %2742 = vmatpush2.bf16.msra.mxu0 %v2390
        %2743 = vmatprep.subr.bf16.mxu0 %v2381
        %2744 = vmatpush2.bf16.msra.mxu0 %v2380
        %2745 = vmatprep.subr.bf16.mxu0 %v2371
        %2746 = vmatpush2.bf16.msra.mxu0 %v2370
        %2747 = vmatprep.subr.bf16.mxu0 %v2361
        %2748 = vmatpush2.bf16.msra.mxu0 %v2360
        %2749 = vmatprep.mubr.bf16.mxu0 %v1633
        %2750 = vmatmul.mubr.bf16.gmra.mxu0 %v1632
        %v2751 = vpop.f32.mrf.mxu0
        %v2752 = vadd.f32 0.0, %v2751
        %v2753 = vpop.f32.mrf.mxu0
        %v2754 = vadd.f32 0.0, %v2753
        %v2755 = vpop.f32.mrf.mxu0
        %v2756 = vpop.f32.mrf.mxu0
        %2757 = vdwg.mxu0
        %2758 = vmatprep.subr.bf16.mxu0 %v2353
        %2759 = vmatpush1.bf16.msra.mxu0 %v2352
        %2760 = vmatprep.subr.bf16.mxu0 %v2343
        %2761 = vmatpush1.bf16.msra.mxu0 %v2342
        %2762 = vmatprep.subr.bf16.mxu0 %v2333
        %2763 = vmatpush1.bf16.msra.mxu0 %v2332
        %2764 = vmatprep.subr.bf16.mxu0 %v2323
        %2765 = vmatpush1.bf16.msra.mxu0 %v2322
        %2766 = vmatprep.subr.bf16.mxu0 %v2313
        %2767 = vmatpush1.bf16.msra.mxu0 %v2312
        %2768 = vmatprep.subr.bf16.mxu0 %v2303
        %2769 = vmatpush1.bf16.msra.mxu0 %v2302
        %2770 = vmatprep.subr.bf16.mxu0 %v2293
        %2771 = vmatpush1.bf16.msra.mxu0 %v2292
        %2772 = vmatprep.subr.bf16.mxu0 %v2283
        %2773 = vmatpush1.bf16.msra.mxu0 %v2282
        %2774 = vmatprep.subr.bf16.mxu0 %v2433
        %2775 = vmatpush2.bf16.msra.mxu0 %v2432
        %2776 = vmatprep.subr.bf16.mxu0 %v2423
        %2777 = vmatpush2.bf16.msra.mxu0 %v2422
        %2778 = vmatprep.subr.bf16.mxu0 %v2413
        %2779 = vmatpush2.bf16.msra.mxu0 %v2412
        %2780 = vmatprep.subr.bf16.mxu0 %v2403
        %2781 = vmatpush2.bf16.msra.mxu0 %v2402
        %2782 = vmatprep.subr.bf16.mxu0 %v2393
        %2783 = vmatpush2.bf16.msra.mxu0 %v2392
        %2784 = vmatprep.subr.bf16.mxu0 %v2383
        %2785 = vmatpush2.bf16.msra.mxu0 %v2382
        %2786 = vmatprep.subr.bf16.mxu0 %v2373
        %2787 = vmatpush2.bf16.msra.mxu0 %v2372
        %2788 = vmatprep.subr.bf16.mxu0 %v2363
        %2789 = vmatpush2.bf16.msra.mxu0 %v2362
        %2790 = vmatprep.mubr.bf16.mxu0 %v1633
        %2791 = vmatmul.mubr.bf16.gmra.mxu0 %v1632
        %v2792 = vpop.f32.mrf.mxu0
        %v2793 = vadd.f32 0.0, %v2792
        %v2794 = vpop.f32.mrf.mxu0
        %v2795 = vadd.f32 0.0, %v2794
        %v2796 = vpop.f32.mrf.mxu0
        %v2797 = vpop.f32.mrf.mxu0
        %2798 = vdwg.mxu0
        %v2809 = vcombine.low %v2629, %v2631
        %v2810 = vcombine.low %v2670, %v2672
        %v2812 = vunpack.c.l.s4 1983009808
        %v2813 = vunpack.c.0.s8 %v2812
        %v2814 = vlaneseq
        %v2815 = vshrl.u32 %v2814, 7
        %v2816 = vsub.s32 %v2813, %v2815
        %v2817 = vrot.slane %v2809, %v2816
        %v2819 = vunpack.c.l.s4 1983009808
        %v2820 = vunpack.c.0.s8 %v2819
        %v2821 = vlaneseq
        %v2822 = vshrl.u32 %v2821, 7
        %v2823 = vsub.s32 %v2820, %v2822
        %v2824 = vrot.slane %v2810, %v2823
        %v2825 = vcombine.low %v2817, %v2824
        %v2826 = vcombine.low %v2711, %v2713
        %v2827 = vcombine.low %v2752, %v2754
        %v2829 = vunpack.c.l.s4 1983009808
        %v2830 = vunpack.c.0.s8 %v2829
        %v2831 = vlaneseq
        %v2832 = vshrl.u32 %v2831, 7
        %v2833 = vsub.s32 %v2830, %v2832
        %v2834 = vrot.slane %v2826, %v2833
        %v2836 = vunpack.c.l.s4 1983009808
        %v2837 = vunpack.c.0.s8 %v2836
        %v2838 = vlaneseq
        %v2839 = vshrl.u32 %v2838, 7
        %v2840 = vsub.s32 %v2837, %v2839
        %v2841 = vrot.slane %v2827, %v2840
        %v2842 = vcombine.low %v2834, %v2841
        %v2843 = vcombine.low %v2793, %v2795
        %v2845 = vunpack.c.l.s4 1983009808
        %v2846 = vunpack.c.0.s8 %v2845
        %v2847 = vlaneseq
        %v2848 = vshrl.u32 %v2847, 7
        %v2849 = vsub.s32 %v2846, %v2848
        %v2850 = vrot.slane %v2843, %v2849
        %v2854 = vadd.f32 %v1629, %v2825
        %v2855 = vadd.f32 %v1630, %v2842
        %v2856 = vadd.f32 %v1631, %v2850
        %2857 = vst [vmem:[#allocation5] sm:$0xff] %v2854
        %2858 = vst [vmem:[#allocation5 + $0x8] sm:$0xff] %v2855
        %2859 = vst [vmem:[#allocation5 + $0x10] sm:$0xf] %v2856
        %2860 = vst [vmem:[#allocation2] sm:$0xff] %v1557
        %2861 = vst [vmem:[#allocation2 + $0x8] sm:$0xff] %v1558
        %2862 = vst [vmem:[#allocation2 + $0x10] sm:$0xff] %v1559
        %2863 = vst [vmem:[#allocation2 + $0x18] sm:$0xff] %v1560
        %v2864 = vmul.f32 %v721, %v1540
        %v2865 = vmul.f32 %v722, %v1545
        %v2866 = vmul.f32 %v723, %v1550
        %v2867 = vmul.f32 %v724, %v1555
        %2868 = vxpose.xlu0.b32.start [1/16] %v1509, 128
        %2869 = vxpose.xlu0.b32.cont [2/16] %v1510, 128
        %2870 = vxpose.xlu0.b32.cont [3/16] 0.0, 128
        %2871 = vxpose.xlu0.b32.cont [4/16] 0.0, 128
        %2872 = vxpose.xlu0.b32.cont [5/16] 0.0, 128
        %2873 = vxpose.xlu0.b32.cont [6/16] 0.0, 128
        %2874 = vxpose.xlu0.b32.cont [7/16] 0.0, 128
        %2875 = vxpose.xlu0.b32.cont [8/16] 0.0, 128
        %2876 = vxpose.xlu0.b32.cont [9/16] 0.0, 128
        %2877 = vxpose.xlu0.b32.cont [10/16] 0.0, 128
        %2878 = vxpose.xlu0.b32.cont [11/16] 0.0, 128
        %2879 = vxpose.xlu0.b32.cont [12/16] 0.0, 128
        %2880 = vxpose.xlu0.b32.cont [13/16] 0.0, 128
        %2881 = vxpose.xlu0.b32.cont [14/16] 0.0, 128
        %2882 = vxpose.xlu0.b32.cont [15/16] 0.0, 128
        %2883 = vxpose.xlu0.b32.end [16/16] 0.0, 128
        %v2884 = vpop.trf.xlu0
        %v2885 = vpop.trf.xlu0
        %v2886 = vpop.trf.xlu0
        %v2887 = vpop.trf.xlu0
        %v2888 = vpop.trf.xlu0
        %v2889 = vpop.trf.xlu0
        %v2890 = vpop.trf.xlu0
        %v2891 = vpop.trf.xlu0
        %v2892 = vpop.trf.xlu0
        %v2893 = vpop.trf.xlu0
        %v2894 = vpop.trf.xlu0
        %v2895 = vpop.trf.xlu0
        %v2896 = vpop.trf.xlu0
        %v2897 = vpop.trf.xlu0
        %v2898 = vpop.trf.xlu0
        %v2899 = vpop.trf.xlu0
        %2900 = vxpose.xlu0.b32.start [1/16] %v1511, 128
        %2901 = vxpose.xlu0.b32.cont [2/16] %v1512, 128
        %2902 = vxpose.xlu0.b32.cont [3/16] 0.0, 128
        %2903 = vxpose.xlu0.b32.cont [4/16] 0.0, 128
        %2904 = vxpose.xlu0.b32.cont [5/16] 0.0, 128
        %2905 = vxpose.xlu0.b32.cont [6/16] 0.0, 128
        %2906 = vxpose.xlu0.b32.cont [7/16] 0.0, 128
        %2907 = vxpose.xlu0.b32.cont [8/16] 0.0, 128
        %2908 = vxpose.xlu0.b32.cont [9/16] 0.0, 128
        %2909 = vxpose.xlu0.b32.cont [10/16] 0.0, 128
        %2910 = vxpose.xlu0.b32.cont [11/16] 0.0, 128
        %2911 = vxpose.xlu0.b32.cont [12/16] 0.0, 128
        %2912 = vxpose.xlu0.b32.cont [13/16] 0.0, 128
        %2913 = vxpose.xlu0.b32.cont [14/16] 0.0, 128
        %2914 = vxpose.xlu0.b32.cont [15/16] 0.0, 128
        %2915 = vxpose.xlu0.b32.end [16/16] 0.0, 128
        %v2916 = vpop.trf.xlu0
        %v2917 = vpop.trf.xlu0
        %v2918 = vpop.trf.xlu0
        %v2919 = vpop.trf.xlu0
        %v2920 = vpop.trf.xlu0
        %v2921 = vpop.trf.xlu0
        %v2922 = vpop.trf.xlu0
        %v2923 = vpop.trf.xlu0
        %v2924 = vpop.trf.xlu0
        %v2925 = vpop.trf.xlu0
        %v2926 = vpop.trf.xlu0
        %v2927 = vpop.trf.xlu0
        %v2928 = vpop.trf.xlu0
        %v2929 = vpop.trf.xlu0
        %v2930 = vpop.trf.xlu0
        %v2931 = vpop.trf.xlu0
        %v2932 = vlaneseq
        %v2933 = vshrl.u32 %v2932, 7
        %v2934 = vsub.s32 0, %v2933
        %v2935 = vrot.slane %v2884, %v2934
        %v2936 = vlaneseq
        %v2937 = vshrl.u32 %v2936, 7
        %v2938 = vsub.s32 0, %v2937
        %v2939 = vrot.slane %v2916, %v2938
        %v2940 = vmul.f32 %v2864, %v2935
        %v2941 = vmul.f32 %v2865, %v2935
        %v2942 = vmul.f32 %v2866, %v2939
        %v2943 = vmul.f32 %v2867, %v2939
        %2944 = vst.msk [vmem:[#allocation3] sm:$0xff] %vm731, %v2940
        %2945 = vst.msk [vmem:[#allocation3 + $0x8] sm:$0xff] %vm731, %v2941
        %2946 = vst.msk [vmem:[#allocation3 + $0x10] sm:$0xff] %vm731, %v2942
        %2947 = vst.msk [vmem:[#allocation3 + $0x18] sm:$0xff] %vm731, %v2943
        %vm2948 = vcmask 7168
        %2949 = vst.msk [vmem:[#allocation4] sm:$0xff] %vm2948, %v1509
        %2950 = vst.msk [vmem:[#allocation4 + $0x8] sm:$0xff] %vm2948, %v1510
        %2951 = vst.msk [vmem:[#allocation4 + $0x10] sm:$0xff] %vm2948, %v1511
        %2952 = vst.msk [vmem:[#allocation4 + $0x18] sm:$0xff] %vm2948, %v1512
        %p2953 = scmp.eq.s32.totalorder %s43, 9
        // Predicated region
        $region113: #{net_forward.1} parent=71 // pred_check
          %p2954 = pneg %p2953
        $region114: #{net_forward.1} parent=71 // pred_check_branch
          %2956 = sbr.rel (%p2954) target = $region116
        $region115: #{net_forward.1} parent=71 // pred_region
          %v2957 = vld [vmem:[#allocation21] sm:$0xff]
          %v2958 = vld [vmem:[#allocation21 + $0x8] sm:$0x3]
          %v2961 = vlaneseq
          %v2962 = vshrl.u32 %v2961, 7
          %v2963 = vsub.s32 0, %v2962
          %v2964 = vrot.slane %v2957, %v2963
          %v2965 = vlaneseq
          %v2966 = vshrl.u32 %v2965, 7
          %v2967 = vsub.s32 1, %v2966
          %v2968 = vrot.slane %v2957, %v2967
          %v2969 = vlaneseq
          %v2970 = vshrl.u32 %v2969, 7
          %v2971 = vsub.s32 2, %v2970
          %v2972 = vrot.slane %v2957, %v2971
          %v2973 = vlaneseq
          %v2974 = vshrl.u32 %v2973, 7
          %v2975 = vsub.s32 3, %v2974
          %v2976 = vrot.slane %v2957, %v2975
          %v2977 = vlaneseq
          %v2978 = vshrl.u32 %v2977, 7
          %v2979 = vsub.s32 4, %v2978
          %v2980 = vrot.slane %v2957, %v2979
          %v2981 = vlaneseq
          %v2982 = vshrl.u32 %v2981, 7
          %v2983 = vsub.s32 5, %v2982
          %v2984 = vrot.slane %v2957, %v2983
          %v2985 = vlaneseq
          %v2986 = vshrl.u32 %v2985, 7
          %v2987 = vsub.s32 6, %v2986
          %v2988 = vrot.slane %v2957, %v2987
          %v2989 = vlaneseq
          %v2990 = vshrl.u32 %v2989, 7
          %v2991 = vsub.s32 7, %v2990
          %v2992 = vrot.slane %v2957, %v2991
          %v2993 = vlaneseq
          %v2994 = vshrl.u32 %v2993, 7
          %v2995 = vsub.s32 0, %v2994
          %v2996 = vrot.slane %v2958, %v2995
          %v2997 = vlaneseq
          %v2998 = vshrl.u32 %v2997, 7
          %v2999 = vsub.s32 1, %v2998
          %v3000 = vrot.slane %v2958, %v2999
          %v3001 = vcombine.low %v2964, %v2968
          %v3002 = vcombine.low %v2972, %v2976
          %v3004 = vunpack.c.l.s4 1983009808
          %v3005 = vunpack.c.0.s8 %v3004
          %v3006 = vlaneseq
          %v3007 = vshrl.u32 %v3006, 7
          %v3008 = vsub.s32 %v3005, %v3007
          %v3009 = vrot.slane %v3001, %v3008
          %v3011 = vunpack.c.l.s4 1983009808
          %v3012 = vunpack.c.0.s8 %v3011
          %v3013 = vlaneseq
          %v3014 = vshrl.u32 %v3013, 7
          %v3015 = vsub.s32 %v3012, %v3014
          %v3016 = vrot.slane %v3002, %v3015
          %v3017 = vcombine.low %v3009, %v3016
          %v3018 = vcombine.low %v2980, %v2984
          %v3019 = vcombine.low %v2988, %v2992
          %v3021 = vunpack.c.l.s4 1983009808
          %v3022 = vunpack.c.0.s8 %v3021
          %v3023 = vlaneseq
          %v3024 = vshrl.u32 %v3023, 7
          %v3025 = vsub.s32 %v3022, %v3024
          %v3026 = vrot.slane %v3018, %v3025
          %v3028 = vunpack.c.l.s4 1983009808
          %v3029 = vunpack.c.0.s8 %v3028
          %v3030 = vlaneseq
          %v3031 = vshrl.u32 %v3030, 7
          %v3032 = vsub.s32 %v3029, %v3031
          %v3033 = vrot.slane %v3019, %v3032
          %v3034 = vcombine.low %v3026, %v3033
          %v3035 = vcombine.low %v2996, %v3000
          %v3037 = vunpack.c.l.s4 1983009808
          %v3038 = vunpack.c.0.s8 %v3037
          %v3039 = vlaneseq
          %v3040 = vshrl.u32 %v3039, 7
          %v3041 = vsub.s32 %v3038, %v3040
          %v3042 = vrot.slane %v3035, %v3041
          %v3046 = vadd.f32 %v2854, %v3017
          %v3047 = vadd.f32 %v2855, %v3034
          %v3048 = vadd.f32 %v2856, %v3042
          %vm3049 = vcmp.gt.f32.partialorder %v3046, 0.0
          %vm3050 = vcmp.gt.f32.partialorder %v3047, 0.0
          %vm3051 = vcmp.gt.f32.partialorder %v3048, 0.0
          %v3052 = vmul.f32 %v1241, %v3046
          %v3053 = vmul.f32 %v1241, %v3047
          %v3054 = vmul.f32 %v1241, %v3048
          %v3055 = vsel %vm3049, %v3046, %v3052
          %v3056 = vsel %vm3050, %v3047, %v3053
          %v3057 = vsel %vm3051, %v3048, %v3054
          %v3061 = vcombine.high %v3055, %v3055
          %v3063 = vunpack.c.l.s4 1983009808
          %v3064 = vunpack.c.0.s8 %v3063
          %v3065 = vlaneseq
          %v3066 = vshrl.u32 %v3065, 7
          %v3067 = vsub.s32 %v3064, %v3066
          %v3068 = vrot.slane %v3055, %v3067
          %v3070 = vunpack.c.l.s4 1983009808
          %v3071 = vunpack.c.0.s8 %v3070
          %v3072 = vlaneseq
          %v3073 = vshrl.u32 %v3072, 7
          %v3074 = vsub.s32 %v3071, %v3073
          %v3075 = vrot.slane %v3061, %v3074
          %v3076 = vcombine.high %v3068, %v3068
          %v3077 = vcombine.high %v3075, %v3075
          %v3078 = vcombine.high %v3056, %v3056
          %v3080 = vunpack.c.l.s4 1983009808
          %v3081 = vunpack.c.0.s8 %v3080
          %v3082 = vlaneseq
          %v3083 = vshrl.u32 %v3082, 7
          %v3084 = vsub.s32 %v3081, %v3083
          %v3085 = vrot.slane %v3056, %v3084
          %v3087 = vunpack.c.l.s4 1983009808
          %v3088 = vunpack.c.0.s8 %v3087
          %v3089 = vlaneseq
          %v3090 = vshrl.u32 %v3089, 7
          %v3091 = vsub.s32 %v3088, %v3090
          %v3092 = vrot.slane %v3078, %v3091
          %v3093 = vcombine.high %v3085, %v3085
          %v3094 = vcombine.high %v3092, %v3092
          %v3096 = vunpack.c.l.s4 1983009808
          %v3097 = vunpack.c.0.s8 %v3096
          %v3098 = vlaneseq
          %v3099 = vshrl.u32 %v3098, 7
          %v3100 = vsub.s32 %v3097, %v3099
          %v3101 = vrot.slane %v3057, %v3100
          %v3102 = vcombine.high %v3101, %v3101
          %v3113 = vpack.c.bf16 %v3068, %v3068
          %v3114 = vpack.c.bf16 %v3076, %v3076
          %v3115 = vpack.c.bf16 %v3075, %v3075
          %v3116 = vpack.c.bf16 %v3077, %v3077
          %v3117 = vpack.c.bf16 %v3085, %v3085
          %v3118 = vpack.c.bf16 %v3093, %v3093
          %v3119 = vpack.c.bf16 %v3092, %v3092
          %v3120 = vpack.c.bf16 %v3094, %v3094
          %v3121 = vpack.c.bf16 %v3101, %v3101
          %v3122 = vpack.c.bf16 %v3102, %v3102
          %v3123 = vld [vmem:[%s12] sm:$0xf]
          %v3124 = vld [vmem:[%s12 + $0x4] sm:$0xf]
          %v3125 = vld [vmem:[%s12 + $0x8] sm:$0xf]
          %v3126 = vld [vmem:[%s12 + $0xc] sm:$0xf]
          %v3127 = vld [vmem:[%s12 + $0x10] sm:$0xf]
          %v3128 = vld [vmem:[%s12 + $0x14] sm:$0xf]
          %v3129 = vld [vmem:[%s12 + $0x18] sm:$0xf]
          %v3130 = vld [vmem:[%s12 + $0x1c] sm:$0xf]
          %v3131 = vld [vmem:[%s12 + $0x20] sm:$0xf]
          %v3132 = vld [vmem:[%s12 + $0x24] sm:$0xf]
          %v3133 = vld [vmem:[%s12 + $0x28] sm:$0xf]
          %v3134 = vld [vmem:[%s12 + $0x2c] sm:$0xf]
          %v3135 = vld [vmem:[%s12 + $0x30] sm:$0xf]
          %v3136 = vld [vmem:[%s12 + $0x34] sm:$0xf]
          %v3137 = vld [vmem:[%s12 + $0x38] sm:$0xf]
          %v3138 = vld [vmem:[%s12 + $0x3c] sm:$0xf]
          %v3139 = vld [vmem:[%s12 + $0x40] sm:$0xf]
          %v3140 = vld [vmem:[%s12 + $0x44] sm:$0xf]
          %v3141 = vld [vmem:[%s12 + $0x48] sm:$0xf]
          %v3142 = vld [vmem:[%s12 + $0x4c] sm:$0xf]
          %v3143 = vld [vmem:[%s12 + $0x50] sm:$0xf]
          %v3144 = vld [vmem:[%s12 + $0x54] sm:$0xf]
          %v3145 = vld [vmem:[%s12 + $0x58] sm:$0xf]
          %v3146 = vld [vmem:[%s12 + $0x5c] sm:$0xf]
          %v3147 = vld [vmem:[%s12 + $0x60] sm:$0xf]
          %v3148 = vld [vmem:[%s12 + $0x64] sm:$0xf]
          %v3149 = vld [vmem:[%s12 + $0x68] sm:$0xf]
          %v3150 = vld [vmem:[%s12 + $0x6c] sm:$0xf]
          %v3151 = vld [vmem:[%s12 + $0x70] sm:$0xf]
          %v3152 = vld [vmem:[%s12 + $0x74] sm:$0xf]
          %v3153 = vld [vmem:[%s12 + $0x78] sm:$0xf]
          %v3154 = vld [vmem:[%s12 + $0x7c] sm:$0xf]
          %v3155 = vld [vmem:[%s12 + $0x80] sm:$0xf]
          %v3156 = vld [vmem:[%s12 + $0x84] sm:$0xf]
          %v3157 = vld [vmem:[%s12 + $0x88] sm:$0xf]
          %v3158 = vld [vmem:[%s12 + $0x8c] sm:$0xf]
          %v3159 = vld [vmem:[%s12 + $0x90] sm:$0xf]
          %v3160 = vld [vmem:[%s12 + $0x94] sm:$0xf]
          %v3161 = vld [vmem:[%s12 + $0x98] sm:$0xf]
          %v3162 = vld [vmem:[%s12 + $0x9c] sm:$0xf]
          %v3163 = vld [vmem:[%s12 + $0xa0] sm:$0xf]
          %v3164 = vld [vmem:[%s12 + $0xa4] sm:$0xf]
          %v3165 = vld [vmem:[%s12 + $0xa8] sm:$0xf]
          %v3166 = vld [vmem:[%s12 + $0xac] sm:$0xf]
          %v3167 = vld [vmem:[%s12 + $0xb0] sm:$0xf]
          %v3168 = vld [vmem:[%s12 + $0xb4] sm:$0xf]
          %v3169 = vld [vmem:[%s12 + $0xb8] sm:$0xf]
          %v3170 = vld [vmem:[%s12 + $0xbc] sm:$0xf]
          %v3171 = vld [vmem:[%s12 + $0xc0] sm:$0xf]
          %v3172 = vld [vmem:[%s12 + $0xc4] sm:$0xf]
          %v3173 = vld [vmem:[%s12 + $0xc8] sm:$0xf]
          %v3174 = vld [vmem:[%s12 + $0xcc] sm:$0xf]
          %v3175 = vld [vmem:[%s12 + $0xd0] sm:$0xf]
          %v3176 = vld [vmem:[%s12 + $0xd4] sm:$0xf]
          %v3177 = vld [vmem:[%s12 + $0xd8] sm:$0xf]
          %v3178 = vld [vmem:[%s12 + $0xdc] sm:$0xf]
          %v3179 = vld [vmem:[%s12 + $0xe0] sm:$0xf]
          %v3180 = vld [vmem:[%s12 + $0xe4] sm:$0xf]
          %v3181 = vld [vmem:[%s12 + $0xe8] sm:$0xf]
          %v3182 = vld [vmem:[%s12 + $0xec] sm:$0xf]
          %v3183 = vld [vmem:[%s12 + $0xf0] sm:$0xf]
          %v3184 = vld [vmem:[%s12 + $0xf4] sm:$0xf]
          %v3185 = vld [vmem:[%s12 + $0xf8] sm:$0xf]
          %v3186 = vld [vmem:[%s12 + $0xfc] sm:$0xf]
          %v3187 = vld [vmem:[%s12 + $0x100] sm:$0xf]
          %v3188 = vld [vmem:[%s12 + $0x104] sm:$0xf]
          %v3189 = vld [vmem:[%s12 + $0x108] sm:$0xf]
          %v3190 = vld [vmem:[%s12 + $0x10c] sm:$0xf]
          %v3191 = vld [vmem:[%s12 + $0x110] sm:$0xf]
          %v3192 = vld [vmem:[%s12 + $0x114] sm:$0xf]
          %v3193 = vld [vmem:[%s12 + $0x118] sm:$0xf]
          %v3194 = vld [vmem:[%s12 + $0x11c] sm:$0xf]
          %v3195 = vld [vmem:[%s12 + $0x120] sm:$0xf]
          %v3196 = vld [vmem:[%s12 + $0x124] sm:$0xf]
          %v3197 = vld [vmem:[%s12 + $0x128] sm:$0xf]
          %v3198 = vld [vmem:[%s12 + $0x12c] sm:$0xf]
          %v3199 = vld [vmem:[%s12 + $0x130] sm:$0xf]
          %v3200 = vld [vmem:[%s12 + $0x134] sm:$0xf]
          %v3201 = vld [vmem:[%s12 + $0x138] sm:$0xf]
          %v3202 = vld [vmem:[%s12 + $0x13c] sm:$0xf]
          %v3203 = vld [vmem:[%s12 + $0x140] sm:$0xf]
          %v3204 = vld [vmem:[%s12 + $0x144] sm:$0xf]
          %v3205 = vld [vmem:[%s12 + $0x148] sm:$0xf]
          %v3206 = vld [vmem:[%s12 + $0x14c] sm:$0xf]
          %v3207 = vld [vmem:[%s12 + $0x150] sm:$0xf]
          %v3208 = vld [vmem:[%s12 + $0x154] sm:$0xf]
          %v3209 = vld [vmem:[%s12 + $0x158] sm:$0xf]
          %v3210 = vld [vmem:[%s12 + $0x15c] sm:$0xf]
          %v3211 = vld [vmem:[%s12 + $0x160] sm:$0xf]
          %v3212 = vld [vmem:[%s12 + $0x164] sm:$0xf]
          %v3213 = vld [vmem:[%s12 + $0x168] sm:$0xf]
          %v3214 = vld [vmem:[%s12 + $0x16c] sm:$0xf]
          %v3215 = vld [vmem:[%s12 + $0x170] sm:$0xf]
          %v3216 = vld [vmem:[%s12 + $0x174] sm:$0xf]
          %v3217 = vld [vmem:[%s12 + $0x178] sm:$0xf]
          %v3218 = vld [vmem:[%s12 + $0x17c] sm:$0xf]
          %v3219 = vld [vmem:[%s12 + $0x180] sm:$0xf]
          %v3220 = vld [vmem:[%s12 + $0x184] sm:$0xf]
          %v3221 = vld [vmem:[%s12 + $0x188] sm:$0xf]
          %v3222 = vld [vmem:[%s12 + $0x18c] sm:$0xf]
          %v3223 = vld [vmem:[%s12 + $0x190] sm:$0xf]
          %v3224 = vld [vmem:[%s12 + $0x194] sm:$0xf]
          %v3225 = vld [vmem:[%s12 + $0x198] sm:$0xf]
          %v3226 = vld [vmem:[%s12 + $0x19c] sm:$0xf]
          %v3227 = vld [vmem:[%s12 + $0x1a0] sm:$0xf]
          %v3228 = vld [vmem:[%s12 + $0x1a4] sm:$0xf]
          %v3229 = vld [vmem:[%s12 + $0x1a8] sm:$0xf]
          %v3230 = vld [vmem:[%s12 + $0x1ac] sm:$0xf]
          %v3231 = vld [vmem:[%s12 + $0x1b0] sm:$0xf]
          %v3232 = vld [vmem:[%s12 + $0x1b4] sm:$0xf]
          %v3233 = vld [vmem:[%s12 + $0x1b8] sm:$0xf]
          %v3234 = vld [vmem:[%s12 + $0x1bc] sm:$0xf]
          %v3235 = vld [vmem:[%s12 + $0x1c0] sm:$0xf]
          %v3236 = vld [vmem:[%s12 + $0x1c4] sm:$0xf]
          %v3237 = vld [vmem:[%s12 + $0x1c8] sm:$0xf]
          %v3238 = vld [vmem:[%s12 + $0x1cc] sm:$0xf]
          %v3239 = vld [vmem:[%s12 + $0x1d0] sm:$0xf]
          %v3240 = vld [vmem:[%s12 + $0x1d4] sm:$0xf]
          %v3241 = vld [vmem:[%s12 + $0x1d8] sm:$0xf]
          %v3242 = vld [vmem:[%s12 + $0x1dc] sm:$0xf]
          %v3243 = vld [vmem:[%s12 + $0x1e0] sm:$0xf]
          %v3244 = vld [vmem:[%s12 + $0x1e4] sm:$0xf]
          %v3245 = vld [vmem:[%s12 + $0x1e8] sm:$0xf]
          %v3246 = vld [vmem:[%s12 + $0x1ec] sm:$0xf]
          %v3247 = vld [vmem:[%s12 + $0x1f0] sm:$0xf]
          %v3248 = vld [vmem:[%s12 + $0x1f4] sm:$0xf]
          %v3249 = vld [vmem:[%s12 + $0x1f8] sm:$0xf]
          %v3250 = vld [vmem:[%s12 + $0x1fc] sm:$0xf]
          %v3251 = vld [vmem:[%s12 + $0x200] sm:$0xf]
          %v3252 = vld [vmem:[%s12 + $0x204] sm:$0xf]
          %v3253 = vld [vmem:[%s12 + $0x208] sm:$0xf]
          %v3254 = vld [vmem:[%s12 + $0x20c] sm:$0xf]
          %v3255 = vld [vmem:[%s12 + $0x210] sm:$0xf]
          %v3256 = vld [vmem:[%s12 + $0x214] sm:$0xf]
          %v3257 = vld [vmem:[%s12 + $0x218] sm:$0xf]
          %v3258 = vld [vmem:[%s12 + $0x21c] sm:$0xf]
          %v3259 = vld [vmem:[%s12 + $0x220] sm:$0xf]
          %v3260 = vld [vmem:[%s12 + $0x224] sm:$0xf]
          %v3261 = vld [vmem:[%s12 + $0x228] sm:$0xf]
          %v3262 = vld [vmem:[%s12 + $0x22c] sm:$0xf]
          %v3263 = vld [vmem:[%s12 + $0x230] sm:$0xf]
          %v3264 = vld [vmem:[%s12 + $0x234] sm:$0xf]
          %v3265 = vld [vmem:[%s12 + $0x238] sm:$0xf]
          %v3266 = vld [vmem:[%s12 + $0x23c] sm:$0xf]
          %v3267 = vld [vmem:[%s12 + $0x240] sm:$0xf]
          %v3268 = vld [vmem:[%s12 + $0x244] sm:$0xf]
          %v3269 = vld [vmem:[%s12 + $0x248] sm:$0xf]
          %v3270 = vld [vmem:[%s12 + $0x24c] sm:$0xf]
          %v3271 = vld [vmem:[%s12 + $0x250] sm:$0xf]
          %v3272 = vld [vmem:[%s12 + $0x254] sm:$0xf]
          %v3273 = vld [vmem:[%s12 + $0x258] sm:$0xf]
          %v3274 = vld [vmem:[%s12 + $0x25c] sm:$0xf]
          %v3275 = vld [vmem:[%s12 + $0x260] sm:$0xf]
          %v3276 = vld [vmem:[%s12 + $0x264] sm:$0xf]
          %v3277 = vld [vmem:[%s12 + $0x268] sm:$0xf]
          %v3278 = vld [vmem:[%s12 + $0x26c] sm:$0xf]
          %v3279 = vld [vmem:[%s12 + $0x270] sm:$0xf]
          %v3280 = vld [vmem:[%s12 + $0x274] sm:$0xf]
          %v3281 = vld [vmem:[%s12 + $0x278] sm:$0xf]
          %v3282 = vld [vmem:[%s12 + $0x27c] sm:$0xf]
          %v3283 = vld [vmem:[#allocation23] sm:$0x1]
          %v3285 = vlaneseq
          %v3286 = vshrl.u32 %v3285, 7
          %v3287 = vsub.s32 0, %v3286
          %v3288 = vrot.slane %v3283, %v3287
          %v3450 = vunpack.c.l.b16 %v3123
          %v3451 = vunpack.c.l.b16 %v3124
          %v3452 = vunpack.c.l.b16 %v3125
          %v3453 = vunpack.c.l.b16 %v3126
          %v3454 = vunpack.c.l.b16 %v3127
          %v3455 = vunpack.c.l.b16 %v3128
          %v3456 = vunpack.c.l.b16 %v3129
          %v3457 = vunpack.c.l.b16 %v3130
          %v3458 = vunpack.c.l.b16 %v3131
          %v3459 = vunpack.c.l.b16 %v3132
          %v3460 = vunpack.c.l.b16 %v3133
          %v3461 = vunpack.c.l.b16 %v3134
          %v3462 = vunpack.c.l.b16 %v3135
          %v3463 = vunpack.c.l.b16 %v3136
          %v3464 = vunpack.c.l.b16 %v3137
          %v3465 = vunpack.c.l.b16 %v3138
          %v3466 = vunpack.c.l.b16 %v3139
          %v3467 = vunpack.c.l.b16 %v3140
          %v3468 = vunpack.c.l.b16 %v3141
          %v3469 = vunpack.c.l.b16 %v3142
          %v3470 = vunpack.c.l.b16 %v3143
          %v3471 = vunpack.c.l.b16 %v3144
          %v3472 = vunpack.c.l.b16 %v3145
          %v3473 = vunpack.c.l.b16 %v3146
          %v3474 = vunpack.c.l.b16 %v3147
          %v3475 = vunpack.c.l.b16 %v3148
          %v3476 = vunpack.c.l.b16 %v3149
          %v3477 = vunpack.c.l.b16 %v3150
          %v3478 = vunpack.c.l.b16 %v3151
          %v3479 = vunpack.c.l.b16 %v3152
          %v3480 = vunpack.c.l.b16 %v3153
          %v3481 = vunpack.c.l.b16 %v3154
          %v3482 = vunpack.c.l.b16 %v3155
          %v3483 = vunpack.c.l.b16 %v3156
          %v3484 = vunpack.c.l.b16 %v3157
          %v3485 = vunpack.c.l.b16 %v3158
          %v3486 = vunpack.c.l.b16 %v3159
          %v3487 = vunpack.c.l.b16 %v3160
          %v3488 = vunpack.c.l.b16 %v3161
          %v3489 = vunpack.c.l.b16 %v3162
          %v3490 = vunpack.c.l.b16 %v3163
          %v3491 = vunpack.c.l.b16 %v3164
          %v3492 = vunpack.c.l.b16 %v3165
          %v3493 = vunpack.c.l.b16 %v3166
          %v3494 = vunpack.c.l.b16 %v3167
          %v3495 = vunpack.c.l.b16 %v3168
          %v3496 = vunpack.c.l.b16 %v3169
          %v3497 = vunpack.c.l.b16 %v3170
          %v3498 = vunpack.c.l.b16 %v3171
          %v3499 = vunpack.c.l.b16 %v3172
          %v3500 = vunpack.c.l.b16 %v3173
          %v3501 = vunpack.c.l.b16 %v3174
          %v3502 = vunpack.c.l.b16 %v3175
          %v3503 = vunpack.c.l.b16 %v3176
          %v3504 = vunpack.c.l.b16 %v3177
          %v3505 = vunpack.c.l.b16 %v3178
          %v3506 = vunpack.c.l.b16 %v3179
          %v3507 = vunpack.c.l.b16 %v3180
          %v3508 = vunpack.c.l.b16 %v3181
          %v3509 = vunpack.c.l.b16 %v3182
          %v3510 = vunpack.c.l.b16 %v3183
          %v3511 = vunpack.c.l.b16 %v3184
          %v3512 = vunpack.c.l.b16 %v3185
          %v3513 = vunpack.c.l.b16 %v3186
          %v3514 = vunpack.c.l.b16 %v3187
          %v3515 = vunpack.c.l.b16 %v3188
          %v3516 = vunpack.c.l.b16 %v3189
          %v3517 = vunpack.c.l.b16 %v3190
          %v3518 = vunpack.c.l.b16 %v3191
          %v3519 = vunpack.c.l.b16 %v3192
          %v3520 = vunpack.c.l.b16 %v3193
          %v3521 = vunpack.c.l.b16 %v3194
          %v3522 = vunpack.c.l.b16 %v3195
          %v3523 = vunpack.c.l.b16 %v3196
          %v3524 = vunpack.c.l.b16 %v3197
          %v3525 = vunpack.c.l.b16 %v3198
          %v3526 = vunpack.c.l.b16 %v3199
          %v3527 = vunpack.c.l.b16 %v3200
          %v3528 = vunpack.c.l.b16 %v3201
          %v3529 = vunpack.c.l.b16 %v3202
          %v3530 = vunpack.c.l.b16 %v3203
          %v3531 = vunpack.c.l.b16 %v3204
          %v3532 = vunpack.c.l.b16 %v3205
          %v3533 = vunpack.c.l.b16 %v3206
          %v3534 = vunpack.c.l.b16 %v3207
          %v3535 = vunpack.c.l.b16 %v3208
          %v3536 = vunpack.c.l.b16 %v3209
          %v3537 = vunpack.c.l.b16 %v3210
          %v3538 = vunpack.c.l.b16 %v3211
          %v3539 = vunpack.c.l.b16 %v3212
          %v3540 = vunpack.c.l.b16 %v3213
          %v3541 = vunpack.c.l.b16 %v3214
          %v3542 = vunpack.c.l.b16 %v3215
          %v3543 = vunpack.c.l.b16 %v3216
          %v3544 = vunpack.c.l.b16 %v3217
          %v3545 = vunpack.c.l.b16 %v3218
          %v3546 = vunpack.c.l.b16 %v3219
          %v3547 = vunpack.c.l.b16 %v3220
          %v3548 = vunpack.c.l.b16 %v3221
          %v3549 = vunpack.c.l.b16 %v3222
          %v3550 = vunpack.c.l.b16 %v3223
          %v3551 = vunpack.c.l.b16 %v3224
          %v3552 = vunpack.c.l.b16 %v3225
          %v3553 = vunpack.c.l.b16 %v3226
          %v3554 = vunpack.c.l.b16 %v3227
          %v3555 = vunpack.c.l.b16 %v3228
          %v3556 = vunpack.c.l.b16 %v3229
          %v3557 = vunpack.c.l.b16 %v3230
          %v3558 = vunpack.c.l.b16 %v3231
          %v3559 = vunpack.c.l.b16 %v3232
          %v3560 = vunpack.c.l.b16 %v3233
          %v3561 = vunpack.c.l.b16 %v3234
          %v3562 = vunpack.c.l.b16 %v3235
          %v3563 = vunpack.c.l.b16 %v3236
          %v3564 = vunpack.c.l.b16 %v3237
          %v3565 = vunpack.c.l.b16 %v3238
          %v3566 = vunpack.c.l.b16 %v3239
          %v3567 = vunpack.c.l.b16 %v3240
          %v3568 = vunpack.c.l.b16 %v3241
          %v3569 = vunpack.c.l.b16 %v3242
          %v3570 = vunpack.c.l.b16 %v3243
          %v3571 = vunpack.c.l.b16 %v3244
          %v3572 = vunpack.c.l.b16 %v3245
          %v3573 = vunpack.c.l.b16 %v3246
          %v3574 = vunpack.c.l.b16 %v3247
          %v3575 = vunpack.c.l.b16 %v3248
          %v3576 = vunpack.c.l.b16 %v3249
          %v3577 = vunpack.c.l.b16 %v3250
          %v3578 = vunpack.c.l.b16 %v3251
          %v3579 = vunpack.c.l.b16 %v3252
          %v3580 = vunpack.c.l.b16 %v3253
          %v3581 = vunpack.c.l.b16 %v3254
          %v3582 = vunpack.c.l.b16 %v3255
          %v3583 = vunpack.c.l.b16 %v3256
          %v3584 = vunpack.c.l.b16 %v3257
          %v3585 = vunpack.c.l.b16 %v3258
          %v3586 = vunpack.c.l.b16 %v3259
          %v3587 = vunpack.c.l.b16 %v3260
          %v3588 = vunpack.c.l.b16 %v3261
          %v3589 = vunpack.c.l.b16 %v3262
          %v3590 = vunpack.c.l.b16 %v3263
          %v3591 = vunpack.c.l.b16 %v3264
          %v3592 = vunpack.c.l.b16 %v3265
          %v3593 = vunpack.c.l.b16 %v3266
          %v3594 = vunpack.c.l.b16 %v3267
          %v3595 = vunpack.c.l.b16 %v3268
          %v3596 = vunpack.c.l.b16 %v3269
          %v3597 = vunpack.c.l.b16 %v3270
          %v3598 = vunpack.c.l.b16 %v3271
          %v3599 = vunpack.c.l.b16 %v3272
          %v3600 = vunpack.c.l.b16 %v3273
          %v3601 = vunpack.c.l.b16 %v3274
          %v3602 = vunpack.c.l.b16 %v3275
          %v3603 = vunpack.c.l.b16 %v3276
          %v3604 = vunpack.c.l.b16 %v3277
          %v3605 = vunpack.c.l.b16 %v3278
          %v3606 = vunpack.c.l.b16 %v3279
          %v3607 = vunpack.c.l.b16 %v3280
          %v3608 = vunpack.c.l.b16 %v3281
          %v3609 = vunpack.c.l.b16 %v3282
          %v3610 = vpack.c.b16 %v3451, %v3450
          %v3611 = vpack.c.b16 %v3453, %v3452
          %v3612 = vpack.c.b16 %v3455, %v3454
          %v3613 = vpack.c.b16 %v3457, %v3456
          %v3614 = vpack.c.b16 %v3459, %v3458
          %v3615 = vpack.c.b16 %v3461, %v3460
          %v3616 = vpack.c.b16 %v3463, %v3462
          %v3617 = vpack.c.b16 %v3465, %v3464
          %v3618 = vpack.c.b16 %v3467, %v3466
          %v3619 = vpack.c.b16 %v3469, %v3468
          %v3620 = vpack.c.b16 %v3471, %v3470
          %v3621 = vpack.c.b16 %v3473, %v3472
          %v3622 = vpack.c.b16 %v3475, %v3474
          %v3623 = vpack.c.b16 %v3477, %v3476
          %v3624 = vpack.c.b16 %v3479, %v3478
          %v3625 = vpack.c.b16 %v3481, %v3480
          %v3626 = vpack.c.b16 %v3483, %v3482
          %v3627 = vpack.c.b16 %v3485, %v3484
          %v3628 = vpack.c.b16 %v3487, %v3486
          %v3629 = vpack.c.b16 %v3489, %v3488
          %v3630 = vpack.c.b16 %v3491, %v3490
          %v3631 = vpack.c.b16 %v3493, %v3492
          %v3632 = vpack.c.b16 %v3495, %v3494
          %v3633 = vpack.c.b16 %v3497, %v3496
          %v3634 = vpack.c.b16 %v3499, %v3498
          %v3635 = vpack.c.b16 %v3501, %v3500
          %v3636 = vpack.c.b16 %v3503, %v3502
          %v3637 = vpack.c.b16 %v3505, %v3504
          %v3638 = vpack.c.b16 %v3507, %v3506
          %v3639 = vpack.c.b16 %v3509, %v3508
          %v3640 = vpack.c.b16 %v3511, %v3510
          %v3641 = vpack.c.b16 %v3513, %v3512
          %v3642 = vpack.c.b16 %v3515, %v3514
          %v3643 = vpack.c.b16 %v3517, %v3516
          %v3644 = vpack.c.b16 %v3519, %v3518
          %v3645 = vpack.c.b16 %v3521, %v3520
          %v3646 = vpack.c.b16 %v3523, %v3522
          %v3647 = vpack.c.b16 %v3525, %v3524
          %v3648 = vpack.c.b16 %v3527, %v3526
          %v3649 = vpack.c.b16 %v3529, %v3528
          %v3650 = vpack.c.b16 %v3531, %v3530
          %v3651 = vpack.c.b16 %v3533, %v3532
          %v3652 = vpack.c.b16 %v3535, %v3534
          %v3653 = vpack.c.b16 %v3537, %v3536
          %v3654 = vpack.c.b16 %v3539, %v3538
          %v3655 = vpack.c.b16 %v3541, %v3540
          %v3656 = vpack.c.b16 %v3543, %v3542
          %v3657 = vpack.c.b16 %v3545, %v3544
          %v3658 = vpack.c.b16 %v3547, %v3546
          %v3659 = vpack.c.b16 %v3549, %v3548
          %v3660 = vpack.c.b16 %v3551, %v3550
          %v3661 = vpack.c.b16 %v3553, %v3552
          %v3662 = vpack.c.b16 %v3555, %v3554
          %v3663 = vpack.c.b16 %v3557, %v3556
          %v3664 = vpack.c.b16 %v3559, %v3558
          %v3665 = vpack.c.b16 %v3561, %v3560
          %v3666 = vpack.c.b16 %v3563, %v3562
          %v3667 = vpack.c.b16 %v3565, %v3564
          %v3668 = vpack.c.b16 %v3567, %v3566
          %v3669 = vpack.c.b16 %v3569, %v3568
          %v3670 = vpack.c.b16 %v3571, %v3570
          %v3671 = vpack.c.b16 %v3573, %v3572
          %v3672 = vpack.c.b16 %v3575, %v3574
          %v3673 = vpack.c.b16 %v3577, %v3576
          %v3674 = vpack.c.b16 %v3579, %v3578
          %v3675 = vpack.c.b16 %v3581, %v3580
          %v3676 = vpack.c.b16 %v3583, %v3582
          %v3677 = vpack.c.b16 %v3585, %v3584
          %v3678 = vpack.c.b16 %v3587, %v3586
          %v3679 = vpack.c.b16 %v3589, %v3588
          %v3680 = vpack.c.b16 %v3591, %v3590
          %v3681 = vpack.c.b16 %v3593, %v3592
          %v3682 = vpack.c.b16 %v3595, %v3594
          %v3683 = vpack.c.b16 %v3597, %v3596
          %v3684 = vpack.c.b16 %v3599, %v3598
          %v3685 = vpack.c.b16 %v3601, %v3600
          %v3686 = vpack.c.b16 %v3603, %v3602
          %v3687 = vpack.c.b16 %v3605, %v3604
          %v3688 = vpack.c.b16 %v3607, %v3606
          %v3689 = vpack.c.b16 %v3609, %v3608
          %3770 = vmatprep.subr.bf16.mxu0 0
          %3771 = vmatpush1.bf16.msra.mxu0 %v3617
          %3772 = vmatprep.subr.bf16.mxu0 0
          %3773 = vmatpush1.bf16.msra.mxu0 %v3616
          %3774 = vmatprep.subr.bf16.mxu0 0
          %3775 = vmatpush1.bf16.msra.mxu0 %v3615
          %3776 = vmatprep.subr.bf16.mxu0 0
          %3777 = vmatpush1.bf16.msra.mxu0 %v3614
          %3778 = vmatprep.subr.bf16.mxu0 0
          %3779 = vmatpush1.bf16.msra.mxu0 %v3613
          %3780 = vmatprep.subr.bf16.mxu0 0
          %3781 = vmatpush1.bf16.msra.mxu0 %v3612
          %3782 = vmatprep.subr.bf16.mxu0 0
          %3783 = vmatpush1.bf16.msra.mxu0 %v3611
          %3784 = vmatprep.subr.bf16.mxu0 0
          %3785 = vmatpush1.bf16.msra.mxu0 %v3610
          %3786 = vmatprep.subr.bf16.mxu0 0
          %3787 = vmatpush2.bf16.msra.mxu0 %v3625
          %3788 = vmatprep.subr.bf16.mxu0 0
          %3789 = vmatpush2.bf16.msra.mxu0 %v3624
          %3790 = vmatprep.subr.bf16.mxu0 0
          %3791 = vmatpush2.bf16.msra.mxu0 %v3623
          %3792 = vmatprep.subr.bf16.mxu0 0
          %3793 = vmatpush2.bf16.msra.mxu0 %v3622
          %3794 = vmatprep.subr.bf16.mxu0 0
          %3795 = vmatpush2.bf16.msra.mxu0 %v3621
          %3796 = vmatprep.subr.bf16.mxu0 0
          %3797 = vmatpush2.bf16.msra.mxu0 %v3620
          %3798 = vmatprep.subr.bf16.mxu0 0
          %3799 = vmatpush2.bf16.msra.mxu0 %v3619
          %3800 = vmatprep.subr.bf16.mxu0 0
          %3801 = vmatpush2.bf16.msra.mxu0 %v3618
          %3802 = vmatprep.mubr.bf16.mxu0 %v3114
          %3803 = vmatmul.mubr.bf16.gmra.mxu0 %v3113
          %v3804 = vpop.f32.mrf.mxu0
          %v3805 = vadd.f32 %v3288, %v3804
          %v3806 = vpop.f32.mrf.mxu0
          %v3807 = vpop.f32.mrf.mxu0
          %v3808 = vpop.f32.mrf.mxu0
          %3809 = vdwg.mxu0
          %3810 = vmatprep.subr.bf16.mxu0 0
          %3811 = vmatpush1.bf16.msra.mxu0 %v3633
          %3812 = vmatprep.subr.bf16.mxu0 0
          %3813 = vmatpush1.bf16.msra.mxu0 %v3632
          %3814 = vmatprep.subr.bf16.mxu0 0
          %3815 = vmatpush1.bf16.msra.mxu0 %v3631
          %3816 = vmatprep.subr.bf16.mxu0 0
          %3817 = vmatpush1.bf16.msra.mxu0 %v3630
          %3818 = vmatprep.subr.bf16.mxu0 0
          %3819 = vmatpush1.bf16.msra.mxu0 %v3629
          %3820 = vmatprep.subr.bf16.mxu0 0
          %3821 = vmatpush1.bf16.msra.mxu0 %v3628
          %3822 = vmatprep.subr.bf16.mxu0 0
          %3823 = vmatpush1.bf16.msra.mxu0 %v3627
          %3824 = vmatprep.subr.bf16.mxu0 0
          %3825 = vmatpush1.bf16.msra.mxu0 %v3626
          %3826 = vmatprep.subr.bf16.mxu0 0
          %3827 = vmatpush2.bf16.msra.mxu0 %v3641
          %3828 = vmatprep.subr.bf16.mxu0 0
          %3829 = vmatpush2.bf16.msra.mxu0 %v3640
          %3830 = vmatprep.subr.bf16.mxu0 0
          %3831 = vmatpush2.bf16.msra.mxu0 %v3639
          %3832 = vmatprep.subr.bf16.mxu0 0
          %3833 = vmatpush2.bf16.msra.mxu0 %v3638
          %3834 = vmatprep.subr.bf16.mxu0 0
          %3835 = vmatpush2.bf16.msra.mxu0 %v3637
          %3836 = vmatprep.subr.bf16.mxu0 0
          %3837 = vmatpush2.bf16.msra.mxu0 %v3636
          %3838 = vmatprep.subr.bf16.mxu0 0
          %3839 = vmatpush2.bf16.msra.mxu0 %v3635
          %3840 = vmatprep.subr.bf16.mxu0 0
          %3841 = vmatpush2.bf16.msra.mxu0 %v3634
          %3842 = vmatprep.mubr.bf16.mxu0 %v3116
          %3843 = vmatmul.mubr.bf16.gmra.mxu0 %v3115
          %v3844 = vpop.f32.mrf.mxu0
          %v3845 = vadd.f32 %v3805, %v3844
          %v3846 = vpop.f32.mrf.mxu0
          %v3847 = vpop.f32.mrf.mxu0
          %v3848 = vpop.f32.mrf.mxu0
          %3849 = vdwg.mxu0
          %3850 = vmatprep.subr.bf16.mxu0 0
          %3851 = vmatpush1.bf16.msra.mxu0 %v3649
          %3852 = vmatprep.subr.bf16.mxu0 0
          %3853 = vmatpush1.bf16.msra.mxu0 %v3648
          %3854 = vmatprep.subr.bf16.mxu0 0
          %3855 = vmatpush1.bf16.msra.mxu0 %v3647
          %3856 = vmatprep.subr.bf16.mxu0 0
          %3857 = vmatpush1.bf16.msra.mxu0 %v3646
          %3858 = vmatprep.subr.bf16.mxu0 0
          %3859 = vmatpush1.bf16.msra.mxu0 %v3645
          %3860 = vmatprep.subr.bf16.mxu0 0
          %3861 = vmatpush1.bf16.msra.mxu0 %v3644
          %3862 = vmatprep.subr.bf16.mxu0 0
          %3863 = vmatpush1.bf16.msra.mxu0 %v3643
          %3864 = vmatprep.subr.bf16.mxu0 0
          %3865 = vmatpush1.bf16.msra.mxu0 %v3642
          %3866 = vmatprep.subr.bf16.mxu0 0
          %3867 = vmatpush2.bf16.msra.mxu0 %v3657
          %3868 = vmatprep.subr.bf16.mxu0 0
          %3869 = vmatpush2.bf16.msra.mxu0 %v3656
          %3870 = vmatprep.subr.bf16.mxu0 0
          %3871 = vmatpush2.bf16.msra.mxu0 %v3655
          %3872 = vmatprep.subr.bf16.mxu0 0
          %3873 = vmatpush2.bf16.msra.mxu0 %v3654
          %3874 = vmatprep.subr.bf16.mxu0 0
          %3875 = vmatpush2.bf16.msra.mxu0 %v3653
          %3876 = vmatprep.subr.bf16.mxu0 0
          %3877 = vmatpush2.bf16.msra.mxu0 %v3652
          %3878 = vmatprep.subr.bf16.mxu0 0
          %3879 = vmatpush2.bf16.msra.mxu0 %v3651
          %3880 = vmatprep.subr.bf16.mxu0 0
          %3881 = vmatpush2.bf16.msra.mxu0 %v3650
          %3882 = vmatprep.mubr.bf16.mxu0 %v3118
          %3883 = vmatmul.mubr.bf16.gmra.mxu0 %v3117
          %v3884 = vpop.f32.mrf.mxu0
          %v3885 = vadd.f32 %v3845, %v3884
          %v3886 = vpop.f32.mrf.mxu0
          %v3887 = vpop.f32.mrf.mxu0
          %v3888 = vpop.f32.mrf.mxu0
          %3889 = vdwg.mxu0
          %3890 = vmatprep.subr.bf16.mxu0 0
          %3891 = vmatpush1.bf16.msra.mxu0 %v3665
          %3892 = vmatprep.subr.bf16.mxu0 0
          %3893 = vmatpush1.bf16.msra.mxu0 %v3664
          %3894 = vmatprep.subr.bf16.mxu0 0
          %3895 = vmatpush1.bf16.msra.mxu0 %v3663
          %3896 = vmatprep.subr.bf16.mxu0 0
          %3897 = vmatpush1.bf16.msra.mxu0 %v3662
          %3898 = vmatprep.subr.bf16.mxu0 0
          %3899 = vmatpush1.bf16.msra.mxu0 %v3661
          %3900 = vmatprep.subr.bf16.mxu0 0
          %3901 = vmatpush1.bf16.msra.mxu0 %v3660
          %3902 = vmatprep.subr.bf16.mxu0 0
          %3903 = vmatpush1.bf16.msra.mxu0 %v3659
          %3904 = vmatprep.subr.bf16.mxu0 0
          %3905 = vmatpush1.bf16.msra.mxu0 %v3658
          %3906 = vmatprep.subr.bf16.mxu0 0
          %3907 = vmatpush2.bf16.msra.mxu0 %v3673
          %3908 = vmatprep.subr.bf16.mxu0 0
          %3909 = vmatpush2.bf16.msra.mxu0 %v3672
          %3910 = vmatprep.subr.bf16.mxu0 0
          %3911 = vmatpush2.bf16.msra.mxu0 %v3671
          %3912 = vmatprep.subr.bf16.mxu0 0
          %3913 = vmatpush2.bf16.msra.mxu0 %v3670
          %3914 = vmatprep.subr.bf16.mxu0 0
          %3915 = vmatpush2.bf16.msra.mxu0 %v3669
          %3916 = vmatprep.subr.bf16.mxu0 0
          %3917 = vmatpush2.bf16.msra.mxu0 %v3668
          %3918 = vmatprep.subr.bf16.mxu0 0
          %3919 = vmatpush2.bf16.msra.mxu0 %v3667
          %3920 = vmatprep.subr.bf16.mxu0 0
          %3921 = vmatpush2.bf16.msra.mxu0 %v3666
          %3922 = vmatprep.mubr.bf16.mxu0 %v3120
          %3923 = vmatmul.mubr.bf16.gmra.mxu0 %v3119
          %v3924 = vpop.f32.mrf.mxu0
          %v3925 = vadd.f32 %v3885, %v3924
          %v3926 = vpop.f32.mrf.mxu0
          %v3927 = vpop.f32.mrf.mxu0
          %v3928 = vpop.f32.mrf.mxu0
          %3929 = vdwg.mxu0
          %3930 = vmatprep.subr.bf16.mxu0 0
          %3931 = vmatpush1.bf16.msra.mxu0 %v3681
          %3932 = vmatprep.subr.bf16.mxu0 0
          %3933 = vmatpush1.bf16.msra.mxu0 %v3680
          %3934 = vmatprep.subr.bf16.mxu0 0
          %3935 = vmatpush1.bf16.msra.mxu0 %v3679
          %3936 = vmatprep.subr.bf16.mxu0 0
          %3937 = vmatpush1.bf16.msra.mxu0 %v3678
          %3938 = vmatprep.subr.bf16.mxu0 0
          %3939 = vmatpush1.bf16.msra.mxu0 %v3677
          %3940 = vmatprep.subr.bf16.mxu0 0
          %3941 = vmatpush1.bf16.msra.mxu0 %v3676
          %3942 = vmatprep.subr.bf16.mxu0 0
          %3943 = vmatpush1.bf16.msra.mxu0 %v3675
          %3944 = vmatprep.subr.bf16.mxu0 0
          %3945 = vmatpush1.bf16.msra.mxu0 %v3674
          %3946 = vmatprep.subr.bf16.mxu0 0
          %3947 = vmatpush2.bf16.msra.mxu0 %v3689
          %3948 = vmatprep.subr.bf16.mxu0 0
          %3949 = vmatpush2.bf16.msra.mxu0 %v3688
          %3950 = vmatprep.subr.bf16.mxu0 0
          %3951 = vmatpush2.bf16.msra.mxu0 %v3687
          %3952 = vmatprep.subr.bf16.mxu0 0
          %3953 = vmatpush2.bf16.msra.mxu0 %v3686
          %3954 = vmatprep.subr.bf16.mxu0 0
          %3955 = vmatpush2.bf16.msra.mxu0 %v3685
          %3956 = vmatprep.subr.bf16.mxu0 0
          %3957 = vmatpush2.bf16.msra.mxu0 %v3684
          %3958 = vmatprep.subr.bf16.mxu0 0
          %3959 = vmatpush2.bf16.msra.mxu0 %v3683
          %3960 = vmatprep.subr.bf16.mxu0 0
          %3961 = vmatpush2.bf16.msra.mxu0 %v3682
          %3962 = vmatprep.mubr.bf16.mxu0 %v3122
          %3963 = vmatmul.mubr.bf16.gmra.mxu0 %v3121
          %v3964 = vpop.f32.mrf.mxu0
          %v3965 = vadd.f32 %v3925, %v3964
          %v3966 = vpop.f32.mrf.mxu0
          %v3967 = vpop.f32.mrf.mxu0
          %v3968 = vpop.f32.mrf.mxu0
          %3969 = vdwg.mxu0
          %vm3970 = vcmp.gt.f32.partialorder %v3965, 0.0
          %v3971 = vmul.f32 %v1241, %v3965
          %v3972 = vsel %vm3970, %v3965, %v3971
          %vm3973 = vcmask 58368
          %v3974 = vsel %vm3973, %v3972, inf
          %3975 = vmin.xlane.f32.xlu0 %v3974
          %v3976 = vpop.xlane.xlu0 %3975
          %v3977 = vsub.f32 %v3972, %v3976
          %v3978 = vsel %vm3973, %v3977, -inf
          %3979 = vmax.xlane.f32.xlu0 %v3978
          %v3980 = vpop.xlane.xlu0 %3979
          %v3981 = vrcp.pop %v3980
          %v3982 = vmul.f32 %v3977, %v3981
          %v3983 = vsel %vm3973, %v3982, 0.0
          %3984 = vadd.xlane.f32.xlu0 %v3983
          %v3985 = vpop.xlane.xlu0 %3984
          %v3986 = vrcp.pop %v3985
          %v3987 = vmul.f32 %v3982, %v3986
          %3988 = vst.msk [vmem:[#allocation24] sm:$0x3] %vm3973, %v3987
        $region116: #{net_forward.1} parent=71 // pred_fallthru
          _
        // Predicated region
        $region117: #{net_forward.1} parent=71 // pred_check
          %p3989 = pneg %p364
        $region118: #{net_forward.1} parent=71 // pred_check_branch
          %3991 = sbr.rel (%p3989) target = $region120
        $region119: #{net_forward.1} parent=71 // pred_region
          %s3993 = ssub.s32 32, 32
          %3994 = vsyncadd [#allocation11], %s3993
          %s3996 = sshll.u32 [#allocation24], 4
          %s3997 = int_to_ptr.vmem [resolvable:$true] %s3996
          %3999 = dma.vmem_to_hbm [thread:$0]  %s3997, 32, %s14, [#allocation11]
        $region120: #{net_forward.1} parent=71 // pred_fallthru
          _
        // Predicated region
        $region121: #{net_forward.1} parent=71 // pred_check
          %p4000 = pneg %p364
        $region122: #{net_forward.1} parent=71 // pred_check_branch
          %4002 = sbr.rel (%p4000) target = $region124
        $region123: #{net_forward.1} parent=71 // pred_region
          %4003 = dma.done [#allocation11], 32
        $region124: #{net_forward.1} parent=71 // pred_fallthru
          _
      $region72: #{net_forward.1} parent=5 // pred_fallthru
        _
      %p4004 = scmp.le.s32.totalorder 2, %s38
      // Predicated region
      $region125: #{net_forward.1} parent=5 // pred_check
        %p4005 = pneg %p4004
      $region126: #{net_forward.1} parent=5 // pred_check_branch
        %4007 = sbr.rel (%p4005) target = $region128
      $region127: #{net_forward.1} parent=5 // pred_region
        %s4008 = ssub.s32 %s38, 2
      $region128: #{net_forward.1} parent=5 // pred_fallthru
        _
    $region6: #{net_forward.1} parent=1 // loop_footer
      %s42 = sadd.s32 1, %s38
    $region7: #{net_forward.1} parent=1 // loop_footer_branch
      %37 = sbr.rel target = $region3
    $region8: #{net_forward.1} parent=1 // loop_exit
      _
    %4009 = vsyncpa [#allocation10], 1
    %s4010 = scalar_lea.sflag [#allocation10], 1
    %4011 = vsyncpa %s4010, 1
    %4012 = vsyncpa [#allocation13], 1
    %s4013 = scalar_lea.sflag [#allocation13], 1
    %4014 = vsyncpa %s4013, 1
    %4015 = vsyncpa [#allocation16], 1
    %s4016 = scalar_lea.sflag [#allocation16], 1
    %4017 = vsyncpa %s4016, 1
    %4018 = vsyncpa [#allocation19], 1
    %s4019 = scalar_lea.sflag [#allocation19], 1
    %4020 = vsyncpa %s4019, 1
    %4021 = vsyncpa [#allocation22], 1
    %4022 = vsyncpa [#allocation11], 1
    %s4023 = scalar_lea.sflag [#allocation11], 1
    %4024 = vsyncpa %s4023, 1

</llo_original>
